<compile_context>
chip_gen: v7x
topology: tpu7x:2x2x1
jax: 0.10.0
libtpu: 0.0.40
codegen_flags: <defaults>
</compile_context>

<pallas_src>
import functools

import jax
import jax.numpy as jnp
import numpy as np
from jax.experimental import pallas as pl
from jax.experimental.pallas import tpu as pltpu


# ---------------------------------------------------------------------------
# VMEM capacity / tile-size selection (generation-aware, padding-aware).
# ---------------------------------------------------------------------------
def _rup(v, m):
    return ((v + m - 1) // m) * m


@functools.lru_cache(maxsize=1)
def _vmem_caps():
    cap = 64 * 1024 * 1024                       # conservative default (v7x per-TC)
    try:
        info = pltpu.get_tpu_info()
        cap = int(getattr(info, "vmem_capacity_bytes", cap)) or cap
    except Exception:                            # interpret mode / older jax / no TPU
        pass
    tile_budget = max(8 * 1024 * 1024, min(int(cap * 0.45), 60 * 1024 * 1024))
    vmem_limit = max(32 * 1024 * 1024, min(int(cap * 0.80), 100 * 1024 * 1024))
    return tile_budget, vmem_limit


def _pick_row_tile(H, n_images, bytes_fn, budget, cap=None, min_steps=4):
    # TODO(synk): relax the "TH divides H" constraint with remainder-tile masking
    # for heights that are not highly composite.
    divs = [d for d in range(1, H + 1) if H % d == 0]
    if cap is not None:
        divs = [d for d in divs if d <= cap] or [1]
    feas = [d for d in divs if bytes_fn(d) <= budget] or [min(divs)]
    # Keep a few grid steps alive (megacore split + DMA/compute overlap).
    pref = [d for d in feas if n_images * (H // d) >= min_steps]
    return max(pref) if pref else max(feas)


def _conv_tile_bytes(th, W, Cin, Cout, Cr, upsample, in_item, cdt_item):
    ci, co = _rup(Cin, 128), _rup(Cout, 128)
    wp = _rup(W, 8)
    f = 2 if upsample else 1
    # HBM<->VMEM pipeline buffers (double buffered by default).
    tot = 2 * th * wp * ci * in_item                       # input row tile
    tot += 2 * 2 * wp * ci * in_item                       # two 1-row halos
    tot += 2 * f * th * wp * (f * co) * in_item            # output tile
    if Cr:
        tot += 2 * th * wp * _rup(Cr, 128) * in_item       # fused residual tile
    tot += 2 * (16 if upsample else 9) * ci * co * cdt_item  # folded weights
    # TODO(synk): mark weights pipeline_mode=pl.Buffered(1) to drop the 2x here.
    # In-kernel values: padded block, shifted column taps, K-concat, f32 accs.
    pr = th + 2
    tot += 3 * pr * wp * ci * cdt_item
    if upsample:
        tot += 2 * pr * wp * 2 * ci * cdt_item
        tot += 4 * th * wp * co * 4
        tot += 2 * 2 * th * wp * co * 4
    else:
        tot += pr * wp * 3 * ci * cdt_item
        tot += 2 * th * wp * co * 4
    return tot


# ---------------------------------------------------------------------------
# GroupNorm statistics for the block input (single bandwidth pass over x):
# per-image, per-channel sum / sumsq accumulated across row tiles.
# ---------------------------------------------------------------------------
def _chan_sums_kernel(x_ref, s_ref, q_ref):
    @pl.when(pl.program_id(1) == 0)
    def _():
        s_ref[...] = jnp.zeros_like(s_ref)
        q_ref[...] = jnp.zeros_like(q_ref)

    x = x_ref[0].astype(jnp.float32)                    # (TH, W, C)
    s_ref[...] += jnp.sum(x, axis=(0, 1)).reshape(1, 1, -1)
    q_ref[...] += jnp.sum(x * x, axis=(0, 1)).reshape(1, 1, -1)


def channel_sums(x, *, row_tile_cap=None):
    N, H, W, C = x.shape
    tile_budget, vmem_limit = _vmem_caps()
    ci, wp = _rup(C, 128), _rup(W, 8)
    TH = _pick_row_tile(
        H, N, lambda th: 2 * th * wp * ci * x.dtype.itemsize + th * wp * ci * 4,
        tile_budget, cap=row_tile_cap)
    T = H // TH
    s, q = pl.pallas_call(
        _chan_sums_kernel,
        out_shape=(jax.ShapeDtypeStruct((N, 1, C), jnp.float32),
                   jax.ShapeDtypeStruct((N, 1, C), jnp.float32)),
        grid=(N, T),
        in_specs=[pl.BlockSpec((1, TH, W, C), lambda n, t: (n, t, 0, 0))],
        out_specs=(pl.BlockSpec((1, 1, C), lambda n, t: (n, 0, 0)),
                   pl.BlockSpec((1, 1, C), lambda n, t: (n, 0, 0))),
        compiler_params=pltpu.CompilerParams(
            dimension_semantics=("parallel", "arbitrary"),
            vmem_limit_bytes=vmem_limit),
    )(x)
    return s.reshape(N, C), q.reshape(N, C)


def _gn_scale_shift(s, q, gamma, beta, groups, eps, spatial_count):
    """Finalize GroupNorm: per-channel scale=gamma*rstd, shift=beta-mean*scale."""
    N, C = s.shape
    cg = C // groups
    denom = float(spatial_count * cg)
    gs = s.reshape(N, groups, cg).sum(-1) / denom
    gq = q.reshape(N, groups, cg).sum(-1) / denom
    var = jnp.maximum(gq - gs * gs, 0.0)            # clamp: E[x^2]-E[x]^2 cancellation
    rstd = jax.lax.rsqrt(var + eps)
    mean_c = jnp.repeat(gs, cg, axis=1)             # (N, C)
    rstd_c = jnp.repeat(rstd, cg, axis=1)
    scale = rstd_c * gamma.astype(jnp.float32)[None, :]
    shift = beta.astype(jnp.float32)[None, :] - mean_c * scale
    return scale.reshape(N, 1, C), shift.reshape(N, 1, C)


# ---------------------------------------------------------------------------
# Upsample weight folding: nearest-2x + 3x3 conv == 4-phase 2x2 conv on the
# original resolution.  Phase (a, b) output pixel (2i+a, 2j+b) only ever sees
# the 2x2 original window; weights that hit the same original pixel are summed.
# ---------------------------------------------------------------------------
_TAP_GROUPS = (((0,), (1, 2)),      # phase 0: tap0 -> index-1 (krow/kcol 0), tap1 -> index (1,2)
               ((0, 1), (2,)))      # phase 1: tap0 -> index (0,1),           tap1 -> index+1 (2)


def _fold_upsample_weights(w, cdt):
    Cin, Cout = w.shape[2], w.shape[3]
    banks = []
    for a in range(2):
        for b in range(2):
            taps = []
            for r in range(2):
                parts = []
                for c in range(2):
                    f = jnp.zeros((Cin, Cout), jnp.float32)
                    for ky in _TAP_GROUPS[a][r]:
                        for kx in _TAP_GROUPS[b][c]:
                            f = f + w[ky, kx].astype(jnp.float32)
                    parts.append(f)
                taps.append(jnp.concatenate(parts, axis=0))      # (2*Cin, Cout)
            banks.append(jnp.stack(taps, axis=0))                # (2, 2*Cin, Cout)
    return jnp.stack(banks, axis=0).astype(cdt)                  # (4, 2, 2*Cin, Cout)


# ---------------------------------------------------------------------------
# Fused kernel:  [GN-affine + SiLU] -> 3x3 conv (SAME) or 4-phase 2x2 "upsample
# conv" -> [optional residual + 1x1 shortcut, 1/output_scale_factor]
#            -> [optional per-channel sum/sumsq epilogue for the next GN].
# Row halo comes from two extra 1-row auto-pipelined input blocks.
# ---------------------------------------------------------------------------
def _fused_conv3x3_kernel(*refs, apply_act, use_silu, upsample, fuse_residual,
                          has_shortcut, emit_stats, inv_scale, cdt):
    it = iter(refs)
    xm_ref, xt_ref, xb_ref = next(it), next(it), next(it)
    sc_ref = bi_ref = None
    if apply_act:
        sc_ref, bi_ref = next(it), next(it)
    w_ref, b_ref = next(it), next(it)
    res_ref = wsc_ref = bsc_ref = None
    if fuse_residual:
        res_ref = next(it)
        if has_shortcut:
            wsc_ref, bsc_ref = next(it), next(it)
    o_ref = next(it)
    s_ref = q_ref = None
    if emit_stats:
        s_ref, q_ref = next(it), next(it)
    xpad_ref = next(it)                                   # VMEM scratch (TH+2, W, Cin)

    TH, W, Cin = xm_ref.shape[1], xm_ref.shape[2], xm_ref.shape[3]
    Cout = b_ref.shape[-1]
    t = pl.program_id(1)
    T = pl.num_programs(1)

    if apply_act:
        gs = sc_ref[0, 0].astype(jnp.float32)             # (Cin,)
        gb = bi_ref[0, 0].astype(jnp.float32)             # (Cin,)

    def act(z):
        if not apply_act:
            return z.astype(cdt)
        z = z.astype(jnp.float32) * gs + gb               # GroupNorm affine
        if use_silu:
            z = z * jax.nn.sigmoid(z)                     # SiLU on the EUP
        return z.astype(cdt)

    # --- zero-'SAME'-padded (rows) activation block assembled in VMEM scratch --
    zrow = jnp.zeros((W, Cin), cdt)
    xpad_ref[1:TH + 1] = act(xm_ref[0])                   # (TH, W, Cin)
    xpad_ref[0] = jnp.where(t > 0, act(xt_ref[0, 0]), zrow)
    xpad_ref[TH + 1] = jnp.where(t < T - 1, act(xb_ref[0, 0]), zrow)
    xpad = xpad_ref[...]                                  # (TH+2, W, Cin)

    # --- column taps via zero column padding (no strided re-layout slices) -----
    zcol = jnp.zeros((TH + 2, 1, Cin), cdt)
    xpc = jnp.concatenate([zcol, xpad, zcol], axis=1)     # (TH+2, W+2, Cin)
    x_m1 = xpc[:, 0:W]                                    # column j-1
    x_p1 = xpc[:, 2:W + 2]                                # column j+1

    bias = b_ref[...].astype(jnp.float32)                 # (1, Cout)

    if not upsample:
        # K-folded 3x3 conv: 3 matmuls of K = 3*Cin (fills the MXU K depth).
        xcat = jnp.concatenate([x_m1, xpad, x_p1], axis=-1)       # (TH+2, W, 3*Cin)
        acc = jnp.zeros((TH * W, Cout), jnp.float32)
        for ky in range(3):
            blk = xcat[ky:ky + TH].reshape(TH * W, 3 * Cin)
            acc = acc + jnp.dot(blk, w_ref[ky], preferred_element_type=jnp.float32)
        out = acc + bias

        if fuse_residual:
            res = res_ref[0].reshape(TH * W, res_ref.shape[-1])
            if has_shortcut:
                skip = (jnp.dot(res.astype(cdt), wsc_ref[...],
                                preferred_element_type=jnp.float32)
                        + bsc_ref[...].astype(jnp.float32))
            else:
                skip = res.astype(jnp.float32)
            out = (out + skip) * inv_scale

        if emit_stats:                                    # norm2 stats fused in epilogue
            @pl.when(t == 0)
            def _():
                s_ref[...] = jnp.zeros_like(s_ref)
                q_ref[...] = jnp.zeros_like(q_ref)
            s_ref[...] += jnp.sum(out, axis=0).reshape(1, 1, Cout)
            q_ref[...] += jnp.sum(out * out, axis=0).reshape(1, 1, Cout)

        o_ref[0] = out.reshape(TH, W, Cout).astype(o_ref.dtype)
    else:
        # 4-phase 2x2 conv (== nearest-2x upsample + 3x3 conv), 2 matmuls/phase
        # with K = 2*Cin.  Column phases are packed lane-dense along channels
        # (.., W, 2*Cout); the wrapper un-packs with a free contiguous reshape.
        xcats = (jnp.concatenate([x_m1, xpad], axis=-1),   # b=0: cols (j-1, j)
                 jnp.concatenate([xpad, x_p1], axis=-1))   # b=1: cols (j, j+1)
        rows = []
        for a in range(2):
            phases = []
            for cb in range(2):
                acc = jnp.zeros((TH * W, Cout), jnp.float32)
                for r in range(2):
                    blk = xcats[cb][a + r:a + r + TH].reshape(TH * W, 2 * Cin)
                    acc = acc + jnp.dot(blk, w_ref[2 * a + cb, r],
                                        preferred_element_type=jnp.float32)
                phases.append((acc + bias).reshape(TH, W, Cout))
            rows.append(jnp.concatenate(phases, axis=-1))          # (TH, W, 2*Cout)
        out = jnp.stack(rows, axis=1).reshape(2 * TH, W, 2 * Cout)  # rows interleaved
        o_ref[0] = out.astype(o_ref.dtype)


def fused_conv3x3(x, w, b, *, gn_scale=None, gn_shift=None, silu=False,
                  residual=None, shortcut_w=None, shortcut_b=None,
                  output_scale_factor=1.0, upsample=False, emit_stats=False,
                  row_tile_cap=None, mxu_bf16=False):
    N, H, W, Cin = x.shape
    Cout = w.shape[-1]
    assert not (upsample and (residual is not None or emit_stats or gn_scale is not None))
    cdt = jnp.bfloat16 if (x.dtype == jnp.bfloat16 or mxu_bf16) else jnp.float32
    apply_act = gn_scale is not None
    fuse_res = residual is not None
    has_sc = shortcut_w is not None
    Cr = residual.shape[-1] if fuse_res else 0
    in_item = x.dtype.itemsize
    cdt_item = jnp.dtype(cdt).itemsize

    tile_budget, vmem_limit = _vmem_caps()
    TH = _pick_row_tile(
        H, N,
        lambda th: _conv_tile_bytes(th, W, Cin, Cout, Cr, upsample, in_item, cdt_item),
        tile_budget, cap=row_tile_cap)
    T = H // TH

    if upsample:
        wk = _fold_upsample_weights(w, cdt)               # (4, 2, 2*Cin, Cout)
    else:
        wk = w.reshape(3, 3 * Cin, Cout).astype(cdt)      # kx folded into K
    b2 = b.reshape(1, Cout).astype(jnp.float32)

    def mid_map(n, t):
        return (n, t, 0, 0)

    def top_map(n, t):
        return (n, jnp.maximum(t * TH - 1, 0), 0, 0)

    def bot_map(n, t):
        return (n, jnp.minimum(t * TH + TH, H - 1), 0, 0)

    in_specs = [pl.BlockSpec((1, TH, W, Cin), mid_map),
                pl.BlockSpec((1, 1, W, Cin), top_map),    # +1-row halo above
                pl.BlockSpec((1, 1, W, Cin), bot_map)]    # +1-row halo below
    args = [x, x, x]
    if apply_act:
        in_specs += [pl.BlockSpec((1, 1, Cin), lambda n, t: (n, 0, 0)),
                     pl.BlockSpec((1, 1, Cin), lambda n, t: (n, 0, 0))]
        args += [gn_scale, gn_shift]
    in_specs += [pl.BlockSpec(wk.shape, lambda n, t, nd=wk.ndim: (0,) * nd),
                 pl.BlockSpec((1, Cout), lambda n, t: (0, 0))]
    args += [wk, b2]
    if fuse_res:
        in_specs.append(pl.BlockSpec((1, TH, W, Cr), mid_map))
        args.append(residual)
        if has_sc:
            in_specs += [pl.BlockSpec((Cr, Cout), lambda n, t: (0, 0)),
                         pl.BlockSpec((1, Cout), lambda n, t: (0, 0))]
            args += [shortcut_w.astype(cdt),
                     shortcut_b.reshape(1, Cout).astype(jnp.float32)]

    if upsample:
        out_shapes = [jax.ShapeDtypeStruct((N, 2 * H, W, 2 * Cout), x.dtype)]
        out_specs = [pl.BlockSpec((1, 2 * TH, W, 2 * Cout), mid_map)]
    else:
        out_shapes = [jax.ShapeDtypeStruct((N, H, W, Cout), x.dtype)]
        out_specs = [pl.BlockSpec((1, TH, W, Cout), mid_map)]
    if emit_stats:
        out_shapes += [jax.ShapeDtypeStruct((N, 1, Cout), jnp.float32)] * 2
        out_specs += [pl.BlockSpec((1, 1, Cout), lambda n, t: (n, 0, 0))] * 2

    kern = functools.partial(
        _fused_conv3x3_kernel, apply_act=apply_act, use_silu=silu,
        upsample=upsample, fuse_residual=fuse_res, has_shortcut=has_sc,
        emit_stats=emit_stats, inv_scale=float(1.0 / output_scale_factor), cdt=cdt)

    res = pl.pallas_call(
        kern,
        out_shape=tuple(out_shapes),
        grid=(N, T),
        in_specs=in_specs,
        out_specs=tuple(out_specs),
        scratch_shapes=[pltpu.VMEM((TH + 2, W, Cin), cdt)],
        compiler_params=pltpu.CompilerParams(
            dimension_semantics=("parallel", "arbitrary" if emit_stats else "parallel"),
            vmem_limit_bytes=vmem_limit),
    )(*args)

    out = res[0]
    if upsample:
        # (N, 2H, W, 2*Cout) -> (N, 2H, 2W, Cout): contiguous (free) reshape.
        out = out.reshape(N, 2 * H, 2 * W, Cout)
    if emit_stats:
        return out, res[1].reshape(N, Cout), res[2].reshape(N, Cout)
    return out


# ---------------------------------------------------------------------------
# Module-level forward (NCHW public layout; Pallas kernels run NHWC).
# ---------------------------------------------------------------------------
def resnet_block(x, p, *, groups, eps, output_scale_factor, row_tile_cap=None,
                 mxu_bf16=False):
    N, H, W, _ = x.shape
    s1, q1 = channel_sums(x, row_tile_cap=row_tile_cap)
    sc1, sh1 = _gn_scale_shift(s1, q1, p["norm1_g"], p["norm1_b"], groups, eps, H * W)
    h, s2, q2 = fused_conv3x3(x, p["conv1_w"], p["conv1_b"], gn_scale=sc1, gn_shift=sh1,
                              silu=True, emit_stats=True,
                              row_tile_cap=row_tile_cap, mxu_bf16=mxu_bf16)
    sc2, sh2 = _gn_scale_shift(s2, q2, p["norm2_g"], p["norm2_b"], groups, eps, H * W)
    return fused_conv3x3(h, p["conv2_w"], p["conv2_b"], gn_scale=sc2, gn_shift=sh2,
                         silu=True, residual=x,
                         shortcut_w=p.get("short_w"), shortcut_b=p.get("short_b"),
                         output_scale_factor=output_scale_factor,
                         row_tile_cap=row_tile_cap, mxu_bf16=mxu_bf16)


def pare_up_decoder_block_2d(x, params, *, groups=32, eps=1e-6,
                             output_scale_factor=1.0, add_upsample=True,
                             row_tile_cap=None, mxu_bf16=False, channels_last=False):
    # TODO(synk): temb embedding path omitted (module default temb=None).
    if not channels_last:
        x = jnp.transpose(x, (0, 2, 3, 1))                 # NCHW -> NHWC
    for p in params["resnets"]:
        x = resnet_block(x, p, groups=groups, eps=eps,
                         output_scale_factor=output_scale_factor,
                         row_tile_cap=row_tile_cap, mxu_bf16=mxu_bf16)
    if add_upsample:
        for p in params["upsamplers"]:
            x = fused_conv3x3(x, p["conv_w"], p["conv_b"], upsample=True,
                              row_tile_cap=row_tile_cap, mxu_bf16=mxu_bf16)
    if not channels_last:
        x = jnp.transpose(x, (0, 3, 1, 2))                 # NHWC -> NCHW
    return x


# ---------------------------------------------------------------------------
# Deterministic parameter initialization (shapes follow the module __init__).
# Conv weights stored HWIO (3,3,Cin,Cout); 1x1 shortcut as (Cin,Cout).
# ---------------------------------------------------------------------------
def init_params(key, in_channels, out_channels, num_layers=1):
    params = {"resnets": [], "upsamplers": []}
    for i in range(num_layers):
        cin = in_channels if i == 0 else out_channels
        ks = jax.random.split(jax.random.fold_in(key, i), 10)
        p = {
            "norm1_g": 1.0 + 0.05 * jax.random.normal(ks[0], (cin,), jnp.float32),
            "norm1_b": 0.05 * jax.random.normal(ks[1], (cin,), jnp.float32),
            "conv1_w": 0.05 * jax.random.normal(ks[2], (3, 3, cin, out_channels), jnp.float32),
            "conv1_b": 0.05 * jax.random.normal(ks[3], (out_channels,), jnp.float32),
            "norm2_g": 1.0 + 0.05 * jax.random.normal(ks[4], (out_channels,), jnp.float32),
            "norm2_b": 0.05 * jax.random.normal(ks[5], (out_channels,), jnp.float32),
            "conv2_w": 0.05 * jax.random.normal(ks[6], (3, 3, out_channels, out_channels), jnp.float32),
            "conv2_b": 0.05 * jax.random.normal(ks[7], (out_channels,), jnp.float32),
        }
        if cin != out_channels:  # use_in_shortcut -> 1x1 conv_shortcut
            p["short_w"] = 0.05 * jax.random.normal(ks[8], (cin, out_channels), jnp.float32)
            p["short_b"] = 0.05 * jax.random.normal(ks[9], (out_channels,), jnp.float32)
        params["resnets"].append(p)
    ku = jax.random.split(jax.random.fold_in(key, 1000), 2)
    params["upsamplers"].append({
        "conv_w": 0.05 * jax.random.normal(ku[0], (3, 3, out_channels, out_channels), jnp.float32),
        "conv_b": 0.05 * jax.random.normal(ku[1], (out_channels,), jnp.float32),
    })
    return params


# ---------------------------------------------------------------------------
# Pure-JAX reference for correctness checks.
# ---------------------------------------------------------------------------
def _ref_forward(x_nchw, params, *, groups, eps, output_scale_factor=1.0):
    x = jnp.transpose(x_nchw, (0, 2, 3, 1))

    def gn_silu(x, g, b):
        N, H, W, C = x.shape
        xg = x.reshape(N, H, W, groups, C // groups)
        mean = xg.mean(axis=(1, 2, 4), keepdims=True)
        var = xg.var(axis=(1, 2, 4), keepdims=True)
        xg = (xg - mean) * jax.lax.rsqrt(var + eps)
        y = xg.reshape(N, H, W, C) * g + b
        return y * jax.nn.sigmoid(y)

    def conv(x, w, b):
        return jax.lax.conv_general_dilated(
            x, w, (1, 1), "SAME",
            dimension_numbers=("NHWC", "HWIO", "NHWC")) + b

    for p in params["resnets"]:
        h = gn_silu(x, p["norm1_g"], p["norm1_b"])
        h = conv(h, p["conv1_w"], p["conv1_b"])
        h = gn_silu(h, p["norm2_g"], p["norm2_b"])
        h = conv(h, p["conv2_w"], p["conv2_b"])
        skip = jnp.einsum("nhwc,cd->nhwd", x, p["short_w"]) + p["short_b"] if "short_w" in p else x
        x = (skip + h) / output_scale_factor
    for p in params["upsamplers"]:
        x = jnp.repeat(jnp.repeat(x, 2, axis=1), 2, axis=2)
        x = conv(x, p["conv_w"], p["conv_b"])
    return jnp.transpose(x, (0, 3, 1, 2))


if __name__ == "__main__":
    key = jax.random.PRNGKey(0)
    GROUPS, EPS = 32, 1e-6

    # Config 1: channel-changing block (exercises the fused 1x1 conv_shortcut
    # and the norm2-stats-in-conv1-epilogue accumulation across row tiles).
    B, C_IN, C_OUT, H, W = 2, 64, 32, 8, 8
    x = jax.random.normal(jax.random.fold_in(key, 7), (B, C_IN, H, W), jnp.float32)
    params = init_params(key, C_IN, C_OUT, num_layers=1)
    fwd1 = jax.jit(functools.partial(pare_up_decoder_block_2d, groups=GROUPS, eps=EPS))
    out = jax.block_until_ready(fwd1(x, params))
    assert out.shape == (B, C_OUT, 2 * H, 2 * W), out.shape
    ref = jax.block_until_ready(_ref_forward(x, params, groups=GROUPS, eps=EPS))
    np.testing.assert_allclose(np.asarray(out), np.asarray(ref), rtol=2e-3, atol=2e-3)

    # Config 2: identity shortcut, forced multi-row-tile grid (exercises halos).
    B2, C2, H2, W2 = 1, 32, 16, 8
    x2 = jax.random.normal(jax.random.fold_in(key, 11), (B2, C2, H2, W2), jnp.float32)
    params2 = init_params(jax.random.fold_in(key, 3), C2, C2, num_layers=1)
    fwd2 = jax.jit(functools.partial(pare_up_decoder_block_2d, groups=GROUPS, eps=EPS,
                                     row_tile_cap=4))
    out2 = jax.block_until_ready(fwd2(x2, params2))
    assert out2.shape == (B2, C2, 2 * H2, 2 * W2), out2.shape
    ref2 = jax.block_until_ready(_ref_forward(x2, params2, groups=GROUPS, eps=EPS))
    np.testing.assert_allclose(np.asarray(out2), np.asarray(ref2), rtol=2e-3, atol=2e-3)

    print("KERNEL_OK")
</pallas_src>

<mosaic_0001>
module attributes {stable_mosaic.version = 11 : i64} {
  func.func @_chan_sums_kernel(%arg0: i32, %arg1: i32, %arg2: memref<1x4x8x64xf32, #tpu.memory_space<vmem>>, %arg3: memref<1x1x64xf32, #tpu.memory_space<vmem>>, %arg4: memref<1x1x64xf32, #tpu.memory_space<vmem>>) attributes {dimension_semantics = [#tpu.dimension_semantics<parallel>, #tpu.dimension_semantics<arbitrary>], iteration_bounds = array<i64: 2, 2>, scalar_prefetch = 0 : i64, scratch_operands = 0 : i64, tpu.core_type = #tpu.core_type<tc>, window_params = [{transform_indices = @transform_0, window_bounds = array<i64: 1, 4, 8, 64>}, {transform_indices = @transform_1, window_bounds = array<i64: 1, 1, 64>}, {transform_indices = @transform_2, window_bounds = array<i64: 1, 1, 64>}]} {
    %c0_i32 = arith.constant 0 : i32
    %0 = arith.cmpi eq, %arg1, %c0_i32 : i32
    %1 = arith.extui %0 : i1 to i32
    %c0_i32_0 = arith.constant 0 : i32
    %2 = arith.cmpi ne, %1, %c0_i32_0 : i32
    scf.if %2 {
      %cst_17 = arith.constant 0.000000e+00 : f32
      %16 = vector.broadcast %cst_17 : f32 to vector<1x1x64xf32>
      %c0_18 = arith.constant 0 : index
      %c0_19 = arith.constant 0 : index
      %c0_20 = arith.constant 0 : index
      %17 = vector.load %arg3[%c0_18, %c0_19, %c0_20] : memref<1x1x64xf32, #tpu.memory_space<vmem>>, vector<1x1x64xf32>
      tpu.vector_store %arg3[%c0_18, %c0_19, %c0_20], %16 {strides = array<i32>} : memref<1x1x64xf32, #tpu.memory_space<vmem>>, vector<1x1x64xf32>,
      %cst_21 = arith.constant 0.000000e+00 : f32
      %18 = vector.broadcast %cst_21 : f32 to vector<1x1x64xf32>
      %c0_22 = arith.constant 0 : index
      %c0_23 = arith.constant 0 : index
      %c0_24 = arith.constant 0 : index
      %19 = vector.load %arg4[%c0_22, %c0_23, %c0_24] : memref<1x1x64xf32, #tpu.memory_space<vmem>>, vector<1x1x64xf32>
      tpu.vector_store %arg4[%c0_22, %c0_23, %c0_24], %18 {strides = array<i32>} : memref<1x1x64xf32, #tpu.memory_space<vmem>>, vector<1x1x64xf32>,
    } else {
    }
    %c0 = arith.constant 0 : index
    %c0_1 = arith.constant 0 : index
    %c0_2 = arith.constant 0 : index
    %c0_3 = arith.constant 0 : index
    %3 = vector.load %arg2[%c0, %c0_1, %c0_2, %c0_3] : memref<1x4x8x64xf32, #tpu.memory_space<vmem>>, vector<1x4x8x64xf32>
    %4 = vector.shape_cast %3 : vector<1x4x8x64xf32> to vector<4x8x64xf32>
    %c0_4 = arith.constant 0 : index
    %c0_5 = arith.constant 0 : index
    %c0_6 = arith.constant 0 : index
    %5 = vector.load %arg3[%c0_4, %c0_5, %c0_6] : memref<1x1x64xf32, #tpu.memory_space<vmem>>, vector<1x1x64xf32>
    %cst = arith.constant dense<0.000000e+00> : vector<64xf32>
    %6 = vector.multi_reduction <add>, %4, %cst [0, 1] : vector<4x8x64xf32> to vector<64xf32>
    %7 = vector.shape_cast %6 : vector<64xf32> to vector<1x1x64xf32>
    %8 = arith.addf %5, %7 : vector<1x1x64xf32>
    %c0_7 = arith.constant 0 : index
    %c0_8 = arith.constant 0 : index
    %c0_9 = arith.constant 0 : index
    %9 = vector.load %arg3[%c0_7, %c0_8, %c0_9] : memref<1x1x64xf32, #tpu.memory_space<vmem>>, vector<1x1x64xf32>
    tpu.vector_store %arg3[%c0_7, %c0_8, %c0_9], %8 {strides = array<i32>} : memref<1x1x64xf32, #tpu.memory_space<vmem>>, vector<1x1x64xf32>,
    %c0_10 = arith.constant 0 : index
    %c0_11 = arith.constant 0 : index
    %c0_12 = arith.constant 0 : index
    %10 = vector.load %arg4[%c0_10, %c0_11, %c0_12] : memref<1x1x64xf32, #tpu.memory_space<vmem>>, vector<1x1x64xf32>
    %11 = arith.mulf %4, %4 : vector<4x8x64xf32>
    %cst_13 = arith.constant dense<0.000000e+00> : vector<64xf32>
    %12 = vector.multi_reduction <add>, %11, %cst_13 [0, 1] : vector<4x8x64xf32> to vector<64xf32>
    %13 = vector.shape_cast %12 : vector<64xf32> to vector<1x1x64xf32>
    %14 = arith.addf %10, %13 : vector<1x1x64xf32>
    %c0_14 = arith.constant 0 : index
    %c0_15 = arith.constant 0 : index
    %c0_16 = arith.constant 0 : index
    %15 = vector.load %arg4[%c0_14, %c0_15, %c0_16] : memref<1x1x64xf32, #tpu.memory_space<vmem>>, vector<1x1x64xf32>
    tpu.vector_store %arg4[%c0_14, %c0_15, %c0_16], %14 {strides = array<i32>} : memref<1x1x64xf32, #tpu.memory_space<vmem>>, vector<1x1x64xf32>,
    return
  }
  func.func @transform_0(%arg0: i32, %arg1: i32) -> (i32, i32, i32, i32) {
    %c0_i32 = arith.constant 0 : i32
    %c0_i32_0 = arith.constant 0 : i32
    %c0_i32_1 = arith.constant 0 : i32
    return %arg0, %arg1, %c0_i32, %c0_i32_0 : i32, i32, i32, i32
  }
  func.func @transform_1(%arg0: i32, %arg1: i32) -> (i32, i32, i32) {
    %c0_i32 = arith.constant 0 : i32
    %c0_i32_0 = arith.constant 0 : i32
    %c0_i32_1 = arith.constant 0 : i32
    return %arg0, %c0_i32, %c0_i32_0 : i32, i32, i32
  }
  func.func @transform_2(%arg0: i32, %arg1: i32) -> (i32, i32, i32) {
    %c0_i32 = arith.constant 0 : i32
    %c0_i32_0 = arith.constant 0 : i32
    %c0_i32_1 = arith.constant 0 : i32
    return %arg0, %c0_i32, %c0_i32_0 : i32, i32, i32
  }
}

module attributes {stable_mosaic.version = 11 : i64} {
  func.func @_fused_conv3x3_kernel(%arg0: i32, %arg1: i32, %arg2: memref<1x4x8x64xf32, #tpu.memory_space<vmem>>, %arg3: memref<1x1x8x64xf32, #tpu.memory_space<vmem>>, %arg4: memref<1x1x8x64xf32, #tpu.memory_space<vmem>>, %arg5: memref<1x1x64xf32, #tpu.memory_space<vmem>>, %arg6: memref<1x1x64xf32, #tpu.memory_space<vmem>>, %arg7: memref<3x192x32xf32, #tpu.memory_space<vmem>>, %arg8: memref<1x32xf32, #tpu.memory_space<vmem>>, %arg9: memref<1x4x8x32xf32, #tpu.memory_space<vmem>>, %arg10: memref<1x1x32xf32, #tpu.memory_space<vmem>>, %arg11: memref<1x1x32xf32, #tpu.memory_space<vmem>>, %arg12: memref<6x8x64xf32, #tpu.memory_space<vmem>>) attributes {dimension_semantics = [#tpu.dimension_semantics<parallel>, #tpu.dimension_semantics<arbitrary>], iteration_bounds = array<i64: 2, 2>, scalar_prefetch = 0 : i64, scratch_operands = 1 : i64, tpu.core_type = #tpu.core_type<tc>, window_params = [{transform_indices = @transform_0, window_bounds = array<i64: 1, 4, 8, 64>}, {transform_indices = @transform_1, window_bounds = array<i64: 1, 1, 8, 64>}, {transform_indices = @transform_2, window_bounds = array<i64: 1, 1, 8, 64>}, {transform_indices = @transform_3, window_bounds = array<i64: 1, 1, 64>}, {transform_indices = @transform_4, window_bounds = array<i64: 1, 1, 64>}, {pipeline_mode = #tpu.pipeline_mode<synchronous>, transform_indices = @transform_5, window_bounds = array<i64: 3, 192, 32>}, {pipeline_mode = #tpu.pipeline_mode<synchronous>, transform_indices = @transform_6, window_bounds = array<i64: 1, 32>}, {transform_indices = @transform_7, window_bounds = array<i64: 1, 4, 8, 32>}, {transform_indices = @transform_8, window_bounds = array<i64: 1, 1, 32>}, {transform_indices = @transform_9, window_bounds = array<i64: 1, 1, 32>}]} {
    %c0 = arith.constant 0 : index
    %c0_0 = arith.constant 0 : index
    %c0_1 = arith.constant 0 : index
    %0 = vector.load %arg5[%c0, %c0_0, %c0_1] : memref<1x1x64xf32, #tpu.memory_space<vmem>>, vector<1x1x64xf32>
    %1 = vector.shape_cast %0 : vector<1x1x64xf32> to vector<64xf32>
    %c0_2 = arith.constant 0 : index
    %c0_3 = arith.constant 0 : index
    %c0_4 = arith.constant 0 : index
    %2 = vector.load %arg6[%c0_2, %c0_3, %c0_4] : memref<1x1x64xf32, #tpu.memory_space<vmem>>, vector<1x1x64xf32>
    %3 = vector.shape_cast %2 : vector<1x1x64xf32> to vector<64xf32>
    %cst = arith.constant 0.000000e+00 : f32
    %4 = vector.broadcast %cst : f32 to vector<8x64xf32>
    %c0_5 = arith.constant 0 : index
    %c0_6 = arith.constant 0 : index
    %c0_7 = arith.constant 0 : index
    %c0_8 = arith.constant 0 : index
    %5 = vector.load %arg2[%c0_5, %c0_6, %c0_7, %c0_8] : memref<1x4x8x64xf32, #tpu.memory_space<vmem>>, vector<1x4x8x64xf32>
    %6 = vector.shape_cast %5 : vector<1x4x8x64xf32> to vector<4x8x64xf32>
    %7 = vector.shape_cast %1 : vector<64xf32> to vector<1x1x64xf32>
    %8 = vector.broadcast %7 : vector<1x1x64xf32> to vector<4x8x64xf32>
    %9 = arith.mulf %6, %8 : vector<4x8x64xf32>
    %10 = vector.shape_cast %3 : vector<64xf32> to vector<1x1x64xf32>
    %11 = vector.broadcast %10 : vector<1x1x64xf32> to vector<4x8x64xf32>
    %12 = arith.addf %9, %11 : vector<4x8x64xf32>
    %13 = arith.negf %12 : vector<4x8x64xf32>
    %14 = math.exp %13 : vector<4x8x64xf32>
    %cst_9 = arith.constant 1.000000e+00 : f32
    %15 = vector.broadcast %cst_9 : f32 to vector<4x8x64xf32>
    %16 = arith.addf %15, %14 : vector<4x8x64xf32>
    %17 = arith.divf %15, %16 : vector<4x8x64xf32>
    %18 = arith.mulf %12, %17 : vector<4x8x64xf32>
    %c1 = arith.constant 1 : index
    %c0_10 = arith.constant 0 : index
    %c0_11 = arith.constant 0 : index
    %19 = vector.load %arg12[%c1, %c0_10, %c0_11] : memref<6x8x64xf32, #tpu.memory_space<vmem>>, vector<4x8x64xf32>
    tpu.vector_store %arg12[%c1, %c0_10, %c0_11], %18 {strides = array<i32>} : memref<6x8x64xf32, #tpu.memory_space<vmem>>, vector<4x8x64xf32>,
    %c0_i32 = arith.constant 0 : i32
    %20 = arith.cmpi sgt, %arg1, %c0_i32 : i32
    %c0_12 = arith.constant 0 : index
    %c0_13 = arith.constant 0 : index
    %c0_14 = arith.constant 0 : index
    %c0_15 = arith.constant 0 : index
    %21 = vector.load %arg3[%c0_12, %c0_13, %c0_14, %c0_15] : memref<1x1x8x64xf32, #tpu.memory_space<vmem>>, vector<1x1x8x64xf32>
    %22 = vector.shape_cast %21 : vector<1x1x8x64xf32> to vector<8x64xf32>
    %23 = vector.shape_cast %1 : vector<64xf32> to vector<1x64xf32>
    %24 = vector.broadcast %23 : vector<1x64xf32> to vector<8x64xf32>
    %25 = arith.mulf %22, %24 : vector<8x64xf32>
    %26 = vector.shape_cast %3 : vector<64xf32> to vector<1x64xf32>
    %27 = vector.broadcast %26 : vector<1x64xf32> to vector<8x64xf32>
    %28 = arith.addf %25, %27 : vector<8x64xf32>
    %29 = arith.negf %28 : vector<8x64xf32>
    %30 = math.exp %29 : vector<8x64xf32>
    %cst_16 = arith.constant 1.000000e+00 : f32
    %31 = vector.broadcast %cst_16 : f32 to vector<8x64xf32>
    %32 = arith.addf %31, %30 : vector<8x64xf32>
    %33 = arith.divf %31, %32 : vector<8x64xf32>
    %34 = arith.mulf %28, %33 : vector<8x64xf32>
    %35 = arith.select %20, %34, %4 : vector<8x64xf32>
    %c0_17 = arith.constant 0 : index
    %c0_18 = arith.constant 0 : index
    %c0_19 = arith.constant 0 : index
    %36 = vector.load %arg12[%c0_17, %c0_18, %c0_19] : memref<6x8x64xf32, #tpu.memory_space<vmem>>, vector<1x8x64xf32>
    %37 = vector.shape_cast %36 : vector<1x8x64xf32> to vector<8x64xf32>
    %38 = vector.shape_cast %35 : vector<8x64xf32> to vector<1x8x64xf32>
    tpu.vector_store %arg12[%c0_17, %c0_18, %c0_19], %38 {strides = array<i32>} : memref<6x8x64xf32, #tpu.memory_space<vmem>>, vector<1x8x64xf32>,
    %c1_i32 = arith.constant 1 : i32
    %39 = arith.cmpi slt, %arg1, %c1_i32 : i32
    %c0_20 = arith.constant 0 : index
    %c0_21 = arith.constant 0 : index
    %c0_22 = arith.constant 0 : index
    %c0_23 = arith.constant 0 : index
    %40 = vector.load %arg4[%c0_20, %c0_21, %c0_22, %c0_23] : memref<1x1x8x64xf32, #tpu.memory_space<vmem>>, vector<1x1x8x64xf32>
    %41 = vector.shape_cast %40 : vector<1x1x8x64xf32> to vector<8x64xf32>
    %42 = vector.shape_cast %1 : vector<64xf32> to vector<1x64xf32>
    %43 = vector.broadcast %42 : vector<1x64xf32> to vector<8x64xf32>
    %44 = arith.mulf %41, %43 : vector<8x64xf32>
    %45 = vector.shape_cast %3 : vector<64xf32> to vector<1x64xf32>
    %46 = vector.broadcast %45 : vector<1x64xf32> to vector<8x64xf32>
    %47 = arith.addf %44, %46 : vector<8x64xf32>
    %48 = arith.negf %47 : vector<8x64xf32>
    %49 = math.exp %48 : vector<8x64xf32>
    %cst_24 = arith.constant 1.000000e+00 : f32
    %50 = vector.broadcast %cst_24 : f32 to vector<8x64xf32>
    %51 = arith.addf %50, %49 : vector<8x64xf32>
    %52 = arith.divf %50, %51 : vector<8x64xf32>
    %53 = arith.mulf %47, %52 : vector<8x64xf32>
    %54 = arith.select %39, %53, %4 : vector<8x64xf32>
    %c5 = arith.constant 5 : index
    %c0_25 = arith.constant 0 : index
    %c0_26 = arith.constant 0 : index
    %55 = vector.load %arg12[%c5, %c0_25, %c0_26] : memref<6x8x64xf32, #tpu.memory_space<vmem>>, vector<1x8x64xf32>
    %56 = vector.shape_cast %55 : vector<1x8x64xf32> to vector<8x64xf32>
    %57 = vector.shape_cast %54 : vector<8x64xf32> to vector<1x8x64xf32>
    tpu.vector_store %arg12[%c5, %c0_25, %c0_26], %57 {strides = array<i32>} : memref<6x8x64xf32, #tpu.memory_space<vmem>>, vector<1x8x64xf32>,
    %c0_27 = arith.constant 0 : index
    %c0_28 = arith.constant 0 : index
    %c0_29 = arith.constant 0 : index
    %58 = vector.load %arg12[%c0_27, %c0_28, %c0_29] : memref<6x8x64xf32, #tpu.memory_space<vmem>>, vector<6x8x64xf32>
    %cst_30 = arith.constant 0.000000e+00 : f32
    %59 = vector.broadcast %cst_30 : f32 to vector<6x1x64xf32>
    %60 = tpu.concatenate %59, %58, %59 in 1 : vector<6x1x64xf32>, vector<6x8x64xf32>, vector<6x1x64xf32> -> vector<6x10x64xf32>
    %61 = vector.extract_strided_slice %60 {offsets = [0, 0, 0], sizes = [6, 8, 64], strides = [1, 1, 1]} : vector<6x10x64xf32> to vector<6x8x64xf32>
    %62 = vector.extract_strided_slice %60 {offsets = [0, 2, 0], sizes = [6, 8, 64], strides = [1, 1, 1]} : vector<6x10x64xf32> to vector<6x8x64xf32>
    %c0_31 = arith.constant 0 : index
    %c0_32 = arith.constant 0 : index
    %63 = vector.load %arg8[%c0_31, %c0_32] : memref<1x32xf32, #tpu.memory_space<vmem>>, vector<1x32xf32>
    %64 = tpu.concatenate %61, %58, %62 in 2 : vector<6x8x64xf32>, vector<6x8x64xf32>, vector<6x8x64xf32> -> vector<6x8x192xf32>
    %cst_33 = arith.constant 0.000000e+00 : f32
    %65 = vector.broadcast %cst_33 : f32 to vector<32x32xf32>
    %66 = vector.extract_strided_slice %64 {offsets = [0, 0, 0], sizes = [4, 8, 192], strides = [1, 1, 1]} : vector<6x8x192xf32> to vector<4x8x192xf32>
    %67 = vector.shape_cast %66 : vector<4x8x192xf32> to vector<32x192xf32>
    %c0_34 = arith.constant 0 : index
    %c0_35 = arith.constant 0 : index
    %c0_36 = arith.constant 0 : index
    %68 = vector.load %arg7[%c0_34, %c0_35, %c0_36] : memref<3x192x32xf32, #tpu.memory_space<vmem>>, vector<1x192x32xf32>
    %69 = vector.shape_cast %68 : vector<1x192x32xf32> to vector<192x32xf32>
    %cst_37 = arith.constant dense<0.000000e+00> : vector<32x32xf32>
    %70 = tpu.matmul %67, %69, %cst_37 {dimension_numbers = #tpu.dot_dimension_numbers<[1], [0], [0], [1], [0, 0, 1, 1], [], []>} : vector<32x192xf32>, vector<192x32xf32>, vector<32x32xf32> -> vector<32x32xf32>
    %71 = arith.addf %65, %70 : vector<32x32xf32>
    %72 = vector.extract_strided_slice %64 {offsets = [1, 0, 0], sizes = [4, 8, 192], strides = [1, 1, 1]} : vector<6x8x192xf32> to vector<4x8x192xf32>
    %73 = vector.shape_cast %72 : vector<4x8x192xf32> to vector<32x192xf32>
    %c1_38 = arith.constant 1 : index
    %c0_39 = arith.constant 0 : index
    %c0_40 = arith.constant 0 : index
    %74 = vector.load %arg7[%c1_38, %c0_39, %c0_40] : memref<3x192x32xf32, #tpu.memory_space<vmem>>, vector<1x192x32xf32>
    %75 = vector.shape_cast %74 : vector<1x192x32xf32> to vector<192x32xf32>
    %cst_41 = arith.constant dense<0.000000e+00> : vector<32x32xf32>
    %76 = tpu.matmul %73, %75, %cst_41 {dimension_numbers = #tpu.dot_dimension_numbers<[1], [0], [0], [1], [0, 0, 1, 1], [], []>} : vector<32x192xf32>, vector<192x32xf32>, vector<32x32xf32> -> vector<32x32xf32>
    %77 = arith.addf %71, %76 : vector<32x32xf32>
    %78 = vector.extract_strided_slice %64 {offsets = [2, 0, 0], sizes = [4, 8, 192], strides = [1, 1, 1]} : vector<6x8x192xf32> to vector<4x8x192xf32>
    %79 = vector.shape_cast %78 : vector<4x8x192xf32> to vector<32x192xf32>
    %c2 = arith.constant 2 : index
    %c0_42 = arith.constant 0 : index
    %c0_43 = arith.constant 0 : index
    %80 = vector.load %arg7[%c2, %c0_42, %c0_43] : memref<3x192x32xf32, #tpu.memory_space<vmem>>, vector<1x192x32xf32>
    %81 = vector.shape_cast %80 : vector<1x192x32xf32> to vector<192x32xf32>
    %cst_44 = arith.constant dense<0.000000e+00> : vector<32x32xf32>
    %82 = tpu.matmul %79, %81, %cst_44 {dimension_numbers = #tpu.dot_dimension_numbers<[1], [0], [0], [1], [0, 0, 1, 1], [], []>} : vector<32x192xf32>, vector<192x32xf32>, vector<32x32xf32> -> vector<32x32xf32>
    %83 = arith.addf %77, %82 : vector<32x32xf32>
    %84 = vector.broadcast %63 : vector<1x32xf32> to vector<32x32xf32>
    %85 = arith.addf %83, %84 : vector<32x32xf32>
    %c0_i32_45 = arith.constant 0 : i32
    %86 = arith.cmpi eq, %arg1, %c0_i32_45 : i32
    %87 = arith.extui %86 : i1 to i32
    %c0_i32_46 = arith.constant 0 : i32
    %88 = arith.cmpi ne, %87, %c0_i32_46 : i32
    scf.if %88 {
      %cst_65 = arith.constant 0.000000e+00 : f32
      %104 = vector.broadcast %cst_65 : f32 to vector<1x1x32xf32>
      %c0_66 = arith.constant 0 : index
      %c0_67 = arith.constant 0 : index
      %c0_68 = arith.constant 0 : index
      %105 = vector.load %arg10[%c0_66, %c0_67, %c0_68] : memref<1x1x32xf32, #tpu.memory_space<vmem>>, vector<1x1x32xf32>
      tpu.vector_store %arg10[%c0_66, %c0_67, %c0_68], %104 {strides = array<i32>} : memref<1x1x32xf32, #tpu.memory_space<vmem>>, vector<1x1x32xf32>,
      %cst_69 = arith.constant 0.000000e+00 : f32
      %106 = vector.broadcast %cst_69 : f32 to vector<1x1x32xf32>
      %c0_70 = arith.constant 0 : index
      %c0_71 = arith.constant 0 : index
      %c0_72 = arith.constant 0 : index
      %107 = vector.load %arg11[%c0_70, %c0_71, %c0_72] : memref<1x1x32xf32, #tpu.memory_space<vmem>>, vector<1x1x32xf32>
      tpu.vector_store %arg11[%c0_70, %c0_71, %c0_72], %106 {strides = array<i32>} : memref<1x1x32xf32, #tpu.memory_space<vmem>>, vector<1x1x32xf32>,
    } else {
    }
    %c0_47 = arith.constant 0 : index
    %c0_48 = arith.constant 0 : index
    %c0_49 = arith.constant 0 : index
    %89 = vector.load %arg10[%c0_47, %c0_48, %c0_49] : memref<1x1x32xf32, #tpu.memory_space<vmem>>, vector<1x1x32xf32>
    %cst_50 = arith.constant dense<0.000000e+00> : vector<32xf32>
    %90 = vector.multi_reduction <add>, %85, %cst_50 [0] : vector<32x32xf32> to vector<32xf32>
    %91 = vector.shape_cast %90 : vector<32xf32> to vector<1x1x32xf32>
    %92 = arith.addf %89, %91 : vector<1x1x32xf32>
    %c0_51 = arith.constant 0 : index
    %c0_52 = arith.constant 0 : index
    %c0_53 = arith.constant 0 : index
    %93 = vector.load %arg10[%c0_51, %c0_52, %c0_53] : memref<1x1x32xf32, #tpu.memory_space<vmem>>, vector<1x1x32xf32>
    tpu.vector_store %arg10[%c0_51, %c0_52, %c0_53], %92 {strides = array<i32>} : memref<1x1x32xf32, #tpu.memory_space<vmem>>, vector<1x1x32xf32>,
    %c0_54 = arith.constant 0 : index
    %c0_55 = arith.constant 0 : index
    %c0_56 = arith.constant 0 : index
    %94 = vector.load %arg11[%c0_54, %c0_55, %c0_56] : memref<1x1x32xf32, #tpu.memory_space<vmem>>, vector<1x1x32xf32>
    %95 = arith.mulf %85, %85 : vector<32x32xf32>
    %cst_57 = arith.constant dense<0.000000e+00> : vector<32xf32>
    %96 = vector.multi_reduction <add>, %95, %cst_57 [0] : vector<32x32xf32> to vector<32xf32>
    %97 = vector.shape_cast %96 : vector<32xf32> to vector<1x1x32xf32>
    %98 = arith.addf %94, %97 : vector<1x1x32xf32>
    %c0_58 = arith.constant 0 : index
    %c0_59 = arith.constant 0 : index
    %c0_60 = arith.constant 0 : index
    %99 = vector.load %arg11[%c0_58, %c0_59, %c0_60] : memref<1x1x32xf32, #tpu.memory_space<vmem>>, vector<1x1x32xf32>
    tpu.vector_store %arg11[%c0_58, %c0_59, %c0_60], %98 {strides = array<i32>} : memref<1x1x32xf32, #tpu.memory_space<vmem>>, vector<1x1x32xf32>,
    %100 = vector.shape_cast %85 : vector<32x32xf32> to vector<4x8x32xf32>
    %c0_61 = arith.constant 0 : index
    %c0_62 = arith.constant 0 : index
    %c0_63 = arith.constant 0 : index
    %c0_64 = arith.constant 0 : index
    %101 = vector.load %arg9[%c0_61, %c0_62, %c0_63, %c0_64] : memref<1x4x8x32xf32, #tpu.memory_space<vmem>>, vector<1x4x8x32xf32>
    %102 = vector.shape_cast %101 : vector<1x4x8x32xf32> to vector<4x8x32xf32>
    %103 = vector.shape_cast %100 : vector<4x8x32xf32> to vector<1x4x8x32xf32>
    tpu.vector_store %arg9[%c0_61, %c0_62, %c0_63, %c0_64], %103 {strides = array<i32>} : memref<1x4x8x32xf32, #tpu.memory_space<vmem>>, vector<1x4x8x32xf32>,
    return
  }
  func.func @transform_0(%arg0: i32, %arg1: i32) -> (i32, i32, i32, i32) {
    %c0_i32 = arith.constant 0 : i32
    %c0_i32_0 = arith.constant 0 : i32
    %c0_i32_1 = arith.constant 0 : i32
    return %arg0, %arg1, %c0_i32, %c0_i32_0 : i32, i32, i32, i32
  }
  func.func @transform_1(%arg0: i32, %arg1: i32) -> (i32, i32, i32, i32) {
    %c4_i32 = arith.constant 4 : i32
    %0 = arith.muli %arg1, %c4_i32 : i32
    %c1_i32 = arith.constant 1 : i32
    %1 = arith.subi %0, %c1_i32 : i32
    %c0_i32 = arith.constant 0 : i32
    %2 = arith.maxsi %1, %c0_i32 : i32
    %c0_i32_0 = arith.constant 0 : i32
    %c0_i32_1 = arith.constant 0 : i32
    %c0_i32_2 = arith.constant 0 : i32
    return %arg0, %2, %c0_i32_0, %c0_i32_1 : i32, i32, i32, i32
  }
  func.func @transform_2(%arg0: i32, %arg1: i32) -> (i32, i32, i32, i32) {
    %c4_i32 = arith.constant 4 : i32
    %0 = arith.muli %arg1, %c4_i32 : i32
    %c4_i32_0 = arith.constant 4 : i32
    %1 = arith.addi %0, %c4_i32_0 : i32
    %c7_i32 = arith.constant 7 : i32
    %2 = arith.minsi %1, %c7_i32 : i32
    %c0_i32 = arith.constant 0 : i32
    %c0_i32_1 = arith.constant 0 : i32
    %c0_i32_2 = arith.constant 0 : i32
    return %arg0, %2, %c0_i32, %c0_i32_1 : i32, i32, i32, i32
  }
  func.func @transform_3(%arg0: i32, %arg1: i32) -> (i32, i32, i32) {
    %c0_i32 = arith.constant 0 : i32
    %c0_i32_0 = arith.constant 0 : i32
    %c0_i32_1 = arith.constant 0 : i32
    return %arg0, %c0_i32, %c0_i32_0 : i32, i32, i32
  }
  func.func @transform_4(%arg0: i32, %arg1: i32) -> (i32, i32, i32) {
    %c0_i32 = arith.constant 0 : i32
    %c0_i32_0 = arith.constant 0 : i32
    %c0_i32_1 = arith.constant 0 : i32
    return %arg0, %c0_i32, %c0_i32_0 : i32, i32, i32
  }
  func.func @transform_5(%arg0: i32, %arg1: i32) -> (i32, i32, i32) {
    %c0_i32 = arith.constant 0 : i32
    %c0_i32_0 = arith.constant 0 : i32
    %c0_i32_1 = arith.constant 0 : i32
    %c0_i32_2 = arith.constant 0 : i32
    return %c0_i32, %c0_i32_0, %c0_i32_1 : i32, i32, i32
  }
  func.func @transform_6(%arg0: i32, %arg1: i32) -> (i32, i32) {
    %c0_i32 = arith.constant 0 : i32
    %c0_i32_0 = arith.constant 0 : i32
    %c0_i32_1 = arith.constant 0 : i32
    return %c0_i32, %c0_i32_0 : i32, i32
  }
  func.func @transform_7(%arg0: i32, %arg1: i32) -> (i32, i32, i32, i32) {
    %c0_i32 = arith.constant 0 : i32
    %c0_i32_0 = arith.constant 0 : i32
    %c0_i32_1 = arith.constant 0 : i32
    return %arg0, %arg1, %c0_i32, %c0_i32_0 : i32, i32, i32, i32
  }
  func.func @transform_8(%arg0: i32, %arg1: i32) -> (i32, i32, i32) {
    %c0_i32 = arith.constant 0 : i32
    %c0_i32_0 = arith.constant 0 : i32
    %c0_i32_1 = arith.constant 0 : i32
    return %arg0, %c0_i32, %c0_i32_0 : i32, i32, i32
  }
  func.func @transform_9(%arg0: i32, %arg1: i32) -> (i32, i32, i32) {
    %c0_i32 = arith.constant 0 : i32
    %c0_i32_0 = arith.constant 0 : i32
    %c0_i32_1 = arith.constant 0 : i32
    return %arg0, %c0_i32, %c0_i32_0 : i32, i32, i32
  }
}

module attributes {stable_mosaic.version = 11 : i64} {
  func.func @_fused_conv3x3_kernel(%arg0: i32, %arg1: i32, %arg2: memref<1x4x8x32xf32, #tpu.memory_space<vmem>>, %arg3: memref<1x1x8x32xf32, #tpu.memory_space<vmem>>, %arg4: memref<1x1x8x32xf32, #tpu.memory_space<vmem>>, %arg5: memref<1x1x32xf32, #tpu.memory_space<vmem>>, %arg6: memref<1x1x32xf32, #tpu.memory_space<vmem>>, %arg7: memref<3x96x32xf32, #tpu.memory_space<vmem>>, %arg8: memref<1x32xf32, #tpu.memory_space<vmem>>, %arg9: memref<1x4x8x64xf32, #tpu.memory_space<vmem>>, %arg10: memref<64x32xf32, #tpu.memory_space<vmem>>, %arg11: memref<1x32xf32, #tpu.memory_space<vmem>>, %arg12: memref<1x4x8x32xf32, #tpu.memory_space<vmem>>, %arg13: memref<6x8x32xf32, #tpu.memory_space<vmem>>) attributes {dimension_semantics = [#tpu.dimension_semantics<parallel>, #tpu.dimension_semantics<parallel>], iteration_bounds = array<i64: 2, 2>, scalar_prefetch = 0 : i64, scratch_operands = 1 : i64, tpu.core_type = #tpu.core_type<tc>, window_params = [{transform_indices = @transform_0, window_bounds = array<i64: 1, 4, 8, 32>}, {transform_indices = @transform_1, window_bounds = array<i64: 1, 1, 8, 32>}, {transform_indices = @transform_2, window_bounds = array<i64: 1, 1, 8, 32>}, {transform_indices = @transform_3, window_bounds = array<i64: 1, 1, 32>}, {transform_indices = @transform_4, window_bounds = array<i64: 1, 1, 32>}, {pipeline_mode = #tpu.pipeline_mode<synchronous>, transform_indices = @transform_5, window_bounds = array<i64: 3, 96, 32>}, {pipeline_mode = #tpu.pipeline_mode<synchronous>, transform_indices = @transform_6, window_bounds = array<i64: 1, 32>}, {transform_indices = @transform_7, window_bounds = array<i64: 1, 4, 8, 64>}, {pipeline_mode = #tpu.pipeline_mode<synchronous>, transform_indices = @transform_8, window_bounds = array<i64: 64, 32>}, {pipeline_mode = #tpu.pipeline_mode<synchronous>, transform_indices = @transform_9, window_bounds = array<i64: 1, 32>}, {transform_indices = @transform_10, window_bounds = array<i64: 1, 4, 8, 32>}]} {
    %c0 = arith.constant 0 : index
    %c0_0 = arith.constant 0 : index
    %c0_1 = arith.constant 0 : index
    %0 = vector.load %arg5[%c0, %c0_0, %c0_1] : memref<1x1x32xf32, #tpu.memory_space<vmem>>, vector<1x1x32xf32>
    %1 = vector.shape_cast %0 : vector<1x1x32xf32> to vector<32xf32>
    %c0_2 = arith.constant 0 : index
    %c0_3 = arith.constant 0 : index
    %c0_4 = arith.constant 0 : index
    %2 = vector.load %arg6[%c0_2, %c0_3, %c0_4] : memref<1x1x32xf32, #tpu.memory_space<vmem>>, vector<1x1x32xf32>
    %3 = vector.shape_cast %2 : vector<1x1x32xf32> to vector<32xf32>
    %cst = arith.constant 0.000000e+00 : f32
    %4 = vector.broadcast %cst : f32 to vector<8x32xf32>
    %c0_5 = arith.constant 0 : index
    %c0_6 = arith.constant 0 : index
    %c0_7 = arith.constant 0 : index
    %c0_8 = arith.constant 0 : index
    %5 = vector.load %arg2[%c0_5, %c0_6, %c0_7, %c0_8] : memref<1x4x8x32xf32, #tpu.memory_space<vmem>>, vector<1x4x8x32xf32>
    %6 = vector.shape_cast %5 : vector<1x4x8x32xf32> to vector<4x8x32xf32>
    %7 = vector.shape_cast %1 : vector<32xf32> to vector<1x1x32xf32>
    %8 = vector.broadcast %7 : vector<1x1x32xf32> to vector<4x8x32xf32>
    %9 = arith.mulf %6, %8 : vector<4x8x32xf32>
    %10 = vector.shape_cast %3 : vector<32xf32> to vector<1x1x32xf32>
    %11 = vector.broadcast %10 : vector<1x1x32xf32> to vector<4x8x32xf32>
    %12 = arith.addf %9, %11 : vector<4x8x32xf32>
    %13 = arith.negf %12 : vector<4x8x32xf32>
    %14 = math.exp %13 : vector<4x8x32xf32>
    %cst_9 = arith.constant 1.000000e+00 : f32
    %15 = vector.broadcast %cst_9 : f32 to vector<4x8x32xf32>
    %16 = arith.addf %15, %14 : vector<4x8x32xf32>
    %17 = arith.divf %15, %16 : vector<4x8x32xf32>
    %18 = arith.mulf %12, %17 : vector<4x8x32xf32>
    %c1 = arith.constant 1 : index
    %c0_10 = arith.constant 0 : index
    %c0_11 = arith.constant 0 : index
    %19 = vector.load %arg13[%c1, %c0_10, %c0_11] : memref<6x8x32xf32, #tpu.memory_space<vmem>>, vector<4x8x32xf32>
    tpu.vector_store %arg13[%c1, %c0_10, %c0_11], %18 {strides = array<i32>} : memref<6x8x32xf32, #tpu.memory_space<vmem>>, vector<4x8x32xf32>,
    %c0_i32 = arith.constant 0 : i32
    %20 = arith.cmpi sgt, %arg1, %c0_i32 : i32
    %c0_12 = arith.constant 0 : index
    %c0_13 = arith.constant 0 : index
    %c0_14 = arith.constant 0 : index
    %c0_15 = arith.constant 0 : index
    %21 = vector.load %arg3[%c0_12, %c0_13, %c0_14, %c0_15] : memref<1x1x8x32xf32, #tpu.memory_space<vmem>>, vector<1x1x8x32xf32>
    %22 = vector.shape_cast %21 : vector<1x1x8x32xf32> to vector<8x32xf32>
    %23 = vector.shape_cast %1 : vector<32xf32> to vector<1x32xf32>
    %24 = vector.broadcast %23 : vector<1x32xf32> to vector<8x32xf32>
    %25 = arith.mulf %22, %24 : vector<8x32xf32>
    %26 = vector.shape_cast %3 : vector<32xf32> to vector<1x32xf32>
    %27 = vector.broadcast %26 : vector<1x32xf32> to vector<8x32xf32>
    %28 = arith.addf %25, %27 : vector<8x32xf32>
    %29 = arith.negf %28 : vector<8x32xf32>
    %30 = math.exp %29 : vector<8x32xf32>
    %cst_16 = arith.constant 1.000000e+00 : f32
    %31 = vector.broadcast %cst_16 : f32 to vector<8x32xf32>
    %32 = arith.addf %31, %30 : vector<8x32xf32>
    %33 = arith.divf %31, %32 : vector<8x32xf32>
    %34 = arith.mulf %28, %33 : vector<8x32xf32>
    %35 = arith.select %20, %34, %4 : vector<8x32xf32>
    %c0_17 = arith.constant 0 : index
    %c0_18 = arith.constant 0 : index
    %c0_19 = arith.constant 0 : index
    %36 = vector.load %arg13[%c0_17, %c0_18, %c0_19] : memref<6x8x32xf32, #tpu.memory_space<vmem>>, vector<1x8x32xf32>
    %37 = vector.shape_cast %36 : vector<1x8x32xf32> to vector<8x32xf32>
    %38 = vector.shape_cast %35 : vector<8x32xf32> to vector<1x8x32xf32>
    tpu.vector_store %arg13[%c0_17, %c0_18, %c0_19], %38 {strides = array<i32>} : memref<6x8x32xf32, #tpu.memory_space<vmem>>, vector<1x8x32xf32>,
    %c1_i32 = arith.constant 1 : i32
    %39 = arith.cmpi slt, %arg1, %c1_i32 : i32
    %c0_20 = arith.constant 0 : index
    %c0_21 = arith.constant 0 : index
    %c0_22 = arith.constant 0 : index
    %c0_23 = arith.constant 0 : index
    %40 = vector.load %arg4[%c0_20, %c0_21, %c0_22, %c0_23] : memref<1x1x8x32xf32, #tpu.memory_space<vmem>>, vector<1x1x8x32xf32>
    %41 = vector.shape_cast %40 : vector<1x1x8x32xf32> to vector<8x32xf32>
    %42 = vector.shape_cast %1 : vector<32xf32> to vector<1x32xf32>
    %43 = vector.broadcast %42 : vector<1x32xf32> to vector<8x32xf32>
    %44 = arith.mulf %41, %43 : vector<8x32xf32>
    %45 = vector.shape_cast %3 : vector<32xf32> to vector<1x32xf32>
    %46 = vector.broadcast %45 : vector<1x32xf32> to vector<8x32xf32>
    %47 = arith.addf %44, %46 : vector<8x32xf32>
    %48 = arith.negf %47 : vector<8x32xf32>
    %49 = math.exp %48 : vector<8x32xf32>
    %cst_24 = arith.constant 1.000000e+00 : f32
    %50 = vector.broadcast %cst_24 : f32 to vector<8x32xf32>
    %51 = arith.addf %50, %49 : vector<8x32xf32>
    %52 = arith.divf %50, %51 : vector<8x32xf32>
    %53 = arith.mulf %47, %52 : vector<8x32xf32>
    %54 = arith.select %39, %53, %4 : vector<8x32xf32>
    %c5 = arith.constant 5 : index
    %c0_25 = arith.constant 0 : index
    %c0_26 = arith.constant 0 : index
    %55 = vector.load %arg13[%c5, %c0_25, %c0_26] : memref<6x8x32xf32, #tpu.memory_space<vmem>>, vector<1x8x32xf32>
    %56 = vector.shape_cast %55 : vector<1x8x32xf32> to vector<8x32xf32>
    %57 = vector.shape_cast %54 : vector<8x32xf32> to vector<1x8x32xf32>
    tpu.vector_store %arg13[%c5, %c0_25, %c0_26], %57 {strides = array<i32>} : memref<6x8x32xf32, #tpu.memory_space<vmem>>, vector<1x8x32xf32>,
    %c0_27 = arith.constant 0 : index
    %c0_28 = arith.constant 0 : index
    %c0_29 = arith.constant 0 : index
    %58 = vector.load %arg13[%c0_27, %c0_28, %c0_29] : memref<6x8x32xf32, #tpu.memory_space<vmem>>, vector<6x8x32xf32>
    %cst_30 = arith.constant 0.000000e+00 : f32
    %59 = vector.broadcast %cst_30 : f32 to vector<6x1x32xf32>
    %60 = tpu.concatenate %59, %58, %59 in 1 : vector<6x1x32xf32>, vector<6x8x32xf32>, vector<6x1x32xf32> -> vector<6x10x32xf32>
    %61 = vector.extract_strided_slice %60 {offsets = [0, 0, 0], sizes = [6, 8, 32], strides = [1, 1, 1]} : vector<6x10x32xf32> to vector<6x8x32xf32>
    %62 = vector.extract_strided_slice %60 {offsets = [0, 2, 0], sizes = [6, 8, 32], strides = [1, 1, 1]} : vector<6x10x32xf32> to vector<6x8x32xf32>
    %c0_31 = arith.constant 0 : index
    %c0_32 = arith.constant 0 : index
    %63 = vector.load %arg8[%c0_31, %c0_32] : memref<1x32xf32, #tpu.memory_space<vmem>>, vector<1x32xf32>
    %64 = tpu.concatenate %61, %58, %62 in 2 : vector<6x8x32xf32>, vector<6x8x32xf32>, vector<6x8x32xf32> -> vector<6x8x96xf32>
    %cst_33 = arith.constant 0.000000e+00 : f32
    %65 = vector.broadcast %cst_33 : f32 to vector<32x32xf32>
    %66 = vector.extract_strided_slice %64 {offsets = [0, 0, 0], sizes = [4, 8, 96], strides = [1, 1, 1]} : vector<6x8x96xf32> to vector<4x8x96xf32>
    %67 = vector.shape_cast %66 : vector<4x8x96xf32> to vector<32x96xf32>
    %c0_34 = arith.constant 0 : index
    %c0_35 = arith.constant 0 : index
    %c0_36 = arith.constant 0 : index
    %68 = vector.load %arg7[%c0_34, %c0_35, %c0_36] : memref<3x96x32xf32, #tpu.memory_space<vmem>>, vector<1x96x32xf32>
    %69 = vector.shape_cast %68 : vector<1x96x32xf32> to vector<96x32xf32>
    %cst_37 = arith.constant dense<0.000000e+00> : vector<32x32xf32>
    %70 = tpu.matmul %67, %69, %cst_37 {dimension_numbers = #tpu.dot_dimension_numbers<[1], [0], [0], [1], [0, 0, 1, 1], [], []>} : vector<32x96xf32>, vector<96x32xf32>, vector<32x32xf32> -> vector<32x32xf32>
    %71 = arith.addf %65, %70 : vector<32x32xf32>
    %72 = vector.extract_strided_slice %64 {offsets = [1, 0, 0], sizes = [4, 8, 96], strides = [1, 1, 1]} : vector<6x8x96xf32> to vector<4x8x96xf32>
    %73 = vector.shape_cast %72 : vector<4x8x96xf32> to vector<32x96xf32>
    %c1_38 = arith.constant 1 : index
    %c0_39 = arith.constant 0 : index
    %c0_40 = arith.constant 0 : index
    %74 = vector.load %arg7[%c1_38, %c0_39, %c0_40] : memref<3x96x32xf32, #tpu.memory_space<vmem>>, vector<1x96x32xf32>
    %75 = vector.shape_cast %74 : vector<1x96x32xf32> to vector<96x32xf32>
    %cst_41 = arith.constant dense<0.000000e+00> : vector<32x32xf32>
    %76 = tpu.matmul %73, %75, %cst_41 {dimension_numbers = #tpu.dot_dimension_numbers<[1], [0], [0], [1], [0, 0, 1, 1], [], []>} : vector<32x96xf32>, vector<96x32xf32>, vector<32x32xf32> -> vector<32x32xf32>
    %77 = arith.addf %71, %76 : vector<32x32xf32>
    %78 = vector.extract_strided_slice %64 {offsets = [2, 0, 0], sizes = [4, 8, 96], strides = [1, 1, 1]} : vector<6x8x96xf32> to vector<4x8x96xf32>
    %79 = vector.shape_cast %78 : vector<4x8x96xf32> to vector<32x96xf32>
    %c2 = arith.constant 2 : index
    %c0_42 = arith.constant 0 : index
    %c0_43 = arith.constant 0 : index
    %80 = vector.load %arg7[%c2, %c0_42, %c0_43] : memref<3x96x32xf32, #tpu.memory_space<vmem>>, vector<1x96x32xf32>
    %81 = vector.shape_cast %80 : vector<1x96x32xf32> to vector<96x32xf32>
    %cst_44 = arith.constant dense<0.000000e+00> : vector<32x32xf32>
    %82 = tpu.matmul %79, %81, %cst_44 {dimension_numbers = #tpu.dot_dimension_numbers<[1], [0], [0], [1], [0, 0, 1, 1], [], []>} : vector<32x96xf32>, vector<96x32xf32>, vector<32x32xf32> -> vector<32x32xf32>
    %83 = arith.addf %77, %82 : vector<32x32xf32>
    %84 = vector.broadcast %63 : vector<1x32xf32> to vector<32x32xf32>
    %85 = arith.addf %83, %84 : vector<32x32xf32>
    %c0_45 = arith.constant 0 : index
    %c0_46 = arith.constant 0 : index
    %c0_47 = arith.constant 0 : index
    %c0_48 = arith.constant 0 : index
    %86 = vector.load %arg9[%c0_45, %c0_46, %c0_47, %c0_48] : memref<1x4x8x64xf32, #tpu.memory_space<vmem>>, vector<1x4x8x64xf32>
    %87 = vector.shape_cast %86 : vector<1x4x8x64xf32> to vector<4x8x64xf32>
    %88 = vector.shape_cast %87 : vector<4x8x64xf32> to vector<32x64xf32>
    %c0_49 = arith.constant 0 : index
    %c0_50 = arith.constant 0 : index
    %89 = vector.load %arg10[%c0_49, %c0_50] : memref<64x32xf32, #tpu.memory_space<vmem>>, vector<64x32xf32>
    %cst_51 = arith.constant dense<0.000000e+00> : vector<32x32xf32>
    %90 = tpu.matmul %88, %89, %cst_51 {dimension_numbers = #tpu.dot_dimension_numbers<[1], [0], [0], [1], [0, 0, 1, 1], [], []>} : vector<32x64xf32>, vector<64x32xf32>, vector<32x32xf32> -> vector<32x32xf32>
    %c0_52 = arith.constant 0 : index
    %c0_53 = arith.constant 0 : index
    %91 = vector.load %arg11[%c0_52, %c0_53] : memref<1x32xf32, #tpu.memory_space<vmem>>, vector<1x32xf32>
    %92 = vector.broadcast %91 : vector<1x32xf32> to vector<32x32xf32>
    %93 = arith.addf %90, %92 : vector<32x32xf32>
    %94 = arith.addf %85, %93 : vector<32x32xf32>
    %cst_54 = arith.constant 1.000000e+00 : f32
    %95 = vector.broadcast %cst_54 : f32 to vector<32x32xf32>
    %96 = arith.mulf %94, %95 : vector<32x32xf32>
    %97 = vector.shape_cast %96 : vector<32x32xf32> to vector<4x8x32xf32>
    %c0_55 = arith.constant 0 : index
    %c0_56 = arith.constant 0 : index
    %c0_57 = arith.constant 0 : index
    %c0_58 = arith.constant 0 : index
    %98 = vector.load %arg12[%c0_55, %c0_56, %c0_57, %c0_58] : memref<1x4x8x32xf32, #tpu.memory_space<vmem>>, vector<1x4x8x32xf32>
    %99 = vector.shape_cast %98 : vector<1x4x8x32xf32> to vector<4x8x32xf32>
    %100 = vector.shape_cast %97 : vector<4x8x32xf32> to vector<1x4x8x32xf32>
    tpu.vector_store %arg12[%c0_55, %c0_56, %c0_57, %c0_58], %100 {strides = array<i32>} : memref<1x4x8x32xf32, #tpu.memory_space<vmem>>, vector<1x4x8x32xf32>,
    return
  }
  func.func @transform_0(%arg0: i32, %arg1: i32) -> (i32, i32, i32, i32) {
    %c0_i32 = arith.constant 0 : i32
    %c0_i32_0 = arith.constant 0 : i32
    %c0_i32_1 = arith.constant 0 : i32
    return %arg0, %arg1, %c0_i32, %c0_i32_0 : i32, i32, i32, i32
  }
  func.func @transform_1(%arg0: i32, %arg1: i32) -> (i32, i32, i32, i32) {
    %c4_i32 = arith.constant 4 : i32
    %0 = arith.muli %arg1, %c4_i32 : i32
    %c1_i32 = arith.constant 1 : i32
    %1 = arith.subi %0, %c1_i32 : i32
    %c0_i32 = arith.constant 0 : i32
    %2 = arith.maxsi %1, %c0_i32 : i32
    %c0_i32_0 = arith.constant 0 : i32
    %c0_i32_1 = arith.constant 0 : i32
    %c0_i32_2 = arith.constant 0 : i32
    return %arg0, %2, %c0_i32_0, %c0_i32_1 : i32, i32, i32, i32
  }
  func.func @transform_2(%arg0: i32, %arg1: i32) -> (i32, i32, i32, i32) {
    %c4_i32 = arith.constant 4 : i32
    %0 = arith.muli %arg1, %c4_i32 : i32
    %c4_i32_0 = arith.constant 4 : i32
    %1 = arith.addi %0, %c4_i32_0 : i32
    %c7_i32 = arith.constant 7 : i32
    %2 = arith.minsi %1, %c7_i32 : i32
    %c0_i32 = arith.constant 0 : i32
    %c0_i32_1 = arith.constant 0 : i32
    %c0_i32_2 = arith.constant 0 : i32
    return %arg0, %2, %c0_i32, %c0_i32_1 : i32, i32, i32, i32
  }
  func.func @transform_3(%arg0: i32, %arg1: i32) -> (i32, i32, i32) {
    %c0_i32 = arith.constant 0 : i32
    %c0_i32_0 = arith.constant 0 : i32
    %c0_i32_1 = arith.constant 0 : i32
    return %arg0, %c0_i32, %c0_i32_0 : i32, i32, i32
  }
  func.func @transform_4(%arg0: i32, %arg1: i32) -> (i32, i32, i32) {
    %c0_i32 = arith.constant 0 : i32
    %c0_i32_0 = arith.constant 0 : i32
    %c0_i32_1 = arith.constant 0 : i32
    return %arg0, %c0_i32, %c0_i32_0 : i32, i32, i32
  }
  func.func @transform_5(%arg0: i32, %arg1: i32) -> (i32, i32, i32) {
    %c0_i32 = arith.constant 0 : i32
    %c0_i32_0 = arith.constant 0 : i32
    %c0_i32_1 = arith.constant 0 : i32
    %c0_i32_2 = arith.constant 0 : i32
    return %c0_i32, %c0_i32_0, %c0_i32_1 : i32, i32, i32
  }
  func.func @transform_6(%arg0: i32, %arg1: i32) -> (i32, i32) {
    %c0_i32 = arith.constant 0 : i32
    %c0_i32_0 = arith.constant 0 : i32
    %c0_i32_1 = arith.constant 0 : i32
    return %c0_i32, %c0_i32_0 : i32, i32
  }
  func.func @transform_7(%arg0: i32, %arg1: i32) -> (i32, i32, i32, i32) {
    %c0_i32 = arith.constant 0 : i32
    %c0_i32_0 = arith.constant 0 : i32
    %c0_i32_1 = arith.constant 0 : i32
    return %arg0, %arg1, %c0_i32, %c0_i32_0 : i32, i32, i32, i32
  }
  func.func @transform_8(%arg0: i32, %arg1: i32) -> (i32, i32) {
    %c0_i32 = arith.constant 0 : i32
    %c0_i32_0 = arith.constant 0 : i32
    %c0_i32_1 = arith.constant 0 : i32
    return %c0_i32, %c0_i32_0 : i32, i32
  }
  func.func @transform_9(%arg0: i32, %arg1: i32) -> (i32, i32) {
    %c0_i32 = arith.constant 0 : i32
    %c0_i32_0 = arith.constant 0 : i32
    %c0_i32_1 = arith.constant 0 : i32
    return %c0_i32, %c0_i32_0 : i32, i32
  }
  func.func @transform_10(%arg0: i32, %arg1: i32) -> (i32, i32, i32, i32) {
    %c0_i32 = arith.constant 0 : i32
    %c0_i32_0 = arith.constant 0 : i32
    %c0_i32_1 = arith.constant 0 : i32
    return %arg0, %arg1, %c0_i32, %c0_i32_0 : i32, i32, i32, i32
  }
}

module attributes {stable_mosaic.version = 11 : i64} {
  func.func @_fused_conv3x3_kernel(%arg0: i32, %arg1: i32, %arg2: memref<1x4x8x32xf32, #tpu.memory_space<vmem>>, %arg3: memref<1x1x8x32xf32, #tpu.memory_space<vmem>>, %arg4: memref<1x1x8x32xf32, #tpu.memory_space<vmem>>, %arg5: memref<4x2x64x32xf32, #tpu.memory_space<vmem>>, %arg6: memref<1x32xf32, #tpu.memory_space<vmem>>, %arg7: memref<1x8x8x64xf32, #tpu.memory_space<vmem>>, %arg8: memref<6x8x32xf32, #tpu.memory_space<vmem>>) attributes {dimension_semantics = [#tpu.dimension_semantics<parallel>, #tpu.dimension_semantics<parallel>], iteration_bounds = array<i64: 2, 2>, scalar_prefetch = 0 : i64, scratch_operands = 1 : i64, tpu.core_type = #tpu.core_type<tc>, window_params = [{transform_indices = @transform_0, window_bounds = array<i64: 1, 4, 8, 32>}, {transform_indices = @transform_1, window_bounds = array<i64: 1, 1, 8, 32>}, {transform_indices = @transform_2, window_bounds = array<i64: 1, 1, 8, 32>}, {pipeline_mode = #tpu.pipeline_mode<synchronous>, transform_indices = @transform_3, window_bounds = array<i64: 4, 2, 64, 32>}, {pipeline_mode = #tpu.pipeline_mode<synchronous>, transform_indices = @transform_4, window_bounds = array<i64: 1, 32>}, {transform_indices = @transform_5, window_bounds = array<i64: 1, 8, 8, 64>}]} {
    %cst = arith.constant 0.000000e+00 : f32
    %0 = vector.broadcast %cst : f32 to vector<8x32xf32>
    %c0 = arith.constant 0 : index
    %c0_0 = arith.constant 0 : index
    %c0_1 = arith.constant 0 : index
    %c0_2 = arith.constant 0 : index
    %1 = vector.load %arg2[%c0, %c0_0, %c0_1, %c0_2] : memref<1x4x8x32xf32, #tpu.memory_space<vmem>>, vector<1x4x8x32xf32>
    %2 = vector.shape_cast %1 : vector<1x4x8x32xf32> to vector<4x8x32xf32>
    %c1 = arith.constant 1 : index
    %c0_3 = arith.constant 0 : index
    %c0_4 = arith.constant 0 : index
    %3 = vector.load %arg8[%c1, %c0_3, %c0_4] : memref<6x8x32xf32, #tpu.memory_space<vmem>>, vector<4x8x32xf32>
    tpu.vector_store %arg8[%c1, %c0_3, %c0_4], %2 {strides = array<i32>} : memref<6x8x32xf32, #tpu.memory_space<vmem>>, vector<4x8x32xf32>,
    %c0_i32 = arith.constant 0 : i32
    %4 = arith.cmpi sgt, %arg1, %c0_i32 : i32
    %c0_5 = arith.constant 0 : index
    %c0_6 = arith.constant 0 : index
    %c0_7 = arith.constant 0 : index
    %c0_8 = arith.constant 0 : index
    %5 = vector.load %arg3[%c0_5, %c0_6, %c0_7, %c0_8] : memref<1x1x8x32xf32, #tpu.memory_space<vmem>>, vector<1x1x8x32xf32>
    %6 = vector.shape_cast %5 : vector<1x1x8x32xf32> to vector<8x32xf32>
    %7 = arith.select %4, %6, %0 : vector<8x32xf32>
    %c0_9 = arith.constant 0 : index
    %c0_10 = arith.constant 0 : index
    %c0_11 = arith.constant 0 : index
    %8 = vector.load %arg8[%c0_9, %c0_10, %c0_11] : memref<6x8x32xf32, #tpu.memory_space<vmem>>, vector<1x8x32xf32>
    %9 = vector.shape_cast %8 : vector<1x8x32xf32> to vector<8x32xf32>
    %10 = vector.shape_cast %7 : vector<8x32xf32> to vector<1x8x32xf32>
    tpu.vector_store %arg8[%c0_9, %c0_10, %c0_11], %10 {strides = array<i32>} : memref<6x8x32xf32, #tpu.memory_space<vmem>>, vector<1x8x32xf32>,
    %c1_i32 = arith.constant 1 : i32
    %11 = arith.cmpi slt, %arg1, %c1_i32 : i32
    %c0_12 = arith.constant 0 : index
    %c0_13 = arith.constant 0 : index
    %c0_14 = arith.constant 0 : index
    %c0_15 = arith.constant 0 : index
    %12 = vector.load %arg4[%c0_12, %c0_13, %c0_14, %c0_15] : memref<1x1x8x32xf32, #tpu.memory_space<vmem>>, vector<1x1x8x32xf32>
    %13 = vector.shape_cast %12 : vector<1x1x8x32xf32> to vector<8x32xf32>
    %14 = arith.select %11, %13, %0 : vector<8x32xf32>
    %c5 = arith.constant 5 : index
    %c0_16 = arith.constant 0 : index
    %c0_17 = arith.constant 0 : index
    %15 = vector.load %arg8[%c5, %c0_16, %c0_17] : memref<6x8x32xf32, #tpu.memory_space<vmem>>, vector<1x8x32xf32>
    %16 = vector.shape_cast %15 : vector<1x8x32xf32> to vector<8x32xf32>
    %17 = vector.shape_cast %14 : vector<8x32xf32> to vector<1x8x32xf32>
    tpu.vector_store %arg8[%c5, %c0_16, %c0_17], %17 {strides = array<i32>} : memref<6x8x32xf32, #tpu.memory_space<vmem>>, vector<1x8x32xf32>,
    %c0_18 = arith.constant 0 : index
    %c0_19 = arith.constant 0 : index
    %c0_20 = arith.constant 0 : index
    %18 = vector.load %arg8[%c0_18, %c0_19, %c0_20] : memref<6x8x32xf32, #tpu.memory_space<vmem>>, vector<6x8x32xf32>
    %cst_21 = arith.constant 0.000000e+00 : f32
    %19 = vector.broadcast %cst_21 : f32 to vector<6x1x32xf32>
    %20 = tpu.concatenate %19, %18, %19 in 1 : vector<6x1x32xf32>, vector<6x8x32xf32>, vector<6x1x32xf32> -> vector<6x10x32xf32>
    %21 = vector.extract_strided_slice %20 {offsets = [0, 0, 0], sizes = [6, 8, 32], strides = [1, 1, 1]} : vector<6x10x32xf32> to vector<6x8x32xf32>
    %22 = vector.extract_strided_slice %20 {offsets = [0, 2, 0], sizes = [6, 8, 32], strides = [1, 1, 1]} : vector<6x10x32xf32> to vector<6x8x32xf32>
    %c0_22 = arith.constant 0 : index
    %c0_23 = arith.constant 0 : index
    %23 = vector.load %arg6[%c0_22, %c0_23] : memref<1x32xf32, #tpu.memory_space<vmem>>, vector<1x32xf32>
    %24 = tpu.concatenate %21, %18 in 2 : vector<6x8x32xf32>, vector<6x8x32xf32> -> vector<6x8x64xf32>
    %25 = tpu.concatenate %18, %22 in 2 : vector<6x8x32xf32>, vector<6x8x32xf32> -> vector<6x8x64xf32>
    %cst_24 = arith.constant 0.000000e+00 : f32
    %26 = vector.broadcast %cst_24 : f32 to vector<32x32xf32>
    %27 = vector.extract_strided_slice %24 {offsets = [0, 0, 0], sizes = [4, 8, 64], strides = [1, 1, 1]} : vector<6x8x64xf32> to vector<4x8x64xf32>
    %28 = vector.shape_cast %27 : vector<4x8x64xf32> to vector<32x64xf32>
    %c0_25 = arith.constant 0 : index
    %c0_26 = arith.constant 0 : index
    %c0_27 = arith.constant 0 : index
    %c0_28 = arith.constant 0 : index
    %29 = vector.load %arg5[%c0_25, %c0_26, %c0_27, %c0_28] : memref<4x2x64x32xf32, #tpu.memory_space<vmem>>, vector<1x1x64x32xf32>
    %30 = vector.shape_cast %29 : vector<1x1x64x32xf32> to vector<64x32xf32>
    %cst_29 = arith.constant dense<0.000000e+00> : vector<32x32xf32>
    %31 = tpu.matmul %28, %30, %cst_29 {dimension_numbers = #tpu.dot_dimension_numbers<[1], [0], [0], [1], [0, 0, 1, 1], [], []>} : vector<32x64xf32>, vector<64x32xf32>, vector<32x32xf32> -> vector<32x32xf32>
    %32 = arith.addf %26, %31 : vector<32x32xf32>
    %33 = vector.extract_strided_slice %24 {offsets = [1, 0, 0], sizes = [4, 8, 64], strides = [1, 1, 1]} : vector<6x8x64xf32> to vector<4x8x64xf32>
    %34 = vector.shape_cast %33 : vector<4x8x64xf32> to vector<32x64xf32>
    %c0_30 = arith.constant 0 : index
    %c1_31 = arith.constant 1 : index
    %c0_32 = arith.constant 0 : index
    %c0_33 = arith.constant 0 : index
    %35 = vector.load %arg5[%c0_30, %c1_31, %c0_32, %c0_33] : memref<4x2x64x32xf32, #tpu.memory_space<vmem>>, vector<1x1x64x32xf32>
    %36 = vector.shape_cast %35 : vector<1x1x64x32xf32> to vector<64x32xf32>
    %cst_34 = arith.constant dense<0.000000e+00> : vector<32x32xf32>
    %37 = tpu.matmul %34, %36, %cst_34 {dimension_numbers = #tpu.dot_dimension_numbers<[1], [0], [0], [1], [0, 0, 1, 1], [], []>} : vector<32x64xf32>, vector<64x32xf32>, vector<32x32xf32> -> vector<32x32xf32>
    %38 = arith.addf %32, %37 : vector<32x32xf32>
    %39 = vector.broadcast %23 : vector<1x32xf32> to vector<32x32xf32>
    %40 = arith.addf %38, %39 : vector<32x32xf32>
    %41 = vector.shape_cast %40 : vector<32x32xf32> to vector<4x8x32xf32>
    %cst_35 = arith.constant 0.000000e+00 : f32
    %42 = vector.broadcast %cst_35 : f32 to vector<32x32xf32>
    %43 = vector.extract_strided_slice %25 {offsets = [0, 0, 0], sizes = [4, 8, 64], strides = [1, 1, 1]} : vector<6x8x64xf32> to vector<4x8x64xf32>
    %44 = vector.shape_cast %43 : vector<4x8x64xf32> to vector<32x64xf32>
    %c1_36 = arith.constant 1 : index
    %c0_37 = arith.constant 0 : index
    %c0_38 = arith.constant 0 : index
    %c0_39 = arith.constant 0 : index
    %45 = vector.load %arg5[%c1_36, %c0_37, %c0_38, %c0_39] : memref<4x2x64x32xf32, #tpu.memory_space<vmem>>, vector<1x1x64x32xf32>
    %46 = vector.shape_cast %45 : vector<1x1x64x32xf32> to vector<64x32xf32>
    %cst_40 = arith.constant dense<0.000000e+00> : vector<32x32xf32>
    %47 = tpu.matmul %44, %46, %cst_40 {dimension_numbers = #tpu.dot_dimension_numbers<[1], [0], [0], [1], [0, 0, 1, 1], [], []>} : vector<32x64xf32>, vector<64x32xf32>, vector<32x32xf32> -> vector<32x32xf32>
    %48 = arith.addf %42, %47 : vector<32x32xf32>
    %49 = vector.extract_strided_slice %25 {offsets = [1, 0, 0], sizes = [4, 8, 64], strides = [1, 1, 1]} : vector<6x8x64xf32> to vector<4x8x64xf32>
    %50 = vector.shape_cast %49 : vector<4x8x64xf32> to vector<32x64xf32>
    %c1_41 = arith.constant 1 : index
    %c1_42 = arith.constant 1 : index
    %c0_43 = arith.constant 0 : index
    %c0_44 = arith.constant 0 : index
    %51 = vector.load %arg5[%c1_41, %c1_42, %c0_43, %c0_44] : memref<4x2x64x32xf32, #tpu.memory_space<vmem>>, vector<1x1x64x32xf32>
    %52 = vector.shape_cast %51 : vector<1x1x64x32xf32> to vector<64x32xf32>
    %cst_45 = arith.constant dense<0.000000e+00> : vector<32x32xf32>
    %53 = tpu.matmul %50, %52, %cst_45 {dimension_numbers = #tpu.dot_dimension_numbers<[1], [0], [0], [1], [0, 0, 1, 1], [], []>} : vector<32x64xf32>, vector<64x32xf32>, vector<32x32xf32> -> vector<32x32xf32>
    %54 = arith.addf %48, %53 : vector<32x32xf32>
    %55 = vector.broadcast %23 : vector<1x32xf32> to vector<32x32xf32>
    %56 = arith.addf %54, %55 : vector<32x32xf32>
    %57 = vector.shape_cast %56 : vector<32x32xf32> to vector<4x8x32xf32>
    %58 = tpu.concatenate %41, %57 in 2 : vector<4x8x32xf32>, vector<4x8x32xf32> -> vector<4x8x64xf32>
    %cst_46 = arith.constant 0.000000e+00 : f32
    %59 = vector.broadcast %cst_46 : f32 to vector<32x32xf32>
    %60 = vector.extract_strided_slice %24 {offsets = [1, 0, 0], sizes = [4, 8, 64], strides = [1, 1, 1]} : vector<6x8x64xf32> to vector<4x8x64xf32>
    %61 = vector.shape_cast %60 : vector<4x8x64xf32> to vector<32x64xf32>
    %c2 = arith.constant 2 : index
    %c0_47 = arith.constant 0 : index
    %c0_48 = arith.constant 0 : index
    %c0_49 = arith.constant 0 : index
    %62 = vector.load %arg5[%c2, %c0_47, %c0_48, %c0_49] : memref<4x2x64x32xf32, #tpu.memory_space<vmem>>, vector<1x1x64x32xf32>
    %63 = vector.shape_cast %62 : vector<1x1x64x32xf32> to vector<64x32xf32>
    %cst_50 = arith.constant dense<0.000000e+00> : vector<32x32xf32>
    %64 = tpu.matmul %61, %63, %cst_50 {dimension_numbers = #tpu.dot_dimension_numbers<[1], [0], [0], [1], [0, 0, 1, 1], [], []>} : vector<32x64xf32>, vector<64x32xf32>, vector<32x32xf32> -> vector<32x32xf32>
    %65 = arith.addf %59, %64 : vector<32x32xf32>
    %66 = vector.extract_strided_slice %24 {offsets = [2, 0, 0], sizes = [4, 8, 64], strides = [1, 1, 1]} : vector<6x8x64xf32> to vector<4x8x64xf32>
    %67 = vector.shape_cast %66 : vector<4x8x64xf32> to vector<32x64xf32>
    %c2_51 = arith.constant 2 : index
    %c1_52 = arith.constant 1 : index
    %c0_53 = arith.constant 0 : index
    %c0_54 = arith.constant 0 : index
    %68 = vector.load %arg5[%c2_51, %c1_52, %c0_53, %c0_54] : memref<4x2x64x32xf32, #tpu.memory_space<vmem>>, vector<1x1x64x32xf32>
    %69 = vector.shape_cast %68 : vector<1x1x64x32xf32> to vector<64x32xf32>
    %cst_55 = arith.constant dense<0.000000e+00> : vector<32x32xf32>
    %70 = tpu.matmul %67, %69, %cst_55 {dimension_numbers = #tpu.dot_dimension_numbers<[1], [0], [0], [1], [0, 0, 1, 1], [], []>} : vector<32x64xf32>, vector<64x32xf32>, vector<32x32xf32> -> vector<32x32xf32>
    %71 = arith.addf %65, %70 : vector<32x32xf32>
    %72 = vector.broadcast %23 : vector<1x32xf32> to vector<32x32xf32>
    %73 = arith.addf %71, %72 : vector<32x32xf32>
    %74 = vector.shape_cast %73 : vector<32x32xf32> to vector<4x8x32xf32>
    %cst_56 = arith.constant 0.000000e+00 : f32
    %75 = vector.broadcast %cst_56 : f32 to vector<32x32xf32>
    %76 = vector.extract_strided_slice %25 {offsets = [1, 0, 0], sizes = [4, 8, 64], strides = [1, 1, 1]} : vector<6x8x64xf32> to vector<4x8x64xf32>
    %77 = vector.shape_cast %76 : vector<4x8x64xf32> to vector<32x64xf32>
    %c3 = arith.constant 3 : index
    %c0_57 = arith.constant 0 : index
    %c0_58 = arith.constant 0 : index
    %c0_59 = arith.constant 0 : index
    %78 = vector.load %arg5[%c3, %c0_57, %c0_58, %c0_59] : memref<4x2x64x32xf32, #tpu.memory_space<vmem>>, vector<1x1x64x32xf32>
    %79 = vector.shape_cast %78 : vector<1x1x64x32xf32> to vector<64x32xf32>
    %cst_60 = arith.constant dense<0.000000e+00> : vector<32x32xf32>
    %80 = tpu.matmul %77, %79, %cst_60 {dimension_numbers = #tpu.dot_dimension_numbers<[1], [0], [0], [1], [0, 0, 1, 1], [], []>} : vector<32x64xf32>, vector<64x32xf32>, vector<32x32xf32> -> vector<32x32xf32>
    %81 = arith.addf %75, %80 : vector<32x32xf32>
    %82 = vector.extract_strided_slice %25 {offsets = [2, 0, 0], sizes = [4, 8, 64], strides = [1, 1, 1]} : vector<6x8x64xf32> to vector<4x8x64xf32>
    %83 = vector.shape_cast %82 : vector<4x8x64xf32> to vector<32x64xf32>
    %c3_61 = arith.constant 3 : index
    %c1_62 = arith.constant 1 : index
    %c0_63 = arith.constant 0 : index
    %c0_64 = arith.constant 0 : index
    %84 = vector.load %arg5[%c3_61, %c1_62, %c0_63, %c0_64] : memref<4x2x64x32xf32, #tpu.memory_space<vmem>>, vector<1x1x64x32xf32>
    %85 = vector.shape_cast %84 : vector<1x1x64x32xf32> to vector<64x32xf32>
    %cst_65 = arith.constant dense<0.000000e+00> : vector<32x32xf32>
    %86 = tpu.matmul %83, %85, %cst_65 {dimension_numbers = #tpu.dot_dimension_numbers<[1], [0], [0], [1], [0, 0, 1, 1], [], []>} : vector<32x64xf32>, vector<64x32xf32>, vector<32x32xf32> -> vector<32x32xf32>
    %87 = arith.addf %81, %86 : vector<32x32xf32>
    %88 = vector.broadcast %23 : vector<1x32xf32> to vector<32x32xf32>
    %89 = arith.addf %87, %88 : vector<32x32xf32>
    %90 = vector.shape_cast %89 : vector<32x32xf32> to vector<4x8x32xf32>
    %91 = tpu.concatenate %74, %90 in 2 : vector<4x8x32xf32>, vector<4x8x32xf32> -> vector<4x8x64xf32>
    %92 = vector.shape_cast %58 : vector<4x8x64xf32> to vector<4x1x8x64xf32>
    %93 = vector.shape_cast %91 : vector<4x8x64xf32> to vector<4x1x8x64xf32>
    %94 = tpu.concatenate %92, %93 in 1 : vector<4x1x8x64xf32>, vector<4x1x8x64xf32> -> vector<4x2x8x64xf32>
    %95 = vector.shape_cast %94 : vector<4x2x8x64xf32> to vector<8x8x64xf32>
    %c0_66 = arith.constant 0 : index
    %c0_67 = arith.constant 0 : index
    %c0_68 = arith.constant 0 : index
    %c0_69 = arith.constant 0 : index
    %96 = vector.load %arg7[%c0_66, %c0_67, %c0_68, %c0_69] : memref<1x8x8x64xf32, #tpu.memory_space<vmem>>, vector<1x8x8x64xf32>
    %97 = vector.shape_cast %96 : vector<1x8x8x64xf32> to vector<8x8x64xf32>
    %98 = vector.shape_cast %95 : vector<8x8x64xf32> to vector<1x8x8x64xf32>
    tpu.vector_store %arg7[%c0_66, %c0_67, %c0_68, %c0_69], %98 {strides = array<i32>} : memref<1x8x8x64xf32, #tpu.memory_space<vmem>>, vector<1x8x8x64xf32>,
    return
  }
  func.func @transform_0(%arg0: i32, %arg1: i32) -> (i32, i32, i32, i32) {
    %c0_i32 = arith.constant 0 : i32
    %c0_i32_0 = arith.constant 0 : i32
    %c0_i32_1 = arith.constant 0 : i32
    return %arg0, %arg1, %c0_i32, %c0_i32_0 : i32, i32, i32, i32
  }
  func.func @transform_1(%arg0: i32, %arg1: i32) -> (i32, i32, i32, i32) {
    %c4_i32 = arith.constant 4 : i32
    %0 = arith.muli %arg1, %c4_i32 : i32
    %c1_i32 = arith.constant 1 : i32
    %1 = arith.subi %0, %c1_i32 : i32
    %c0_i32 = arith.constant 0 : i32
    %2 = arith.maxsi %1, %c0_i32 : i32
    %c0_i32_0 = arith.constant 0 : i32
    %c0_i32_1 = arith.constant 0 : i32
    %c0_i32_2 = arith.constant 0 : i32
    return %arg0, %2, %c0_i32_0, %c0_i32_1 : i32, i32, i32, i32
  }
  func.func @transform_2(%arg0: i32, %arg1: i32) -> (i32, i32, i32, i32) {
    %c4_i32 = arith.constant 4 : i32
    %0 = arith.muli %arg1, %c4_i32 : i32
    %c4_i32_0 = arith.constant 4 : i32
    %1 = arith.addi %0, %c4_i32_0 : i32
    %c7_i32 = arith.constant 7 : i32
    %2 = arith.minsi %1, %c7_i32 : i32
    %c0_i32 = arith.constant 0 : i32
    %c0_i32_1 = arith.constant 0 : i32
    %c0_i32_2 = arith.constant 0 : i32
    return %arg0, %2, %c0_i32, %c0_i32_1 : i32, i32, i32, i32
  }
  func.func @transform_3(%arg0: i32, %arg1: i32) -> (i32, i32, i32, i32) {
    %c0_i32 = arith.constant 0 : i32
    %c0_i32_0 = arith.constant 0 : i32
    %c0_i32_1 = arith.constant 0 : i32
    %c0_i32_2 = arith.constant 0 : i32
    %c0_i32_3 = arith.constant 0 : i32
    return %c0_i32, %c0_i32_0, %c0_i32_1, %c0_i32_2 : i32, i32, i32, i32
  }
  func.func @transform_4(%arg0: i32, %arg1: i32) -> (i32, i32) {
    %c0_i32 = arith.constant 0 : i32
    %c0_i32_0 = arith.constant 0 : i32
    %c0_i32_1 = arith.constant 0 : i32
    return %c0_i32, %c0_i32_0 : i32, i32
  }
  func.func @transform_5(%arg0: i32, %arg1: i32) -> (i32, i32, i32, i32) {
    %c0_i32 = arith.constant 0 : i32
    %c0_i32_0 = arith.constant 0 : i32
    %c0_i32_1 = arith.constant 0 : i32
    return %arg0, %arg1, %c0_i32, %c0_i32_0 : i32, i32, i32, i32
  }
}

</mosaic_0001>

<llo_original>
// kernel: pare_up_decoder_block_2d.4
$region0: #{pare_up_decoder_block_2d.4}
  #allocation0 [shape = 'u32[]', space=smem, size = 0x4, offset = 0x4, fixed_abs, tag = 'smem constant byte address 0x4 - core index']
  #allocation1 [shape = 'u32[144,128]{1,0:T(1,128)}', space=vmem, size = 0x12000, scoped, tag = 'internal scratch']
  %s0 = inlined_call_operand.hbm [shape: f32[2,8,8,64], index: 0, kind: input, shape index: {}]
  %s1 = inlined_call_operand.vmem [shape: f32[2,1,64], index: 1, kind: output, shape index: {0}]
  %s2 = inlined_call_operand.vmem [shape: f32[2,1,64], index: 2, kind: output, shape index: {1}]
  %3 = xla_tuple %s1, %s2
  %s4 = sld [smem:[#allocation0]]
  $region53: #{pare_up_decoder_block_2d.4} parent=0
    _
  %s6 = ssub.s32 1, %s4
  %s7 = scalar_select 0, %s6, %s4
  $region1: #{pare_up_decoder_block_2d.4} parent=0
    #allocation2 [shape = 'u8[32768]{0}', space=vmem, size = 0x8000, scoped, tag = 'input window, operand 0']
    #allocation3 [shape = 's32[2]{0}', space=sflag, size = 0x8, scoped, tag = 'scoped memory for pare_up_decoder_block_2d.4']
    %8 = vsyncpa [#allocation3], 0
    %s9 = scalar_lea.sflag [#allocation3], 1
    %10 = vsyncpa %s9, 0
    loop: start=0, step=1, limit=6
    $region2: #{pare_up_decoder_block_2d.4} parent=1 // loop_pre_header
      _
    $region3: #{pare_up_decoder_block_2d.4} parent=1 // loop_header
      %s12 = sphi 0, %s16
      %p13 = scmp.ge.s32.totalorder %s12, 6
      %s19 = sphi 0, %s31
      %s20 = sphi 0, %s27
      %s21 = sphi 0, %s19
      %s22 = sphi 0, %s20
      %s23 = sphi 0, %s21
      %s24 = sphi 0, %s22
      %s36 = sphi 0, %s38
      %s39 = sphi 0, %s36
      %s40 = sphi 0, %s39
      %s56 = sphi 0, %s40
      %s62 = sphi 0, %s64
      %s65 = sphi 0, %s62
      %s66 = sphi 0, %s65
      %s82 = sphi 0, %s66
      %s88 = sphi 0, %s90
      %s91 = sphi 0, %s88
      %s92 = sphi 0, %s91
      %s108 = sphi 0, %s92
    $region4: #{pare_up_decoder_block_2d.4} parent=1 // loop_header_branch
      %15 = sbr.rel (%p13) target = $region8
    $region5: #{pare_up_decoder_block_2d.4} parent=1 // loop_body
      %s17 = ssub.s32 %s12, 1
      %s18 = ssub.s32 %s12, 2
      %s25 = sadd.s32 1, %s20
      %p26 = scmp.ge.s32.totalorder %s25, 2
      %s27 = scalar_select %p26, 0, %s25
      %s28 = sadd.s32 1, %s19
      %s29 = scalar_select %p26, %s28, %s19
      %p30 = scmp.ge.s32.totalorder %s29, 2
      %s31 = scalar_select %p30, 0, %s29
      %s32 = ssub.s32 %s19, %s31
      %s33 = ssub.s32 %s20, %s27
      %s34 = sor.u32 %s32, %s33
      %p35 = scmp.eq.s32.totalorder %s34, 0
      %s37 = sadd.s32 %s36, 1
      %s38 = scalar_select %p35, %s36, %s37
      %p41 = pneg %p35
      %p42 = scmp.eq.s32.totalorder %s12, 3
      %p43 = por %p41, %p42
      %p44 = scmp.ne.s32.totalorder %s36, %s39
      %p45 = scmp.eq.s32.totalorder %s12, 0
      %p46 = por %p44, %p45
      %p47 = scmp.ne.s32.totalorder %s36, %s39
      %p48 = scmp.eq.s32.totalorder %s17, 3
      %p49 = por %p47, %p48
      %p50 = scmp.ne.s32.totalorder %s39, %s40
      %p51 = scmp.eq.s32.totalorder %s17, 0
      %p52 = por %p50, %p51
      %p53 = scmp.ne.s32.totalorder %s39, %s40
      %p54 = scmp.eq.s32.totalorder %s18, 3
      %p55 = por %p53, %p54
      %p57 = scmp.ne.s32.totalorder %s40, %s56
      %p58 = scmp.eq.s32.totalorder %s18, 0
      %p59 = por %p57, %p58
      %s60 = ssub.s32 %s19, %s31
      %p61 = scmp.eq.s32.totalorder %s60, 0
      %s63 = sadd.s32 %s62, 1
      %s64 = scalar_select %p61, %s62, %s63
      %p67 = pneg %p61
      %p68 = scmp.eq.s32.totalorder %s12, 3
      %p69 = por %p67, %p68
      %p70 = scmp.ne.s32.totalorder %s62, %s65
      %p71 = scmp.eq.s32.totalorder %s12, 0
      %p72 = por %p70, %p71
      %p73 = scmp.ne.s32.totalorder %s62, %s65
      %p74 = scmp.eq.s32.totalorder %s17, 3
      %p75 = por %p73, %p74
      %p76 = scmp.ne.s32.totalorder %s65, %s66
      %p77 = scmp.eq.s32.totalorder %s17, 0
      %p78 = por %p76, %p77
      %p79 = scmp.ne.s32.totalorder %s65, %s66
      %p80 = scmp.eq.s32.totalorder %s18, 3
      %p81 = por %p79, %p80
      %p83 = scmp.ne.s32.totalorder %s66, %s82
      %p84 = scmp.eq.s32.totalorder %s18, 0
      %p85 = por %p83, %p84
      %s86 = ssub.s32 %s19, %s31
      %p87 = scmp.eq.s32.totalorder %s86, 0
      %s89 = sadd.s32 %s88, 1
      %s90 = scalar_select %p87, %s88, %s89
      %p93 = pneg %p87
      %p94 = scmp.eq.s32.totalorder %s12, 3
      %p95 = por %p93, %p94
      %p96 = scmp.ne.s32.totalorder %s88, %s91
      %p97 = scmp.eq.s32.totalorder %s12, 0
      %p98 = por %p96, %p97
      %p99 = scmp.ne.s32.totalorder %s88, %s91
      %p100 = scmp.eq.s32.totalorder %s17, 3
      %p101 = por %p99, %p100
      %p102 = scmp.ne.s32.totalorder %s91, %s92
      %p103 = scmp.eq.s32.totalorder %s17, 0
      %p104 = por %p102, %p103
      %p105 = scmp.ne.s32.totalorder %s91, %s92
      %p106 = scmp.eq.s32.totalorder %s18, 3
      %p107 = por %p105, %p106
      %p109 = scmp.ne.s32.totalorder %s92, %s108
      %p110 = scmp.eq.s32.totalorder %s18, 0
      %p111 = por %p109, %p110
      %p112 = scmp.le.s32.totalorder 1, %s12
      %p113 = scmp.lt.s32.totalorder %s12, 5
      %p114 = pnand %p112, %p113
      %p115 = pneg %p114
      // Predicated region
      $region9: #{pare_up_decoder_block_2d.4} parent=5 // pred_check
        _
      $region10: #{pare_up_decoder_block_2d.4} parent=5 // pred_check_branch
        %117 = sbr.rel (%p114) target = $region12
      $region11: #{pare_up_decoder_block_2d.4} parent=5 // pred_region
        %s118 = ssub.s32 %s12, 1
      $region12: #{pare_up_decoder_block_2d.4} parent=5 // pred_fallthru
        _
      %p119 = scmp.lt.s32.totalorder %s12, 4
      // Predicated region
      $region13: #{pare_up_decoder_block_2d.4} parent=5 // pred_check
        %p120 = pneg %p119
      $region14: #{pare_up_decoder_block_2d.4} parent=5 // pred_check_branch
        %122 = sbr.rel (%p120) target = $region16
      $region15: #{pare_up_decoder_block_2d.4} parent=5 // pred_region
        // Predicated region
        $region17: #{pare_up_decoder_block_2d.4} parent=15 // pred_check
          %p123 = pneg %p46
        $region18: #{pare_up_decoder_block_2d.4} parent=15 // pred_check_branch
          %125 = sbr.rel (%p123) target = $region20
        $region19: #{pare_up_decoder_block_2d.4} parent=15 // pred_region
          %s126 = sand.u32 %s36, 1
          %s127 = scalar_lea.sflag [#allocation3], %s126
          %s128 = sand.u32 %s36, 1
          %s129 = smul.addr %s128, 32
          %s130 = scalar_lea.vmem [#allocation2], %s129
          %s131 = smul.u32 4, %s20
          %s133 = ssub.s32 512, 512
          %134 = vsyncadd %s127, %s133
          %s135 = smul.addr %s19, 8
          %s136 = sadd.s32 %s131, %s135
          %s137 = smul.addr %s136, 128
          %s138 = scalar_lea.hbm %s0, %s137
          %s139 = sshll.u32 %s130, 4
          %s140 = int_to_ptr.vmem [resolvable:$true] %s139
          %145 = dma.hbm_to_vmem [thread:$0]  %s138, 512, %s140, %s127, 128, 128, 8
        $region20: #{pare_up_decoder_block_2d.4} parent=15 // pred_fallthru
          _
      $region16: #{pare_up_decoder_block_2d.4} parent=5 // pred_fallthru
        _
      %p146 = scmp.le.s32.totalorder 1, %s12
      %p147 = scmp.lt.s32.totalorder %s12, 5
      %p148 = pnand %p146, %p147
      %p149 = pneg %p148
      // Predicated region
      $region21: #{pare_up_decoder_block_2d.4} parent=5 // pred_check
        _
      $region22: #{pare_up_decoder_block_2d.4} parent=5 // pred_check_branch
        %151 = sbr.rel (%p148) target = $region24
      $region23: #{pare_up_decoder_block_2d.4} parent=5 // pred_region
        %s152 = ssub.s32 %s12, 1
        %s153 = sand.u32 %s39, 1
        %s154 = scalar_lea.sflag [#allocation3], %s153
        %s155 = sand.u32 %s39, 1
        %s156 = smul.addr %s155, 32
        %s157 = scalar_lea.vmem [#allocation2], %s156
        // Predicated region
        $region25: #{pare_up_decoder_block_2d.4} parent=23 // pred_check
          %p158 = pneg %p52
        $region26: #{pare_up_decoder_block_2d.4} parent=23 // pred_check_branch
          %160 = sbr.rel (%p158) target = $region28
        $region27: #{pare_up_decoder_block_2d.4} parent=23 // pred_region
          %161 = dma.done %s154, 512
        $region28: #{pare_up_decoder_block_2d.4} parent=23 // pred_fallthru
          _
        %s162 = sand.u32 %s39, 1
        %s163 = scalar_lea.sflag [#allocation3], %s162
        %s164 = sand.u32 %s39, 1
        %s165 = smul.addr %s164, 32
        %s166 = scalar_lea.vmem [#allocation2], %s165
        %p167 = pneg %p52
        %p168 = pneg %p49
        %p169 = pneg %p78
        %p170 = pneg %p75
        %p171 = scmp.lt.s32.totalorder %s21, 1
        %s172 = scalar_select %p171, %s21, 1
        %s173 = scalar_lea.vmem %s1, %s172
        %p174 = pneg %p104
        %p175 = pneg %p101
        %p176 = scmp.lt.s32.totalorder %s21, 1
        %s177 = scalar_select %p176, %s21, 1
        %s178 = scalar_lea.vmem %s2, %s177
        %s179 = smul.u32 4, %s22
        %p180 = scmp.lt.s32.totalorder %s21, 1
        %s181 = scalar_select %p180, %s21, 1
        %s182 = scalar_lea.vmem %s1, %s181
        %p183 = scmp.lt.s32.totalorder %s21, 1
        %s184 = scalar_select %p183, %s21, 1
        %s185 = scalar_lea.vmem %s2, %s184
        %p186 = scmp.eq.s32.totalorder %s22, 0
        // Predicated region
        $region29: #{pare_up_decoder_block_2d.4} parent=23 // pred_check
          %p187 = pneg %p186
        $region30: #{pare_up_decoder_block_2d.4} parent=23 // pred_check_branch
          %189 = sbr.rel (%p187) target = $region32
        $region31: #{pare_up_decoder_block_2d.4} parent=23 // pred_region
          %vm190 = vcmask 516096
          %191 = vst.msk [vmem:[%s182] sm:$0x1] %vm190, 0.0
          %192 = vst.msk [vmem:[%s185] sm:$0x1] %vm190, 0.0
        $region32: #{pare_up_decoder_block_2d.4} parent=23 // pred_fallthru
          _
        %v193 = vld [vmem:[%s157] sm:$0xff]
        %v194 = vld [vmem:[%s157 + $0x8] sm:$0xff]
        %v195 = vld [vmem:[%s157 + $0x10] sm:$0xff]
        %v196 = vld [vmem:[%s157 + $0x18] sm:$0xff]
        %v197 = vld [vmem:[%s182] sm:$0x1]
        %vm198 = vcmask 523264
        %v199 = vsel %vm198, %v193, 0.0
        %v200 = vsel %vm198, %v194, 0.0
        %v201 = vadd.f32 %v199, %v200
        %v202 = vsel %vm198, %v195, 0.0
        %v203 = vadd.f32 %v201, %v202
        %v204 = vsel %vm198, %v196, 0.0
        %v205 = vadd.f32 %v203, %v204
        %v206 = vrot.slane %v205, 4
        %v207 = vadd.f32 %v205, %v206
        %v208 = vrot.slane %v207, 2
        %v209 = vadd.f32 %v207, %v208
        %v210 = vrot.slane %v209, 1
        %v211 = vadd.f32 %v209, %v210
        %v212 = vadd.f32 %v197, %v211
        %vm213 = vcmask 516096
        %214 = vst.msk [vmem:[%s182] sm:$0x1] %vm213, %v212
        %v215 = vld [vmem:[%s185] sm:$0x1]
        %v216 = vmul.f32 %v193, %v193
        %v217 = vmul.f32 %v194, %v194
        %v218 = vmul.f32 %v195, %v195
        %v219 = vmul.f32 %v196, %v196
        %v220 = vsel %vm198, %v216, 0.0
        %v221 = vsel %vm198, %v217, 0.0
        %v222 = vadd.f32 %v220, %v221
        %v223 = vsel %vm198, %v218, 0.0
        %v224 = vadd.f32 %v222, %v223
        %v225 = vsel %vm198, %v219, 0.0
        %v226 = vadd.f32 %v224, %v225
        %v227 = vrot.slane %v226, 4
        %v228 = vadd.f32 %v226, %v227
        %v229 = vrot.slane %v228, 2
        %v230 = vadd.f32 %v228, %v229
        %v231 = vrot.slane %v230, 1
        %v232 = vadd.f32 %v230, %v231
        %v233 = vadd.f32 %v215, %v232
        %234 = vst.msk [vmem:[%s185] sm:$0x1] %vm213, %v233
        %p235 = scmp.lt.s32.totalorder %s21, 1
        %s236 = scalar_select %p235, %s21, 1
        %s237 = scalar_lea.vmem %s1, %s236
        %p238 = scmp.lt.s32.totalorder %s21, 1
        %s239 = scalar_select %p238, %s21, 1
        %s240 = scalar_lea.vmem %s2, %s239
        // Predicated region
        $region33: #{pare_up_decoder_block_2d.4} parent=23 // pred_check
          %p241 = pneg %p75
        $region34: #{pare_up_decoder_block_2d.4} parent=23 // pred_check_branch
          %243 = sbr.rel (%p241) target = $region36
        $region35: #{pare_up_decoder_block_2d.4} parent=23 // pred_region
          _
        $region36: #{pare_up_decoder_block_2d.4} parent=23 // pred_fallthru
          _
        // Predicated region
        $region37: #{pare_up_decoder_block_2d.4} parent=23 // pred_check
          %p244 = pneg %p101
        $region38: #{pare_up_decoder_block_2d.4} parent=23 // pred_check_branch
          %246 = sbr.rel (%p244) target = $region40
        $region39: #{pare_up_decoder_block_2d.4} parent=23 // pred_region
          _
        $region40: #{pare_up_decoder_block_2d.4} parent=23 // pred_fallthru
          _
      $region24: #{pare_up_decoder_block_2d.4} parent=5 // pred_fallthru
        _
      %p247 = scmp.le.s32.totalorder 2, %s12
      // Predicated region
      $region41: #{pare_up_decoder_block_2d.4} parent=5 // pred_check
        %p248 = pneg %p247
      $region42: #{pare_up_decoder_block_2d.4} parent=5 // pred_check_branch
        %250 = sbr.rel (%p248) target = $region44
      $region43: #{pare_up_decoder_block_2d.4} parent=5 // pred_region
        %s251 = ssub.s32 %s12, 2
        // Predicated region
        $region45: #{pare_up_decoder_block_2d.4} parent=43 // pred_check
          %p252 = pneg %p81
        $region46: #{pare_up_decoder_block_2d.4} parent=43 // pred_check_branch
          %254 = sbr.rel (%p252) target = $region48
        $region47: #{pare_up_decoder_block_2d.4} parent=43 // pred_region
          %p255 = scmp.lt.s32.totalorder %s23, 1
          %s256 = scalar_select %p255, %s23, 1
          %s257 = scalar_lea.vmem %s1, %s256
        $region48: #{pare_up_decoder_block_2d.4} parent=43 // pred_fallthru
          _
        // Predicated region
        $region49: #{pare_up_decoder_block_2d.4} parent=43 // pred_check
          %p258 = pneg %p107
        $region50: #{pare_up_decoder_block_2d.4} parent=43 // pred_check_branch
          %260 = sbr.rel (%p258) target = $region52
        $region51: #{pare_up_decoder_block_2d.4} parent=43 // pred_region
          %p261 = scmp.lt.s32.totalorder %s23, 1
          %s262 = scalar_select %p261, %s23, 1
          %s263 = scalar_lea.vmem %s2, %s262
        $region52: #{pare_up_decoder_block_2d.4} parent=43 // pred_fallthru
          _
      $region44: #{pare_up_decoder_block_2d.4} parent=5 // pred_fallthru
        _
    $region6: #{pare_up_decoder_block_2d.4} parent=1 // loop_footer
      %s16 = sadd.s32 1, %s12
    $region7: #{pare_up_decoder_block_2d.4} parent=1 // loop_footer_branch
      %11 = sbr.rel target = $region3
    $region8: #{pare_up_decoder_block_2d.4} parent=1 // loop_exit
      _
    %264 = vsyncpa [#allocation3], 1
    %s265 = scalar_lea.sflag [#allocation3], 1
    %266 = vsyncpa %s265, 1

// kernel: pare_up_decoder_block_2d.5
$region0: #{pare_up_decoder_block_2d.5}
  #allocation0 [shape = 'u32[]', space=smem, size = 0x4, offset = 0x4, fixed_abs, tag = 'smem constant byte address 0x4 - core index']
  #allocation1 [shape = 'u32[144,128]{1,0:T(1,128)}', space=vmem, size = 0x12000, scoped, tag = 'internal scratch']
  #allocation2 [shape = 'f32[6,8,64]{2,1,0:T(8,128)}', space=vmem, size = 0x6000, scoped, tag = 'scratch operand']
  %s0 = inlined_call_operand.vmem [shape: f32[2,8,8,64], index: 0, kind: input, shape index: {}, may-alias: {0,1,2}]
  %s1 = inlined_call_operand.vmem [shape: f32[2,8,8,64], index: 1, kind: input, shape index: {}, may-alias: {0,1,2}]
  %s2 = inlined_call_operand.vmem [shape: f32[2,8,8,64], index: 2, kind: input, shape index: {}, may-alias: {0,1,2}]
  %s3 = inlined_call_operand.vmem [shape: f32[2,1,64], index: 3, kind: input, shape index: {}]
  %s4 = inlined_call_operand.vmem [shape: f32[2,1,64], index: 4, kind: input, shape index: {}]
  %s5 = inlined_call_operand.vmem [shape: f32[3,192,32], index: 5, kind: input, shape index: {}]
  %s6 = inlined_call_operand.vmem [shape: f32[1,32], index: 6, kind: input, shape index: {}]
  %s7 = inlined_call_operand.vmem [shape: f32[2,8,8,32], index: 7, kind: output, shape index: {0}]
  %s8 = inlined_call_operand.vmem [shape: f32[2,1,32], index: 8, kind: output, shape index: {1}]
  %s9 = inlined_call_operand.vmem [shape: f32[2,1,32], index: 9, kind: output, shape index: {2}]
  %10 = xla_tuple %s7, %s8, %s9
  %s11 = sld [smem:[#allocation0]]
  $region81: #{pare_up_decoder_block_2d.5} parent=0
    _
  %s13 = ssub.s32 1, %s11
  %s14 = scalar_select 0, %s13, %s11
  loop: start=0, step=1, limit=6
  $region2: #{pare_up_decoder_block_2d.5} parent=0 // loop_pre_header
    _
  $region3: #{pare_up_decoder_block_2d.5} parent=0 // loop_header
    %s16 = sphi 0, %s20
    %p17 = scmp.ge.s32.totalorder %s16, 6
    %s23 = sphi 0, %s35
    %s24 = sphi 0, %s31
    %s25 = sphi 0, %s23
    %s26 = sphi 0, %s24
    %s27 = sphi 0, %s25
    %s28 = sphi 0, %s26
    %s40 = sphi 0, %s42
    %s43 = sphi 0, %s40
    %s44 = sphi 0, %s43
    %s60 = sphi 0, %s44
    %s76 = sphi 0, %s78
    %s79 = sphi 0, %s76
    %s80 = sphi 0, %s79
    %s96 = sphi 0, %s80
    %s112 = sphi 0, %s114
    %s115 = sphi 0, %s112
    %s116 = sphi 0, %s115
    %s132 = sphi 0, %s116
    %s138 = sphi 0, %s140
    %s141 = sphi 0, %s138
    %s142 = sphi 0, %s141
    %s158 = sphi 0, %s142
    %s164 = sphi 0, %s166
    %s167 = sphi 0, %s164
    %s168 = sphi 0, %s167
    %s184 = sphi 0, %s168
    %s188 = sphi 0, %s188
    %s190 = sphi 0, %s188
    %s191 = sphi 0, %s190
    %s205 = sphi 0, %s191
    %s209 = sphi 0, %s209
    %s211 = sphi 0, %s209
    %s212 = sphi 0, %s211
    %s226 = sphi 0, %s212
    %s234 = sphi 0, %s236
    %s237 = sphi 0, %s234
    %s238 = sphi 0, %s237
    %s254 = sphi 0, %s238
    %s260 = sphi 0, %s262
    %s263 = sphi 0, %s260
    %s264 = sphi 0, %s263
    %s280 = sphi 0, %s264
    %s286 = sphi 0, %s288
    %s289 = sphi 0, %s286
    %s290 = sphi 0, %s289
    %s306 = sphi 0, %s290
  $region4: #{pare_up_decoder_block_2d.5} parent=0 // loop_header_branch
    %19 = sbr.rel (%p17) target = $region8
  $region5: #{pare_up_decoder_block_2d.5} parent=0 // loop_body
    %s21 = ssub.s32 %s16, 1
    %s22 = ssub.s32 %s16, 2
    %s29 = sadd.s32 1, %s24
    %p30 = scmp.ge.s32.totalorder %s29, 2
    %s31 = scalar_select %p30, 0, %s29
    %s32 = sadd.s32 1, %s23
    %s33 = scalar_select %p30, %s32, %s23
    %p34 = scmp.ge.s32.totalorder %s33, 2
    %s35 = scalar_select %p34, 0, %s33
    %s36 = ssub.s32 %s23, %s35
    %s37 = ssub.s32 %s24, %s31
    %s38 = sor.u32 %s36, %s37
    %p39 = scmp.eq.s32.totalorder %s38, 0
    %s41 = sadd.s32 %s40, 1
    %s42 = scalar_select %p39, %s40, %s41
    %p45 = pneg %p39
    %p46 = scmp.eq.s32.totalorder %s16, 3
    %p47 = por %p45, %p46
    %p48 = scmp.ne.s32.totalorder %s40, %s43
    %p49 = scmp.eq.s32.totalorder %s16, 0
    %p50 = por %p48, %p49
    %p51 = scmp.ne.s32.totalorder %s40, %s43
    %p52 = scmp.eq.s32.totalorder %s21, 3
    %p53 = por %p51, %p52
    %p54 = scmp.ne.s32.totalorder %s43, %s44
    %p55 = scmp.eq.s32.totalorder %s21, 0
    %p56 = por %p54, %p55
    %p57 = scmp.ne.s32.totalorder %s43, %s44
    %p58 = scmp.eq.s32.totalorder %s22, 3
    %p59 = por %p57, %p58
    %p61 = scmp.ne.s32.totalorder %s44, %s60
    %p62 = scmp.eq.s32.totalorder %s22, 0
    %p63 = por %p61, %p62
    %s64 = smul.u32 %s24, 4
    %s65 = ssub.s32 %s64, 1
    %p66 = scmp.gt.s32.totalorder %s65, 0
    %s67 = scalar_select %p66, %s65, 0
    %s68 = smul.u32 %s31, 4
    %s69 = ssub.s32 %s68, 1
    %p70 = scmp.gt.s32.totalorder %s69, 0
    %s71 = scalar_select %p70, %s69, 0
    %s72 = ssub.s32 %s23, %s35
    %s73 = ssub.s32 %s67, %s71
    %s74 = sor.u32 %s72, %s73
    %p75 = scmp.eq.s32.totalorder %s74, 0
    %s77 = sadd.s32 %s76, 1
    %s78 = scalar_select %p75, %s76, %s77
    %p81 = pneg %p75
    %p82 = scmp.eq.s32.totalorder %s16, 3
    %p83 = por %p81, %p82
    %p84 = scmp.ne.s32.totalorder %s76, %s79
    %p85 = scmp.eq.s32.totalorder %s16, 0
    %p86 = por %p84, %p85
    %p87 = scmp.ne.s32.totalorder %s76, %s79
    %p88 = scmp.eq.s32.totalorder %s21, 3
    %p89 = por %p87, %p88
    %p90 = scmp.ne.s32.totalorder %s79, %s80
    %p91 = scmp.eq.s32.totalorder %s21, 0
    %p92 = por %p90, %p91
    %p93 = scmp.ne.s32.totalorder %s79, %s80
    %p94 = scmp.eq.s32.totalorder %s22, 3
    %p95 = por %p93, %p94
    %p97 = scmp.ne.s32.totalorder %s80, %s96
    %p98 = scmp.eq.s32.totalorder %s22, 0
    %p99 = por %p97, %p98
    %s100 = smul.u32 %s24, 4
    %s101 = sadd.s32 %s100, 4
    %p102 = scmp.lt.s32.totalorder %s101, 7
    %s103 = scalar_select %p102, %s101, 7
    %s104 = smul.u32 %s31, 4
    %s105 = sadd.s32 %s104, 4
    %p106 = scmp.lt.s32.totalorder %s105, 7
    %s107 = scalar_select %p106, %s105, 7
    %s108 = ssub.s32 %s23, %s35
    %s109 = ssub.s32 %s103, %s107
    %s110 = sor.u32 %s108, %s109
    %p111 = scmp.eq.s32.totalorder %s110, 0
    %s113 = sadd.s32 %s112, 1
    %s114 = scalar_select %p111, %s112, %s113
    %p117 = pneg %p111
    %p118 = scmp.eq.s32.totalorder %s16, 3
    %p119 = por %p117, %p118
    %p120 = scmp.ne.s32.totalorder %s112, %s115
    %p121 = scmp.eq.s32.totalorder %s16, 0
    %p122 = por %p120, %p121
    %p123 = scmp.ne.s32.totalorder %s112, %s115
    %p124 = scmp.eq.s32.totalorder %s21, 3
    %p125 = por %p123, %p124
    %p126 = scmp.ne.s32.totalorder %s115, %s116
    %p127 = scmp.eq.s32.totalorder %s21, 0
    %p128 = por %p126, %p127
    %p129 = scmp.ne.s32.totalorder %s115, %s116
    %p130 = scmp.eq.s32.totalorder %s22, 3
    %p131 = por %p129, %p130
    %p133 = scmp.ne.s32.totalorder %s116, %s132
    %p134 = scmp.eq.s32.totalorder %s22, 0
    %p135 = por %p133, %p134
    %s136 = ssub.s32 %s23, %s35
    %p137 = scmp.eq.s32.totalorder %s136, 0
    %s139 = sadd.s32 %s138, 1
    %s140 = scalar_select %p137, %s138, %s139
    %p143 = pneg %p137
    %p144 = scmp.eq.s32.totalorder %s16, 3
    %p145 = por %p143, %p144
    %p146 = scmp.ne.s32.totalorder %s138, %s141
    %p147 = scmp.eq.s32.totalorder %s16, 0
    %p148 = por %p146, %p147
    %p149 = scmp.ne.s32.totalorder %s138, %s141
    %p150 = scmp.eq.s32.totalorder %s21, 3
    %p151 = por %p149, %p150
    %p152 = scmp.ne.s32.totalorder %s141, %s142
    %p153 = scmp.eq.s32.totalorder %s21, 0
    %p154 = por %p152, %p153
    %p155 = scmp.ne.s32.totalorder %s141, %s142
    %p156 = scmp.eq.s32.totalorder %s22, 3
    %p157 = por %p155, %p156
    %p159 = scmp.ne.s32.totalorder %s142, %s158
    %p160 = scmp.eq.s32.totalorder %s22, 0
    %p161 = por %p159, %p160
    %s162 = ssub.s32 %s23, %s35
    %p163 = scmp.eq.s32.totalorder %s162, 0
    %s165 = sadd.s32 %s164, 1
    %s166 = scalar_select %p163, %s164, %s165
    %p169 = pneg %p163
    %p170 = scmp.eq.s32.totalorder %s16, 3
    %p171 = por %p169, %p170
    %p172 = scmp.ne.s32.totalorder %s164, %s167
    %p173 = scmp.eq.s32.totalorder %s16, 0
    %p174 = por %p172, %p173
    %p175 = scmp.ne.s32.totalorder %s164, %s167
    %p176 = scmp.eq.s32.totalorder %s21, 3
    %p177 = por %p175, %p176
    %p178 = scmp.ne.s32.totalorder %s167, %s168
    %p179 = scmp.eq.s32.totalorder %s21, 0
    %p180 = por %p178, %p179
    %p181 = scmp.ne.s32.totalorder %s167, %s168
    %p182 = scmp.eq.s32.totalorder %s22, 3
    %p183 = por %p181, %p182
    %p185 = scmp.ne.s32.totalorder %s168, %s184
    %p186 = scmp.eq.s32.totalorder %s22, 0
    %p187 = por %p185, %p186
    %s189 = sadd.s32 %s188, 1
    %p192 = scmp.eq.s32.totalorder %s16, 3
    %p193 = scmp.ne.s32.totalorder %s188, %s190
    %p194 = scmp.eq.s32.totalorder %s16, 0
    %p195 = por %p193, %p194
    %p196 = scmp.ne.s32.totalorder %s188, %s190
    %p197 = scmp.eq.s32.totalorder %s21, 3
    %p198 = por %p196, %p197
    %p199 = scmp.ne.s32.totalorder %s190, %s191
    %p200 = scmp.eq.s32.totalorder %s21, 0
    %p201 = por %p199, %p200
    %p202 = scmp.ne.s32.totalorder %s190, %s191
    %p203 = scmp.eq.s32.totalorder %s22, 3
    %p204 = por %p202, %p203
    %p206 = scmp.ne.s32.totalorder %s191, %s205
    %p207 = scmp.eq.s32.totalorder %s22, 0
    %p208 = por %p206, %p207
    %s210 = sadd.s32 %s209, 1
    %p213 = scmp.eq.s32.totalorder %s16, 3
    %p214 = scmp.ne.s32.totalorder %s209, %s211
    %p215 = scmp.eq.s32.totalorder %s16, 0
    %p216 = por %p214, %p215
    %p217 = scmp.ne.s32.totalorder %s209, %s211
    %p218 = scmp.eq.s32.totalorder %s21, 3
    %p219 = por %p217, %p218
    %p220 = scmp.ne.s32.totalorder %s211, %s212
    %p221 = scmp.eq.s32.totalorder %s21, 0
    %p222 = por %p220, %p221
    %p223 = scmp.ne.s32.totalorder %s211, %s212
    %p224 = scmp.eq.s32.totalorder %s22, 3
    %p225 = por %p223, %p224
    %p227 = scmp.ne.s32.totalorder %s212, %s226
    %p228 = scmp.eq.s32.totalorder %s22, 0
    %p229 = por %p227, %p228
    %s230 = ssub.s32 %s23, %s35
    %s231 = ssub.s32 %s24, %s31
    %s232 = sor.u32 %s230, %s231
    %p233 = scmp.eq.s32.totalorder %s232, 0
    %s235 = sadd.s32 %s234, 1
    %s236 = scalar_select %p233, %s234, %s235
    %p239 = pneg %p233
    %p240 = scmp.eq.s32.totalorder %s16, 3
    %p241 = por %p239, %p240
    %p242 = scmp.ne.s32.totalorder %s234, %s237
    %p243 = scmp.eq.s32.totalorder %s16, 0
    %p244 = por %p242, %p243
    %p245 = scmp.ne.s32.totalorder %s234, %s237
    %p246 = scmp.eq.s32.totalorder %s21, 3
    %p247 = por %p245, %p246
    %p248 = scmp.ne.s32.totalorder %s237, %s238
    %p249 = scmp.eq.s32.totalorder %s21, 0
    %p250 = por %p248, %p249
    %p251 = scmp.ne.s32.totalorder %s237, %s238
    %p252 = scmp.eq.s32.totalorder %s22, 3
    %p253 = por %p251, %p252
    %p255 = scmp.ne.s32.totalorder %s238, %s254
    %p256 = scmp.eq.s32.totalorder %s22, 0
    %p257 = por %p255, %p256
    %s258 = ssub.s32 %s23, %s35
    %p259 = scmp.eq.s32.totalorder %s258, 0
    %s261 = sadd.s32 %s260, 1
    %s262 = scalar_select %p259, %s260, %s261
    %p265 = pneg %p259
    %p266 = scmp.eq.s32.totalorder %s16, 3
    %p267 = por %p265, %p266
    %p268 = scmp.ne.s32.totalorder %s260, %s263
    %p269 = scmp.eq.s32.totalorder %s16, 0
    %p270 = por %p268, %p269
    %p271 = scmp.ne.s32.totalorder %s260, %s263
    %p272 = scmp.eq.s32.totalorder %s21, 3
    %p273 = por %p271, %p272
    %p274 = scmp.ne.s32.totalorder %s263, %s264
    %p275 = scmp.eq.s32.totalorder %s21, 0
    %p276 = por %p274, %p275
    %p277 = scmp.ne.s32.totalorder %s263, %s264
    %p278 = scmp.eq.s32.totalorder %s22, 3
    %p279 = por %p277, %p278
    %p281 = scmp.ne.s32.totalorder %s264, %s280
    %p282 = scmp.eq.s32.totalorder %s22, 0
    %p283 = por %p281, %p282
    %s284 = ssub.s32 %s23, %s35
    %p285 = scmp.eq.s32.totalorder %s284, 0
    %s287 = sadd.s32 %s286, 1
    %s288 = scalar_select %p285, %s286, %s287
    %p291 = pneg %p285
    %p292 = scmp.eq.s32.totalorder %s16, 3
    %p293 = por %p291, %p292
    %p294 = scmp.ne.s32.totalorder %s286, %s289
    %p295 = scmp.eq.s32.totalorder %s16, 0
    %p296 = por %p294, %p295
    %p297 = scmp.ne.s32.totalorder %s286, %s289
    %p298 = scmp.eq.s32.totalorder %s21, 3
    %p299 = por %p297, %p298
    %p300 = scmp.ne.s32.totalorder %s289, %s290
    %p301 = scmp.eq.s32.totalorder %s21, 0
    %p302 = por %p300, %p301
    %p303 = scmp.ne.s32.totalorder %s289, %s290
    %p304 = scmp.eq.s32.totalorder %s22, 3
    %p305 = por %p303, %p304
    %p307 = scmp.ne.s32.totalorder %s290, %s306
    %p308 = scmp.eq.s32.totalorder %s22, 0
    %p309 = por %p307, %p308
    %p310 = scmp.le.s32.totalorder 1, %s16
    %p311 = scmp.lt.s32.totalorder %s16, 5
    %p312 = pnand %p310, %p311
    %p313 = pneg %p312
    // Predicated region
    $region9: #{pare_up_decoder_block_2d.5} parent=5 // pred_check
      _
    $region10: #{pare_up_decoder_block_2d.5} parent=5 // pred_check_branch
      %315 = sbr.rel (%p312) target = $region12
    $region11: #{pare_up_decoder_block_2d.5} parent=5 // pred_region
      %s316 = ssub.s32 %s16, 1
      // Predicated region
      $region13: #{pare_up_decoder_block_2d.5} parent=11 // pred_check
        %p317 = pneg %p201
      $region14: #{pare_up_decoder_block_2d.5} parent=11 // pred_check_branch
        %319 = sbr.rel (%p317) target = $region16
      $region15: #{pare_up_decoder_block_2d.5} parent=11 // pred_region
        _
      $region16: #{pare_up_decoder_block_2d.5} parent=11 // pred_fallthru
        _
      // Predicated region
      $region17: #{pare_up_decoder_block_2d.5} parent=11 // pred_check
        %p320 = pneg %p222
      $region18: #{pare_up_decoder_block_2d.5} parent=11 // pred_check_branch
        %322 = sbr.rel (%p320) target = $region20
      $region19: #{pare_up_decoder_block_2d.5} parent=11 // pred_region
        _
      $region20: #{pare_up_decoder_block_2d.5} parent=11 // pred_fallthru
        _
    $region12: #{pare_up_decoder_block_2d.5} parent=5 // pred_fallthru
      _
    %p323 = scmp.lt.s32.totalorder %s16, 4
    // Predicated region
    $region21: #{pare_up_decoder_block_2d.5} parent=5 // pred_check
      %p324 = pneg %p323
    $region22: #{pare_up_decoder_block_2d.5} parent=5 // pred_check_branch
      %326 = sbr.rel (%p324) target = $region24
    $region23: #{pare_up_decoder_block_2d.5} parent=5 // pred_region
      // Predicated region
      $region25: #{pare_up_decoder_block_2d.5} parent=23 // pred_check
        %p327 = pneg %p50
      $region26: #{pare_up_decoder_block_2d.5} parent=23 // pred_check_branch
        %329 = sbr.rel (%p327) target = $region28
      $region27: #{pare_up_decoder_block_2d.5} parent=23 // pred_region
        %s330 = smul.u32 4, %s24
        %p331 = scmp.lt.s32.totalorder %s23, 1
        %s332 = scalar_select %p331, %s23, 1
        %p333 = scmp.lt.s32.totalorder %s330, 7
        %s334 = scalar_select %p333, %s330, 7
        %s335 = smul.addr %s332, 8
        %s336 = sadd.s32 %s334, %s335
        %s337 = smul.addr %s336, 8
        %s338 = scalar_lea.vmem %s0, %s337
        %s339 = smul.u32 4, %s24
      $region28: #{pare_up_decoder_block_2d.5} parent=23 // pred_fallthru
        _
      // Predicated region
      $region29: #{pare_up_decoder_block_2d.5} parent=23 // pred_check
        %p340 = pneg %p86
      $region30: #{pare_up_decoder_block_2d.5} parent=23 // pred_check_branch
        %342 = sbr.rel (%p340) target = $region32
      $region31: #{pare_up_decoder_block_2d.5} parent=23 // pred_region
        %s343 = smul.u32 %s24, 4
        %s344 = ssub.s32 %s343, 1
        %p345 = scmp.gt.s32.totalorder %s344, 0
        %s346 = scalar_select %p345, %s344, 0
        %p347 = scmp.lt.s32.totalorder %s23, 1
        %s348 = scalar_select %p347, %s23, 1
        %p349 = scmp.lt.s32.totalorder %s346, 7
        %s350 = scalar_select %p349, %s346, 7
        %s351 = smul.addr %s348, 8
        %s352 = sadd.s32 %s350, %s351
        %s353 = smul.addr %s352, 8
        %s354 = scalar_lea.vmem %s1, %s353
        %s355 = smul.u32 %s24, 4
        %s356 = ssub.s32 %s355, 1
        %p357 = scmp.gt.s32.totalorder %s356, 0
        %s358 = scalar_select %p357, %s356, 0
      $region32: #{pare_up_decoder_block_2d.5} parent=23 // pred_fallthru
        _
      // Predicated region
      $region33: #{pare_up_decoder_block_2d.5} parent=23 // pred_check
        %p359 = pneg %p122
      $region34: #{pare_up_decoder_block_2d.5} parent=23 // pred_check_branch
        %361 = sbr.rel (%p359) target = $region36
      $region35: #{pare_up_decoder_block_2d.5} parent=23 // pred_region
        %s362 = smul.u32 %s24, 4
        %s363 = sadd.s32 %s362, 4
        %p364 = scmp.lt.s32.totalorder %s363, 7
        %s365 = scalar_select %p364, %s363, 7
        %p366 = scmp.lt.s32.totalorder %s23, 1
        %s367 = scalar_select %p366, %s23, 1
        %p368 = scmp.lt.s32.totalorder %s365, 7
        %s369 = scalar_select %p368, %s365, 7
        %s370 = smul.addr %s367, 8
        %s371 = sadd.s32 %s369, %s370
        %s372 = smul.addr %s371, 8
        %s373 = scalar_lea.vmem %s2, %s372
        %s374 = smul.u32 %s24, 4
        %s375 = sadd.s32 %s374, 4
        %p376 = scmp.lt.s32.totalorder %s375, 7
        %s377 = scalar_select %p376, %s375, 7
      $region36: #{pare_up_decoder_block_2d.5} parent=23 // pred_fallthru
        _
      // Predicated region
      $region37: #{pare_up_decoder_block_2d.5} parent=23 // pred_check
        %p378 = pneg %p148
      $region38: #{pare_up_decoder_block_2d.5} parent=23 // pred_check_branch
        %380 = sbr.rel (%p378) target = $region40
      $region39: #{pare_up_decoder_block_2d.5} parent=23 // pred_region
        %p381 = scmp.lt.s32.totalorder %s23, 1
        %s382 = scalar_select %p381, %s23, 1
        %s383 = scalar_lea.vmem %s3, %s382
      $region40: #{pare_up_decoder_block_2d.5} parent=23 // pred_fallthru
        _
      // Predicated region
      $region41: #{pare_up_decoder_block_2d.5} parent=23 // pred_check
        %p384 = pneg %p174
      $region42: #{pare_up_decoder_block_2d.5} parent=23 // pred_check_branch
        %386 = sbr.rel (%p384) target = $region44
      $region43: #{pare_up_decoder_block_2d.5} parent=23 // pred_region
        %p387 = scmp.lt.s32.totalorder %s23, 1
        %s388 = scalar_select %p387, %s23, 1
        %s389 = scalar_lea.vmem %s4, %s388
      $region44: #{pare_up_decoder_block_2d.5} parent=23 // pred_fallthru
        _
    $region24: #{pare_up_decoder_block_2d.5} parent=5 // pred_fallthru
      _
    %p390 = scmp.le.s32.totalorder 1, %s16
    %p391 = scmp.lt.s32.totalorder %s16, 5
    %p392 = pnand %p390, %p391
    %p393 = pneg %p392
    // Predicated region
    $region45: #{pare_up_decoder_block_2d.5} parent=5 // pred_check
      _
    $region46: #{pare_up_decoder_block_2d.5} parent=5 // pred_check_branch
      %395 = sbr.rel (%p392) target = $region48
    $region47: #{pare_up_decoder_block_2d.5} parent=5 // pred_region
      %s396 = ssub.s32 %s16, 1
      %s397 = smul.u32 4, %s26
      %p398 = scmp.lt.s32.totalorder %s25, 1
      %s399 = scalar_select %p398, %s25, 1
      %p400 = scmp.lt.s32.totalorder %s397, 7
      %s401 = scalar_select %p400, %s397, 7
      %s402 = smul.addr %s399, 8
      %s403 = sadd.s32 %s401, %s402
      %s404 = smul.addr %s403, 8
      %s405 = scalar_lea.vmem %s0, %s404
      %p406 = pneg %p56
      %p407 = pneg %p53
      %s408 = smul.u32 %s26, 4
      %s409 = ssub.s32 %s408, 1
      %p410 = scmp.gt.s32.totalorder %s409, 0
      %s411 = scalar_select %p410, %s409, 0
      %p412 = scmp.lt.s32.totalorder %s25, 1
      %s413 = scalar_select %p412, %s25, 1
      %p414 = scmp.lt.s32.totalorder %s411, 7
      %s415 = scalar_select %p414, %s411, 7
      %s416 = smul.addr %s413, 8
      %s417 = sadd.s32 %s415, %s416
      %s418 = smul.addr %s417, 8
      %s419 = scalar_lea.vmem %s1, %s418
      %p420 = pneg %p92
      %p421 = pneg %p89
      %s422 = smul.u32 %s26, 4
      %s423 = sadd.s32 %s422, 4
      %p424 = scmp.lt.s32.totalorder %s423, 7
      %s425 = scalar_select %p424, %s423, 7
      %p426 = scmp.lt.s32.totalorder %s25, 1
      %s427 = scalar_select %p426, %s25, 1
      %p428 = scmp.lt.s32.totalorder %s425, 7
      %s429 = scalar_select %p428, %s425, 7
      %s430 = smul.addr %s427, 8
      %s431 = sadd.s32 %s429, %s430
      %s432 = smul.addr %s431, 8
      %s433 = scalar_lea.vmem %s2, %s432
      %p434 = pneg %p128
      %p435 = pneg %p125
      %p436 = scmp.lt.s32.totalorder %s25, 1
      %s437 = scalar_select %p436, %s25, 1
      %s438 = scalar_lea.vmem %s3, %s437
      %p439 = pneg %p154
      %p440 = pneg %p151
      %p441 = scmp.lt.s32.totalorder %s25, 1
      %s442 = scalar_select %p441, %s25, 1
      %s443 = scalar_lea.vmem %s4, %s442
      %p444 = pneg %p180
      %p445 = pneg %p177
      %p446 = pneg %p201
      %p447 = pneg %p198
      %p448 = pneg %p222
      %p449 = pneg %p219
      %p450 = pneg %p250
      %p451 = pneg %p247
      %s452 = smul.u32 4, %s26
      %p453 = scmp.lt.s32.totalorder %s25, 1
      %s454 = scalar_select %p453, %s25, 1
      %p455 = scmp.lt.s32.totalorder %s452, 7
      %s456 = scalar_select %p455, %s452, 7
      %s457 = smul.addr %s454, 8
      %s458 = sadd.s32 %s456, %s457
      %s459 = smul.addr %s458, 8
      %s460 = scalar_lea.vmem %s7, %s459
      %p461 = pneg %p276
      %p462 = pneg %p273
      %p463 = scmp.lt.s32.totalorder %s25, 1
      %s464 = scalar_select %p463, %s25, 1
      %s465 = scalar_lea.vmem %s8, %s464
      %p466 = pneg %p302
      %p467 = pneg %p299
      %p468 = scmp.lt.s32.totalorder %s25, 1
      %s469 = scalar_select %p468, %s25, 1
      %s470 = scalar_lea.vmem %s9, %s469
      %s471 = smul.u32 4, %s26
      %p472 = scmp.lt.s32.totalorder %s25, 1
      %s473 = scalar_select %p472, %s25, 1
      %p474 = scmp.lt.s32.totalorder %s471, 7
      %s475 = scalar_select %p474, %s471, 7
      %s476 = smul.addr %s473, 8
      %s477 = sadd.s32 %s475, %s476
      %s478 = smul.addr %s477, 8
      %s479 = scalar_lea.vmem %s0, %s478
      %s480 = smul.u32 4, %s26
      %s481 = smul.u32 %s26, 4
      %s482 = ssub.s32 %s481, 1
      %p483 = scmp.gt.s32.totalorder %s482, 0
      %s484 = scalar_select %p483, %s482, 0
      %p485 = scmp.lt.s32.totalorder %s25, 1
      %s486 = scalar_select %p485, %s25, 1
      %p487 = scmp.lt.s32.totalorder %s484, 7
      %s488 = scalar_select %p487, %s484, 7
      %s489 = smul.addr %s486, 8
      %s490 = sadd.s32 %s488, %s489
      %s491 = smul.addr %s490, 8
      %s492 = scalar_lea.vmem %s1, %s491
      %s493 = smul.u32 %s26, 4
      %s494 = ssub.s32 %s493, 1
      %p495 = scmp.gt.s32.totalorder %s494, 0
      %s496 = scalar_select %p495, %s494, 0
      %s497 = smul.u32 %s26, 4
      %s498 = sadd.s32 %s497, 4
      %p499 = scmp.lt.s32.totalorder %s498, 7
      %s500 = scalar_select %p499, %s498, 7
      %p501 = scmp.lt.s32.totalorder %s25, 1
      %s502 = scalar_select %p501, %s25, 1
      %p503 = scmp.lt.s32.totalorder %s500, 7
      %s504 = scalar_select %p503, %s500, 7
      %s505 = smul.addr %s502, 8
      %s506 = sadd.s32 %s504, %s505
      %s507 = smul.addr %s506, 8
      %s508 = scalar_lea.vmem %s2, %s507
      %s509 = smul.u32 %s26, 4
      %s510 = sadd.s32 %s509, 4
      %p511 = scmp.lt.s32.totalorder %s510, 7
      %s512 = scalar_select %p511, %s510, 7
      %p513 = scmp.lt.s32.totalorder %s25, 1
      %s514 = scalar_select %p513, %s25, 1
      %s515 = scalar_lea.vmem %s3, %s514
      %p516 = scmp.lt.s32.totalorder %s25, 1
      %s517 = scalar_select %p516, %s25, 1
      %s518 = scalar_lea.vmem %s4, %s517
      %s519 = smul.u32 4, %s26
      %p520 = scmp.lt.s32.totalorder %s25, 1
      %s521 = scalar_select %p520, %s25, 1
      %p522 = scmp.lt.s32.totalorder %s519, 7
      %s523 = scalar_select %p522, %s519, 7
      %s524 = smul.addr %s521, 8
      %s525 = sadd.s32 %s523, %s524
      %s526 = smul.addr %s525, 8
      %s527 = scalar_lea.vmem %s7, %s526
      %s528 = smul.u32 4, %s26
      %p529 = scmp.lt.s32.totalorder %s25, 1
      %s530 = scalar_select %p529, %s25, 1
      %s531 = scalar_lea.vmem %s8, %s530
      %p532 = scmp.lt.s32.totalorder %s25, 1
      %s533 = scalar_select %p532, %s25, 1
      %s534 = scalar_lea.vmem %s9, %s533
      %v535 = vld [vmem:[%s515] sm:$0x1]
      %v536 = vld [vmem:[%s518] sm:$0x1]
      %v537 = vld [vmem:[%s479] sm:$0xff]
      %v538 = vld [vmem:[%s479 + $0x8] sm:$0xff]
      %v539 = vld [vmem:[%s479 + $0x10] sm:$0xff]
      %v540 = vld [vmem:[%s479 + $0x18] sm:$0xff]
      %v542 = vlaneseq
      %v543 = vshrl.u32 %v542, 7
      %v544 = vsub.s32 0, %v543
      %v545 = vrot.slane %v535, %v544
      %v547 = vmul.f32 %v537, %v545
      %v548 = vmul.f32 %v538, %v545
      %v549 = vmul.f32 %v539, %v545
      %v550 = vmul.f32 %v540, %v545
      %v552 = vlaneseq
      %v553 = vshrl.u32 %v552, 7
      %v554 = vsub.s32 0, %v553
      %v555 = vrot.slane %v536, %v554
      %v557 = vadd.f32 %v547, %v555
      %v558 = vadd.f32 %v548, %v555
      %v559 = vadd.f32 %v549, %v555
      %v560 = vadd.f32 %v550, %v555
      %v561 = vxor.u32 %v557, 2147483648
      %v562 = vxor.u32 %v558, 2147483648
      %v563 = vxor.u32 %v559, 2147483648
      %v564 = vxor.u32 %v560, 2147483648
      %v565 = vmul.f32 %v561, 1.442695
      %v566 = vpow.pop %v565
      %v567 = vmul.f32 %v562, 1.442695
      %v568 = vpow.pop %v567
      %v569 = vmul.f32 %v563, 1.442695
      %v570 = vpow.pop %v569
      %v571 = vmul.f32 %v564, 1.442695
      %v572 = vpow.pop %v571
      %v573 = vadd.f32 %v566, 1.0
      %v574 = vadd.f32 %v568, 1.0
      %v575 = vadd.f32 %v570, 1.0
      %v576 = vadd.f32 %v572, 1.0
      %v577 = vrcp.pop %v573
      %v578 = vmul.f32 1.0, %v577
      %v579 = vrcp.pop %v574
      %v580 = vmul.f32 1.0, %v579
      %v581 = vrcp.pop %v575
      %v582 = vmul.f32 1.0, %v581
      %v583 = vrcp.pop %v576
      %v584 = vmul.f32 1.0, %v583
      %v585 = vmul.f32 %v557, %v578
      %v586 = vmul.f32 %v558, %v580
      %v587 = vmul.f32 %v559, %v582
      %v588 = vmul.f32 %v560, %v584
      %s589 = scalar_lea.vmem [#allocation2], 8
      %vm590 = vcmask 523264
      %591 = vst.msk [vmem:[%s589] sm:$0xff] %vm590, %v585
      %592 = vst.msk [vmem:[%s589 + $0x8] sm:$0xff] %vm590, %v586
      %593 = vst.msk [vmem:[%s589 + $0x10] sm:$0xff] %vm590, %v587
      %594 = vst.msk [vmem:[%s589 + $0x18] sm:$0xff] %vm590, %v588
      %p595 = scmp.gt.s32.totalorder %s26, 0
      %v596 = vld [vmem:[%s492] sm:$0xff]
      %v597 = vmul.f32 %v596, %v545
      %v598 = vadd.f32 %v597, %v555
      %v599 = vxor.u32 %v598, 2147483648
      %v600 = vmul.f32 %v599, 1.442695
      %v601 = vpow.pop %v600
      %v602 = vadd.f32 %v601, 1.0
      %v603 = vrcp.pop %v602
      %v604 = vmul.f32 1.0, %v603
      %v605 = vmul.f32 %v598, %v604
      %s606 = scalar_select %p595, 1, 0
      %v607 = vstv %s606
      %vm608 = vcmp.eq.s32.totalorder %v607, 1
      %v609 = vsel %vm608, %v605, 0.0
      %610 = vst.msk [vmem:[#allocation2] sm:$0xff] %vm590, %v609
      %p611 = scmp.lt.s32.totalorder %s26, 1
      %v612 = vld [vmem:[%s508] sm:$0xff]
      %v613 = vmul.f32 %v612, %v545
      %v614 = vadd.f32 %v613, %v555
      %v615 = vxor.u32 %v614, 2147483648
      %v616 = vmul.f32 %v615, 1.442695
      %v617 = vpow.pop %v616
      %v618 = vadd.f32 %v617, 1.0
      %v619 = vrcp.pop %v618
      %v620 = vmul.f32 1.0, %v619
      %v621 = vmul.f32 %v614, %v620
      %s622 = scalar_select %p611, 1, 0
      %v623 = vstv %s622
      %vm624 = vcmp.eq.s32.totalorder %v623, 1
      %v625 = vsel %vm624, %v621, 0.0
      %s626 = scalar_lea.vmem [#allocation2], 40
      %627 = vst.msk [vmem:[%s626] sm:$0xff] %vm590, %v625
      %v628 = vld [vmem:[#allocation2] sm:$0xff]
      %v629 = vld [vmem:[#allocation2 + $0x8] sm:$0xff]
      %v630 = vld [vmem:[#allocation2 + $0x10] sm:$0xff]
      %v631 = vld [vmem:[#allocation2 + $0x18] sm:$0xff]
      %v632 = vld [vmem:[#allocation2 + $0x20] sm:$0xff]
      %v633 = vld [vmem:[#allocation2 + $0x28] sm:$0xff]
      %v640 = vrot.slane %v628, 7
      %v641 = vrot.slane %v629, 7
      %v642 = vrot.slane %v630, 7
      %v643 = vrot.slane %v631, 7
      %v644 = vrot.slane %v632, 7
      %v645 = vrot.slane %v633, 7
      %vm652 = vcmask 1040384
      %v653 = vsel %vm652, 0.0, %v640
      %v654 = vsel %vm652, 0.0, %v641
      %v655 = vsel %vm652, 0.0, %v642
      %v656 = vsel %vm652, 0.0, %v643
      %v657 = vsel %vm652, 0.0, %v644
      %v658 = vsel %vm652, 0.0, %v645
      %v659 = vsel %vm652, %v640, 0.0
      %v660 = vsel %vm652, %v641, 0.0
      %v661 = vsel %vm652, %v642, 0.0
      %v662 = vsel %vm652, %v643, 0.0
      %v663 = vsel %vm652, %v644, 0.0
      %v664 = vsel %vm652, %v645, 0.0
      %v665 = vld [vmem:[%s6] sm:$0x1]
      %666 = vrot.lane.b32.xlu0 %v628, 64
      %v667 = vpop.permute.xlu0 %666
      %668 = vrot.lane.b32.xlu0 %v629, 64
      %v669 = vpop.permute.xlu0 %668
      %670 = vrot.lane.b32.xlu0 %v630, 64
      %v671 = vpop.permute.xlu0 %670
      %672 = vrot.lane.b32.xlu0 %v631, 64
      %v673 = vpop.permute.xlu0 %672
      %674 = vrot.lane.b32.xlu0 %v632, 64
      %v675 = vpop.permute.xlu0 %674
      %676 = vrot.lane.b32.xlu0 %v633, 64
      %v677 = vpop.permute.xlu0 %676
      %vm696 = vcmask 1045504
      %v697 = vrot.slane %v653, 2
      %v698 = vrot.slane %v659, 2
      %v699 = vsel %vm696, %v697, %v698
      %v700 = vrot.slane %v654, 2
      %v701 = vrot.slane %v660, 2
      %v702 = vsel %vm696, %v700, %v701
      %v703 = vrot.slane %v655, 2
      %v704 = vrot.slane %v661, 2
      %v705 = vsel %vm696, %v703, %v704
      %v706 = vrot.slane %v656, 2
      %v707 = vrot.slane %v662, 2
      %v708 = vsel %vm696, %v706, %v707
      %v709 = vrot.slane %v657, 2
      %v710 = vrot.slane %v663, 2
      %v711 = vsel %vm696, %v709, %v710
      %v712 = vrot.slane %v658, 2
      %v713 = vrot.slane %v664, 2
      %v714 = vsel %vm696, %v712, %v713
      %v715 = vsel %vm590, %v653, %v667
      %v716 = vsel %vm590, %v654, %v669
      %v717 = vsel %vm590, %v655, %v671
      %v718 = vsel %vm590, %v656, %v673
      %v719 = vsel %vm590, %v657, %v675
      %v720 = vsel %vm590, %v658, %v677
      %v721 = vld [vmem:[%s5] sm:$0xff]
      %v722 = vld [vmem:[%s5 + $0x8] sm:$0xff]
      %v723 = vld [vmem:[%s5 + $0x10] sm:$0xff]
      %v724 = vld [vmem:[%s5 + $0x18] sm:$0xff]
      %v725 = vld [vmem:[%s5 + $0x20] sm:$0xff]
      %v726 = vld [vmem:[%s5 + $0x28] sm:$0xff]
      %v727 = vld [vmem:[%s5 + $0x30] sm:$0xff]
      %v728 = vld [vmem:[%s5 + $0x38] sm:$0xff]
      %v729 = vld [vmem:[%s5 + $0x40] sm:$0xff]
      %v730 = vld [vmem:[%s5 + $0x48] sm:$0xff]
      %v731 = vld [vmem:[%s5 + $0x50] sm:$0xff]
      %v732 = vld [vmem:[%s5 + $0x58] sm:$0xff]
      %v733 = vld [vmem:[%s5 + $0x60] sm:$0xff]
      %v734 = vld [vmem:[%s5 + $0x68] sm:$0xff]
      %v735 = vld [vmem:[%s5 + $0x70] sm:$0xff]
      %v736 = vld [vmem:[%s5 + $0x78] sm:$0xff]
      %v737 = vld [vmem:[%s5 + $0x80] sm:$0xff]
      %v738 = vld [vmem:[%s5 + $0x88] sm:$0xff]
      %v739 = vld [vmem:[%s5 + $0x90] sm:$0xff]
      %v740 = vld [vmem:[%s5 + $0x98] sm:$0xff]
      %v741 = vld [vmem:[%s5 + $0xa0] sm:$0xff]
      %v742 = vld [vmem:[%s5 + $0xa8] sm:$0xff]
      %v743 = vld [vmem:[%s5 + $0xb0] sm:$0xff]
      %v744 = vld [vmem:[%s5 + $0xb8] sm:$0xff]
      %s745 = scalar_lea.vmem %s5, 192
      %v746 = vld [vmem:[%s745] sm:$0xff]
      %v747 = vld [vmem:[%s745 + $0x8] sm:$0xff]
      %v748 = vld [vmem:[%s745 + $0x10] sm:$0xff]
      %v749 = vld [vmem:[%s745 + $0x18] sm:$0xff]
      %v750 = vld [vmem:[%s745 + $0x20] sm:$0xff]
      %v751 = vld [vmem:[%s745 + $0x28] sm:$0xff]
      %v752 = vld [vmem:[%s745 + $0x30] sm:$0xff]
      %v753 = vld [vmem:[%s745 + $0x38] sm:$0xff]
      %v754 = vld [vmem:[%s745 + $0x40] sm:$0xff]
      %v755 = vld [vmem:[%s745 + $0x48] sm:$0xff]
      %v756 = vld [vmem:[%s745 + $0x50] sm:$0xff]
      %v757 = vld [vmem:[%s745 + $0x58] sm:$0xff]
      %v758 = vld [vmem:[%s745 + $0x60] sm:$0xff]
      %v759 = vld [vmem:[%s745 + $0x68] sm:$0xff]
      %v760 = vld [vmem:[%s745 + $0x70] sm:$0xff]
      %v761 = vld [vmem:[%s745 + $0x78] sm:$0xff]
      %v762 = vld [vmem:[%s745 + $0x80] sm:$0xff]
      %v763 = vld [vmem:[%s745 + $0x88] sm:$0xff]
      %v764 = vld [vmem:[%s745 + $0x90] sm:$0xff]
      %v765 = vld [vmem:[%s745 + $0x98] sm:$0xff]
      %v766 = vld [vmem:[%s745 + $0xa0] sm:$0xff]
      %v767 = vld [vmem:[%s745 + $0xa8] sm:$0xff]
      %v768 = vld [vmem:[%s745 + $0xb0] sm:$0xff]
      %v769 = vld [vmem:[%s745 + $0xb8] sm:$0xff]
      %v770 = vsel %vm590, %v702, 0
      %v772 = vsel %vm590, %v705, 0
      %v774 = vsel %vm590, %v708, 0
      %v776 = vsel %vm590, %v711, 0
      %778 = vmatprep.subr.mxu0 0.0
      %779 = vmatpush1.msra.mxu0 %v746
      %780 = vmatprep.subr.mxu0 0.0
      %781 = vmatpush1.msra.mxu0 %v747
      %782 = vmatprep.subr.mxu0 0.0
      %783 = vmatpush1.msra.mxu0 %v748
      %784 = vmatprep.subr.mxu0 0.0
      %785 = vmatpush1.msra.mxu0 %v749
      %786 = vmatprep.subr.mxu0 0.0
      %787 = vmatpush1.msra.mxu0 %v750
      %788 = vmatprep.subr.mxu0 0.0
      %789 = vmatpush1.msra.mxu0 %v751
      %790 = vmatprep.subr.mxu0 0.0
      %791 = vmatpush1.msra.mxu0 %v752
      %792 = vmatprep.subr.mxu0 0.0
      %793 = vmatpush1.msra.mxu0 %v753
      %794 = vmatprep.subr.mxu0 0.0
      %795 = vmatpush1.msra.mxu0 %v754
      %796 = vmatprep.subr.mxu0 0.0
      %797 = vmatpush1.msra.mxu0 %v755
      %798 = vmatprep.subr.mxu0 0.0
      %799 = vmatpush1.msra.mxu0 %v756
      %800 = vmatprep.subr.mxu0 0.0
      %801 = vmatpush1.msra.mxu0 %v757
      %802 = vmatprep.subr.mxu0 0.0
      %803 = vmatpush1.msra.mxu0 %v758
      %804 = vmatprep.subr.mxu0 0.0
      %805 = vmatpush1.msra.mxu0 %v759
      %806 = vmatprep.subr.mxu0 0.0
      %807 = vmatpush1.msra.mxu0 %v760
      %808 = vmatprep.subr.mxu0 0.0
      %809 = vmatpush1.msra.mxu0 %v761
      %810 = vmatprep.subr.mxu0 0.0
      %811 = vmatpush1.msra.mxu0 %v762
      %812 = vmatprep.subr.mxu0 0.0
      %813 = vmatpush1.msra.mxu0 %v763
      %814 = vmatprep.subr.mxu0 0.0
      %815 = vmatpush1.msra.mxu0 %v764
      %816 = vmatprep.subr.mxu0 0.0
      %817 = vmatpush1.msra.mxu0 %v765
      %818 = vmatprep.subr.mxu0 0.0
      %819 = vmatpush1.msra.mxu0 %v766
      %820 = vmatprep.subr.mxu0 0.0
      %821 = vmatpush1.msra.mxu0 %v767
      %822 = vmatprep.subr.mxu0 0.0
      %823 = vmatpush1.msra.mxu0 %v768
      %824 = vmatprep.subr.mxu0 0.0
      %825 = vmatpush1.msra.mxu0 %v769
      %826 = vmatprep.subr.mxu0 0.0
      %827 = vmatpush1.msra.mxu0 0.0
      %828 = vmatprep.subr.mxu0 0.0
      %829 = vmatpush1.msra.mxu0 0.0
      %830 = vmatprep.subr.mxu0 0.0
      %831 = vmatpush1.msra.mxu0 0.0
      %832 = vmatprep.subr.mxu0 0.0
      %833 = vmatpush1.msra.mxu0 0.0
      %834 = vmatprep.subr.mxu0 0.0
      %835 = vmatpush1.msra.mxu0 0.0
      %836 = vmatprep.subr.mxu0 0.0
      %837 = vmatpush1.msra.mxu0 0.0
      %838 = vmatprep.subr.mxu0 0.0
      %839 = vmatpush1.msra.mxu0 0.0
      %840 = vmatprep.subr.mxu0 0.0
      %841 = vmatpush1.msra.mxu0 0.0
      %842 = vmatprep.mubr.f32.mxu0 %v770
      %843 = vmatmul.mubr.f32.gmra.mrb[0].mxu0 %v716
      %v844 = vpop.f32.mrb[0].mxu0
      %v845 = vadd.f32 0.0, %v844
      %v846 = vpop.f32.mrb[0].mxu0
      %847 = vmatprep.mubr.f32.mxu0 %v772
      %848 = vmatmul.mubr.f32.gmra.mrb[0].mxu0 %v717
      %v849 = vpop.f32.mrb[0].mxu0
      %v850 = vadd.f32 0.0, %v849
      %v851 = vpop.f32.mrb[0].mxu0
      %852 = vmatprep.mubr.f32.mxu0 %v774
      %853 = vmatmul.mubr.f32.gmra.mrb[0].mxu0 %v718
      %v854 = vpop.f32.mrb[0].mxu0
      %v855 = vadd.f32 0.0, %v854
      %v856 = vpop.f32.mrb[0].mxu0
      %857 = vmatprep.mubr.f32.mxu0 %v776
      %858 = vmatmul.mubr.f32.gmra.mrb[0].mxu0 %v719
      %v859 = vpop.f32.mrb[0].mxu0
      %v860 = vadd.f32 0.0, %v859
      %v861 = vpop.f32.mrb[0].mxu0
      %862 = vdwg.mxu0
      %v863 = vsel %vm590, %v699, 0
      %865 = vmatprep.subr.mxu0 0.0
      %866 = vmatpush1.msra.mxu0 %v721
      %867 = vmatprep.subr.mxu0 0.0
      %868 = vmatpush1.msra.mxu0 %v722
      %869 = vmatprep.subr.mxu0 0.0
      %870 = vmatpush1.msra.mxu0 %v723
      %871 = vmatprep.subr.mxu0 0.0
      %872 = vmatpush1.msra.mxu0 %v724
      %873 = vmatprep.subr.mxu0 0.0
      %874 = vmatpush1.msra.mxu0 %v725
      %875 = vmatprep.subr.mxu0 0.0
      %876 = vmatpush1.msra.mxu0 %v726
      %877 = vmatprep.subr.mxu0 0.0
      %878 = vmatpush1.msra.mxu0 %v727
      %879 = vmatprep.subr.mxu0 0.0
      %880 = vmatpush1.msra.mxu0 %v728
      %881 = vmatprep.subr.mxu0 0.0
      %882 = vmatpush1.msra.mxu0 %v729
      %883 = vmatprep.subr.mxu0 0.0
      %884 = vmatpush1.msra.mxu0 %v730
      %885 = vmatprep.subr.mxu0 0.0
      %886 = vmatpush1.msra.mxu0 %v731
      %887 = vmatprep.subr.mxu0 0.0
      %888 = vmatpush1.msra.mxu0 %v732
      %889 = vmatprep.subr.mxu0 0.0
      %890 = vmatpush1.msra.mxu0 %v733
      %891 = vmatprep.subr.mxu0 0.0
      %892 = vmatpush1.msra.mxu0 %v734
      %893 = vmatprep.subr.mxu0 0.0
      %894 = vmatpush1.msra.mxu0 %v735
      %895 = vmatprep.subr.mxu0 0.0
      %896 = vmatpush1.msra.mxu0 %v736
      %897 = vmatprep.subr.mxu0 0.0
      %898 = vmatpush1.msra.mxu0 %v737
      %899 = vmatprep.subr.mxu0 0.0
      %900 = vmatpush1.msra.mxu0 %v738
      %901 = vmatprep.subr.mxu0 0.0
      %902 = vmatpush1.msra.mxu0 %v739
      %903 = vmatprep.subr.mxu0 0.0
      %904 = vmatpush1.msra.mxu0 %v740
      %905 = vmatprep.subr.mxu0 0.0
      %906 = vmatpush1.msra.mxu0 %v741
      %907 = vmatprep.subr.mxu0 0.0
      %908 = vmatpush1.msra.mxu0 %v742
      %909 = vmatprep.subr.mxu0 0.0
      %910 = vmatpush1.msra.mxu0 %v743
      %911 = vmatprep.subr.mxu0 0.0
      %912 = vmatpush1.msra.mxu0 %v744
      %913 = vmatprep.subr.mxu0 0.0
      %914 = vmatpush1.msra.mxu0 0.0
      %915 = vmatprep.subr.mxu0 0.0
      %916 = vmatpush1.msra.mxu0 0.0
      %917 = vmatprep.subr.mxu0 0.0
      %918 = vmatpush1.msra.mxu0 0.0
      %919 = vmatprep.subr.mxu0 0.0
      %920 = vmatpush1.msra.mxu0 0.0
      %921 = vmatprep.subr.mxu0 0.0
      %922 = vmatpush1.msra.mxu0 0.0
      %923 = vmatprep.subr.mxu0 0.0
      %924 = vmatpush1.msra.mxu0 0.0
      %925 = vmatprep.subr.mxu0 0.0
      %926 = vmatpush1.msra.mxu0 0.0
      %927 = vmatprep.subr.mxu0 0.0
      %928 = vmatpush1.msra.mxu0 0.0
      %929 = vmatprep.mubr.f32.mxu0 %v863
      %930 = vmatmul.mubr.f32.gmra.mrb[0].mxu0 %v715
      %v931 = vpop.f32.mrb[0].mxu0
      %v932 = vadd.f32 %v845, %v931
      %v933 = vpop.f32.mrb[0].mxu0
      %934 = vmatprep.mubr.f32.mxu0 %v770
      %935 = vmatmul.mubr.f32.gmra.mrb[0].mxu0 %v716
      %v936 = vpop.f32.mrb[0].mxu0
      %v937 = vadd.f32 %v850, %v936
      %v938 = vpop.f32.mrb[0].mxu0
      %939 = vmatprep.mubr.f32.mxu0 %v772
      %940 = vmatmul.mubr.f32.gmra.mrb[0].mxu0 %v717
      %v941 = vpop.f32.mrb[0].mxu0
      %v942 = vadd.f32 %v855, %v941
      %v943 = vpop.f32.mrb[0].mxu0
      %944 = vmatprep.mubr.f32.mxu0 %v774
      %945 = vmatmul.mubr.f32.gmra.mrb[0].mxu0 %v718
      %v946 = vpop.f32.mrb[0].mxu0
      %v947 = vadd.f32 %v860, %v946
      %v948 = vpop.f32.mrb[0].mxu0
      %949 = vdwg.mxu0
      %s950 = scalar_lea.vmem %s5, 384
      %v951 = vld [vmem:[%s950] sm:$0xff]
      %v952 = vld [vmem:[%s950 + $0x8] sm:$0xff]
      %v953 = vld [vmem:[%s950 + $0x10] sm:$0xff]
      %v954 = vld [vmem:[%s950 + $0x18] sm:$0xff]
      %v955 = vld [vmem:[%s950 + $0x20] sm:$0xff]
      %v956 = vld [vmem:[%s950 + $0x28] sm:$0xff]
      %v957 = vld [vmem:[%s950 + $0x30] sm:$0xff]
      %v958 = vld [vmem:[%s950 + $0x38] sm:$0xff]
      %v959 = vld [vmem:[%s950 + $0x40] sm:$0xff]
      %v960 = vld [vmem:[%s950 + $0x48] sm:$0xff]
      %v961 = vld [vmem:[%s950 + $0x50] sm:$0xff]
      %v962 = vld [vmem:[%s950 + $0x58] sm:$0xff]
      %v963 = vld [vmem:[%s950 + $0x60] sm:$0xff]
      %v964 = vld [vmem:[%s950 + $0x68] sm:$0xff]
      %v965 = vld [vmem:[%s950 + $0x70] sm:$0xff]
      %v966 = vld [vmem:[%s950 + $0x78] sm:$0xff]
      %v967 = vld [vmem:[%s950 + $0x80] sm:$0xff]
      %v968 = vld [vmem:[%s950 + $0x88] sm:$0xff]
      %v969 = vld [vmem:[%s950 + $0x90] sm:$0xff]
      %v970 = vld [vmem:[%s950 + $0x98] sm:$0xff]
      %v971 = vld [vmem:[%s950 + $0xa0] sm:$0xff]
      %v972 = vld [vmem:[%s950 + $0xa8] sm:$0xff]
      %v973 = vld [vmem:[%s950 + $0xb0] sm:$0xff]
      %v974 = vld [vmem:[%s950 + $0xb8] sm:$0xff]
      %v975 = vsel %vm590, %v714, 0
      %977 = vmatprep.subr.mxu0 0.0
      %978 = vmatpush1.msra.mxu0 %v951
      %979 = vmatprep.subr.mxu0 0.0
      %980 = vmatpush1.msra.mxu0 %v952
      %981 = vmatprep.subr.mxu0 0.0
      %982 = vmatpush1.msra.mxu0 %v953
      %983 = vmatprep.subr.mxu0 0.0
      %984 = vmatpush1.msra.mxu0 %v954
      %985 = vmatprep.subr.mxu0 0.0
      %986 = vmatpush1.msra.mxu0 %v955
      %987 = vmatprep.subr.mxu0 0.0
      %988 = vmatpush1.msra.mxu0 %v956
      %989 = vmatprep.subr.mxu0 0.0
      %990 = vmatpush1.msra.mxu0 %v957
      %991 = vmatprep.subr.mxu0 0.0
      %992 = vmatpush1.msra.mxu0 %v958
      %993 = vmatprep.subr.mxu0 0.0
      %994 = vmatpush1.msra.mxu0 %v959
      %995 = vmatprep.subr.mxu0 0.0
      %996 = vmatpush1.msra.mxu0 %v960
      %997 = vmatprep.subr.mxu0 0.0
      %998 = vmatpush1.msra.mxu0 %v961
      %999 = vmatprep.subr.mxu0 0.0
      %1000 = vmatpush1.msra.mxu0 %v962
      %1001 = vmatprep.subr.mxu0 0.0
      %1002 = vmatpush1.msra.mxu0 %v963
      %1003 = vmatprep.subr.mxu0 0.0
      %1004 = vmatpush1.msra.mxu0 %v964
      %1005 = vmatprep.subr.mxu0 0.0
      %1006 = vmatpush1.msra.mxu0 %v965
      %1007 = vmatprep.subr.mxu0 0.0
      %1008 = vmatpush1.msra.mxu0 %v966
      %1009 = vmatprep.subr.mxu0 0.0
      %1010 = vmatpush1.msra.mxu0 %v967
      %1011 = vmatprep.subr.mxu0 0.0
      %1012 = vmatpush1.msra.mxu0 %v968
      %1013 = vmatprep.subr.mxu0 0.0
      %1014 = vmatpush1.msra.mxu0 %v969
      %1015 = vmatprep.subr.mxu0 0.0
      %1016 = vmatpush1.msra.mxu0 %v970
      %1017 = vmatprep.subr.mxu0 0.0
      %1018 = vmatpush1.msra.mxu0 %v971
      %1019 = vmatprep.subr.mxu0 0.0
      %1020 = vmatpush1.msra.mxu0 %v972
      %1021 = vmatprep.subr.mxu0 0.0
      %1022 = vmatpush1.msra.mxu0 %v973
      %1023 = vmatprep.subr.mxu0 0.0
      %1024 = vmatpush1.msra.mxu0 %v974
      %1025 = vmatprep.subr.mxu0 0.0
      %1026 = vmatpush1.msra.mxu0 0.0
      %1027 = vmatprep.subr.mxu0 0.0
      %1028 = vmatpush1.msra.mxu0 0.0
      %1029 = vmatprep.subr.mxu0 0.0
      %1030 = vmatpush1.msra.mxu0 0.0
      %1031 = vmatprep.subr.mxu0 0.0
      %1032 = vmatpush1.msra.mxu0 0.0
      %1033 = vmatprep.subr.mxu0 0.0
      %1034 = vmatpush1.msra.mxu0 0.0
      %1035 = vmatprep.subr.mxu0 0.0
      %1036 = vmatpush1.msra.mxu0 0.0
      %1037 = vmatprep.subr.mxu0 0.0
      %1038 = vmatpush1.msra.mxu0 0.0
      %1039 = vmatprep.subr.mxu0 0.0
      %1040 = vmatpush1.msra.mxu0 0.0
      %1041 = vmatprep.mubr.f32.mxu0 %v772
      %1042 = vmatmul.mubr.f32.gmra.mrb[0].mxu0 %v717
      %v1043 = vpop.f32.mrb[0].mxu0
      %v1044 = vadd.f32 0.0, %v1043
      %v1045 = vpop.f32.mrb[0].mxu0
      %1046 = vmatprep.mubr.f32.mxu0 %v774
      %1047 = vmatmul.mubr.f32.gmra.mrb[0].mxu0 %v718
      %v1048 = vpop.f32.mrb[0].mxu0
      %v1049 = vadd.f32 0.0, %v1048
      %v1050 = vpop.f32.mrb[0].mxu0
      %1051 = vmatprep.mubr.f32.mxu0 %v776
      %1052 = vmatmul.mubr.f32.gmra.mrb[0].mxu0 %v719
      %v1053 = vpop.f32.mrb[0].mxu0
      %v1054 = vadd.f32 0.0, %v1053
      %v1055 = vpop.f32.mrb[0].mxu0
      %1056 = vmatprep.mubr.f32.mxu0 %v975
      %1057 = vmatmul.mubr.f32.gmra.mrb[0].mxu0 %v720
      %v1058 = vpop.f32.mrb[0].mxu0
      %v1059 = vadd.f32 0.0, %v1058
      %v1060 = vpop.f32.mrb[0].mxu0
      %1061 = vdwg.mxu0
      %v1062 = vadd.f32 %v932, %v1044
      %v1063 = vadd.f32 %v937, %v1049
      %v1064 = vadd.f32 %v942, %v1054
      %v1065 = vadd.f32 %v947, %v1059
      %v1067 = vlaneseq
      %v1068 = vshrl.u32 %v1067, 7
      %v1069 = vsub.s32 0, %v1068
      %v1070 = vrot.slane %v665, %v1069
      %v1072 = vadd.f32 %v1062, %v1070
      %v1073 = vadd.f32 %v1063, %v1070
      %v1074 = vadd.f32 %v1064, %v1070
      %v1075 = vadd.f32 %v1065, %v1070
      %p1076 = scmp.eq.s32.totalorder %s26, 0
      // Predicated region
      $region49: #{pare_up_decoder_block_2d.5} parent=47 // pred_check
        %p1077 = pneg %p1076
      $region50: #{pare_up_decoder_block_2d.5} parent=47 // pred_check_branch
        %1079 = sbr.rel (%p1077) target = $region52
      $region51: #{pare_up_decoder_block_2d.5} parent=47 // pred_region
        %vm1080 = vcmask 253952
        %1081 = vst.msk [vmem:[%s531] sm:$0x1] %vm1080, 0.0
        %1082 = vst.msk [vmem:[%s534] sm:$0x1] %vm1080, 0.0
      $region52: #{pare_up_decoder_block_2d.5} parent=47 // pred_fallthru
        _
      %v1083 = vld [vmem:[%s531] sm:$0x1]
      %vm1084 = vcmask 261120
      %v1085 = vsel %vm1084, %v1072, 0.0
      %v1086 = vsel %vm1084, %v1073, 0.0
      %v1087 = vadd.f32 %v1085, %v1086
      %v1088 = vsel %vm1084, %v1074, 0.0
      %v1089 = vadd.f32 %v1087, %v1088
      %v1090 = vsel %vm1084, %v1075, 0.0
      %v1091 = vadd.f32 %v1089, %v1090
      %v1092 = vrot.slane %v1091, 4
      %v1093 = vadd.f32 %v1091, %v1092
      %v1094 = vrot.slane %v1093, 2
      %v1095 = vadd.f32 %v1093, %v1094
      %v1096 = vrot.slane %v1095, 1
      %v1097 = vadd.f32 %v1095, %v1096
      %v1098 = vadd.f32 %v1083, %v1097
      %vm1099 = vcmask 253952
      %1100 = vst.msk [vmem:[%s531] sm:$0x1] %vm1099, %v1098
      %v1101 = vld [vmem:[%s534] sm:$0x1]
      %v1102 = vmul.f32 %v1072, %v1072
      %v1103 = vmul.f32 %v1073, %v1073
      %v1104 = vmul.f32 %v1074, %v1074
      %v1105 = vmul.f32 %v1075, %v1075
      %v1106 = vsel %vm1084, %v1102, 0.0
      %v1107 = vsel %vm1084, %v1103, 0.0
      %v1108 = vadd.f32 %v1106, %v1107
      %v1109 = vsel %vm1084, %v1104, 0.0
      %v1110 = vadd.f32 %v1108, %v1109
      %v1111 = vsel %vm1084, %v1105, 0.0
      %v1112 = vadd.f32 %v1110, %v1111
      %v1113 = vrot.slane %v1112, 4
      %v1114 = vadd.f32 %v1112, %v1113
      %v1115 = vrot.slane %v1114, 2
      %v1116 = vadd.f32 %v1114, %v1115
      %v1117 = vrot.slane %v1116, 1
      %v1118 = vadd.f32 %v1116, %v1117
      %v1119 = vadd.f32 %v1101, %v1118
      %1120 = vst.msk [vmem:[%s534] sm:$0x1] %vm1099, %v1119
      %1121 = vst.msk [vmem:[%s527] sm:$0xff] %vm1084, %v1072
      %1122 = vst.msk [vmem:[%s527 + $0x8] sm:$0xff] %vm1084, %v1073
      %1123 = vst.msk [vmem:[%s527 + $0x10] sm:$0xff] %vm1084, %v1074
      %1124 = vst.msk [vmem:[%s527 + $0x18] sm:$0xff] %vm1084, %v1075
      %s1125 = smul.u32 4, %s26
      %p1126 = scmp.lt.s32.totalorder %s25, 1
      %s1127 = scalar_select %p1126, %s25, 1
      %p1128 = scmp.lt.s32.totalorder %s1125, 7
      %s1129 = scalar_select %p1128, %s1125, 7
      %s1130 = smul.addr %s1127, 8
      %s1131 = sadd.s32 %s1129, %s1130
      %s1132 = smul.addr %s1131, 8
      %s1133 = scalar_lea.vmem %s7, %s1132
      %p1134 = scmp.lt.s32.totalorder %s25, 1
      %s1135 = scalar_select %p1134, %s25, 1
      %s1136 = scalar_lea.vmem %s8, %s1135
      %p1137 = scmp.lt.s32.totalorder %s25, 1
      %s1138 = scalar_select %p1137, %s25, 1
      %s1139 = scalar_lea.vmem %s9, %s1138
      // Predicated region
      $region53: #{pare_up_decoder_block_2d.5} parent=47 // pred_check
        %p1140 = pneg %p247
      $region54: #{pare_up_decoder_block_2d.5} parent=47 // pred_check_branch
        %1142 = sbr.rel (%p1140) target = $region56
      $region55: #{pare_up_decoder_block_2d.5} parent=47 // pred_region
        %s1143 = smul.u32 4, %s26
      $region56: #{pare_up_decoder_block_2d.5} parent=47 // pred_fallthru
        _
      // Predicated region
      $region57: #{pare_up_decoder_block_2d.5} parent=47 // pred_check
        %p1144 = pneg %p273
      $region58: #{pare_up_decoder_block_2d.5} parent=47 // pred_check_branch
        %1146 = sbr.rel (%p1144) target = $region60
      $region59: #{pare_up_decoder_block_2d.5} parent=47 // pred_region
        _
      $region60: #{pare_up_decoder_block_2d.5} parent=47 // pred_fallthru
        _
      // Predicated region
      $region61: #{pare_up_decoder_block_2d.5} parent=47 // pred_check
        %p1147 = pneg %p299
      $region62: #{pare_up_decoder_block_2d.5} parent=47 // pred_check_branch
        %1149 = sbr.rel (%p1147) target = $region64
      $region63: #{pare_up_decoder_block_2d.5} parent=47 // pred_region
        _
      $region64: #{pare_up_decoder_block_2d.5} parent=47 // pred_fallthru
        _
    $region48: #{pare_up_decoder_block_2d.5} parent=5 // pred_fallthru
      _
    %p1150 = scmp.le.s32.totalorder 2, %s16
    // Predicated region
    $region65: #{pare_up_decoder_block_2d.5} parent=5 // pred_check
      %p1151 = pneg %p1150
    $region66: #{pare_up_decoder_block_2d.5} parent=5 // pred_check_branch
      %1153 = sbr.rel (%p1151) target = $region68
    $region67: #{pare_up_decoder_block_2d.5} parent=5 // pred_region
      %s1154 = ssub.s32 %s16, 2
      // Predicated region
      $region69: #{pare_up_decoder_block_2d.5} parent=67 // pred_check
        %p1155 = pneg %p253
      $region70: #{pare_up_decoder_block_2d.5} parent=67 // pred_check_branch
        %1157 = sbr.rel (%p1155) target = $region72
      $region71: #{pare_up_decoder_block_2d.5} parent=67 // pred_region
        %s1158 = smul.u32 4, %s28
        %p1159 = scmp.lt.s32.totalorder %s27, 1
        %s1160 = scalar_select %p1159, %s27, 1
        %p1161 = scmp.lt.s32.totalorder %s1158, 7
        %s1162 = scalar_select %p1161, %s1158, 7
        %s1163 = smul.addr %s1160, 8
        %s1164 = sadd.s32 %s1162, %s1163
        %s1165 = smul.addr %s1164, 8
        %s1166 = scalar_lea.vmem %s7, %s1165
      $region72: #{pare_up_decoder_block_2d.5} parent=67 // pred_fallthru
        _
      // Predicated region
      $region73: #{pare_up_decoder_block_2d.5} parent=67 // pred_check
        %p1167 = pneg %p279
      $region74: #{pare_up_decoder_block_2d.5} parent=67 // pred_check_branch
        %1169 = sbr.rel (%p1167) target = $region76
      $region75: #{pare_up_decoder_block_2d.5} parent=67 // pred_region
        %p1170 = scmp.lt.s32.totalorder %s27, 1
        %s1171 = scalar_select %p1170, %s27, 1
        %s1172 = scalar_lea.vmem %s8, %s1171
      $region76: #{pare_up_decoder_block_2d.5} parent=67 // pred_fallthru
        _
      // Predicated region
      $region77: #{pare_up_decoder_block_2d.5} parent=67 // pred_check
        %p1173 = pneg %p305
      $region78: #{pare_up_decoder_block_2d.5} parent=67 // pred_check_branch
        %1175 = sbr.rel (%p1173) target = $region80
      $region79: #{pare_up_decoder_block_2d.5} parent=67 // pred_region
        %p1176 = scmp.lt.s32.totalorder %s27, 1
        %s1177 = scalar_select %p1176, %s27, 1
        %s1178 = scalar_lea.vmem %s9, %s1177
      $region80: #{pare_up_decoder_block_2d.5} parent=67 // pred_fallthru
        _
    $region68: #{pare_up_decoder_block_2d.5} parent=5 // pred_fallthru
      _
  $region6: #{pare_up_decoder_block_2d.5} parent=0 // loop_footer
    %s20 = sadd.s32 1, %s16
  $region7: #{pare_up_decoder_block_2d.5} parent=0 // loop_footer_branch
    %15 = sbr.rel target = $region3
  $region8: #{pare_up_decoder_block_2d.5} parent=0 // loop_exit
    _

// kernel: pare_up_decoder_block_2d.6
$region0: #{pare_up_decoder_block_2d.6}
  #allocation0 [shape = 'u32[]', space=smem, size = 0x4, offset = 0x4, fixed_abs, tag = 'smem constant byte address 0x4 - core index']
  #allocation1 [shape = 'u32[144,128]{1,0:T(1,128)}', space=vmem, size = 0x12000, scoped, tag = 'internal scratch']
  #allocation2 [shape = 'f32[6,8,32]{2,1,0:T(8,128)}', space=vmem, size = 0x6000, scoped, tag = 'scratch operand']
  %s0 = inlined_call_operand.vmem [shape: f32[2,8,8,32], index: 0, kind: input, shape index: {}, may-alias: {0,1,2}]
  %s1 = inlined_call_operand.vmem [shape: f32[2,8,8,32], index: 1, kind: input, shape index: {}, may-alias: {0,1,2}]
  %s2 = inlined_call_operand.vmem [shape: f32[2,8,8,32], index: 2, kind: input, shape index: {}, may-alias: {0,1,2}]
  %s3 = inlined_call_operand.vmem [shape: f32[2,1,32], index: 3, kind: input, shape index: {}]
  %s4 = inlined_call_operand.vmem [shape: f32[2,1,32], index: 4, kind: input, shape index: {}]
  %s5 = inlined_call_operand.vmem [shape: f32[3,96,32], index: 5, kind: input, shape index: {}]
  %s6 = inlined_call_operand.vmem [shape: f32[1,32], index: 6, kind: input, shape index: {}]
  %s7 = inlined_call_operand.vmem [shape: f32[2,8,8,64], index: 7, kind: input, shape index: {}]
  %s8 = inlined_call_operand.vmem [shape: f32[64,32], index: 8, kind: input, shape index: {}]
  %s9 = inlined_call_operand.vmem [shape: f32[1,32], index: 9, kind: input, shape index: {}]
  %s10 = inlined_call_operand.vmem [shape: f32[2,8,8,32], index: 10, kind: output, shape index: {}]
  %s11 = sld [smem:[#allocation0]]
  $region73: #{pare_up_decoder_block_2d.6} parent=0
    _
  %s13 = ssub.s32 1, %s11
  %s14 = scalar_select 0, %s13, %s11
  loop: start=0, step=1, limit=6
  $region2: #{pare_up_decoder_block_2d.6} parent=0 // loop_pre_header
    _
  $region3: #{pare_up_decoder_block_2d.6} parent=0 // loop_header
    %s16 = sphi 0, %s20
    %p17 = scmp.ge.s32.totalorder %s16, 6
    %s23 = sphi 0, %s35
    %s24 = sphi 0, %s31
    %s25 = sphi 0, %s23
    %s26 = sphi 0, %s24
    %s27 = sphi 0, %s25
    %s28 = sphi 0, %s26
    %s40 = sphi 0, %s42
    %s43 = sphi 0, %s40
    %s44 = sphi 0, %s43
    %s60 = sphi 0, %s44
    %s76 = sphi 0, %s78
    %s79 = sphi 0, %s76
    %s80 = sphi 0, %s79
    %s96 = sphi 0, %s80
    %s112 = sphi 0, %s114
    %s115 = sphi 0, %s112
    %s116 = sphi 0, %s115
    %s132 = sphi 0, %s116
    %s138 = sphi 0, %s140
    %s141 = sphi 0, %s138
    %s142 = sphi 0, %s141
    %s158 = sphi 0, %s142
    %s164 = sphi 0, %s166
    %s167 = sphi 0, %s164
    %s168 = sphi 0, %s167
    %s184 = sphi 0, %s168
    %s188 = sphi 0, %s188
    %s190 = sphi 0, %s188
    %s191 = sphi 0, %s190
    %s205 = sphi 0, %s191
    %s209 = sphi 0, %s209
    %s211 = sphi 0, %s209
    %s212 = sphi 0, %s211
    %s226 = sphi 0, %s212
    %s234 = sphi 0, %s236
    %s237 = sphi 0, %s234
    %s238 = sphi 0, %s237
    %s254 = sphi 0, %s238
    %s258 = sphi 0, %s258
    %s260 = sphi 0, %s258
    %s261 = sphi 0, %s260
    %s275 = sphi 0, %s261
    %s279 = sphi 0, %s279
    %s281 = sphi 0, %s279
    %s282 = sphi 0, %s281
    %s296 = sphi 0, %s282
    %s304 = sphi 0, %s306
    %s307 = sphi 0, %s304
    %s308 = sphi 0, %s307
    %s324 = sphi 0, %s308
  $region4: #{pare_up_decoder_block_2d.6} parent=0 // loop_header_branch
    %19 = sbr.rel (%p17) target = $region8
  $region5: #{pare_up_decoder_block_2d.6} parent=0 // loop_body
    %s21 = ssub.s32 %s16, 1
    %s22 = ssub.s32 %s16, 2
    %s29 = sadd.s32 1, %s24
    %p30 = scmp.ge.s32.totalorder %s29, 2
    %s31 = scalar_select %p30, 0, %s29
    %s32 = sadd.s32 1, %s23
    %s33 = scalar_select %p30, %s32, %s23
    %p34 = scmp.ge.s32.totalorder %s33, 2
    %s35 = scalar_select %p34, 0, %s33
    %s36 = ssub.s32 %s23, %s35
    %s37 = ssub.s32 %s24, %s31
    %s38 = sor.u32 %s36, %s37
    %p39 = scmp.eq.s32.totalorder %s38, 0
    %s41 = sadd.s32 %s40, 1
    %s42 = scalar_select %p39, %s40, %s41
    %p45 = pneg %p39
    %p46 = scmp.eq.s32.totalorder %s16, 3
    %p47 = por %p45, %p46
    %p48 = scmp.ne.s32.totalorder %s40, %s43
    %p49 = scmp.eq.s32.totalorder %s16, 0
    %p50 = por %p48, %p49
    %p51 = scmp.ne.s32.totalorder %s40, %s43
    %p52 = scmp.eq.s32.totalorder %s21, 3
    %p53 = por %p51, %p52
    %p54 = scmp.ne.s32.totalorder %s43, %s44
    %p55 = scmp.eq.s32.totalorder %s21, 0
    %p56 = por %p54, %p55
    %p57 = scmp.ne.s32.totalorder %s43, %s44
    %p58 = scmp.eq.s32.totalorder %s22, 3
    %p59 = por %p57, %p58
    %p61 = scmp.ne.s32.totalorder %s44, %s60
    %p62 = scmp.eq.s32.totalorder %s22, 0
    %p63 = por %p61, %p62
    %s64 = smul.u32 %s24, 4
    %s65 = ssub.s32 %s64, 1
    %p66 = scmp.gt.s32.totalorder %s65, 0
    %s67 = scalar_select %p66, %s65, 0
    %s68 = smul.u32 %s31, 4
    %s69 = ssub.s32 %s68, 1
    %p70 = scmp.gt.s32.totalorder %s69, 0
    %s71 = scalar_select %p70, %s69, 0
    %s72 = ssub.s32 %s23, %s35
    %s73 = ssub.s32 %s67, %s71
    %s74 = sor.u32 %s72, %s73
    %p75 = scmp.eq.s32.totalorder %s74, 0
    %s77 = sadd.s32 %s76, 1
    %s78 = scalar_select %p75, %s76, %s77
    %p81 = pneg %p75
    %p82 = scmp.eq.s32.totalorder %s16, 3
    %p83 = por %p81, %p82
    %p84 = scmp.ne.s32.totalorder %s76, %s79
    %p85 = scmp.eq.s32.totalorder %s16, 0
    %p86 = por %p84, %p85
    %p87 = scmp.ne.s32.totalorder %s76, %s79
    %p88 = scmp.eq.s32.totalorder %s21, 3
    %p89 = por %p87, %p88
    %p90 = scmp.ne.s32.totalorder %s79, %s80
    %p91 = scmp.eq.s32.totalorder %s21, 0
    %p92 = por %p90, %p91
    %p93 = scmp.ne.s32.totalorder %s79, %s80
    %p94 = scmp.eq.s32.totalorder %s22, 3
    %p95 = por %p93, %p94
    %p97 = scmp.ne.s32.totalorder %s80, %s96
    %p98 = scmp.eq.s32.totalorder %s22, 0
    %p99 = por %p97, %p98
    %s100 = smul.u32 %s24, 4
    %s101 = sadd.s32 %s100, 4
    %p102 = scmp.lt.s32.totalorder %s101, 7
    %s103 = scalar_select %p102, %s101, 7
    %s104 = smul.u32 %s31, 4
    %s105 = sadd.s32 %s104, 4
    %p106 = scmp.lt.s32.totalorder %s105, 7
    %s107 = scalar_select %p106, %s105, 7
    %s108 = ssub.s32 %s23, %s35
    %s109 = ssub.s32 %s103, %s107
    %s110 = sor.u32 %s108, %s109
    %p111 = scmp.eq.s32.totalorder %s110, 0
    %s113 = sadd.s32 %s112, 1
    %s114 = scalar_select %p111, %s112, %s113
    %p117 = pneg %p111
    %p118 = scmp.eq.s32.totalorder %s16, 3
    %p119 = por %p117, %p118
    %p120 = scmp.ne.s32.totalorder %s112, %s115
    %p121 = scmp.eq.s32.totalorder %s16, 0
    %p122 = por %p120, %p121
    %p123 = scmp.ne.s32.totalorder %s112, %s115
    %p124 = scmp.eq.s32.totalorder %s21, 3
    %p125 = por %p123, %p124
    %p126 = scmp.ne.s32.totalorder %s115, %s116
    %p127 = scmp.eq.s32.totalorder %s21, 0
    %p128 = por %p126, %p127
    %p129 = scmp.ne.s32.totalorder %s115, %s116
    %p130 = scmp.eq.s32.totalorder %s22, 3
    %p131 = por %p129, %p130
    %p133 = scmp.ne.s32.totalorder %s116, %s132
    %p134 = scmp.eq.s32.totalorder %s22, 0
    %p135 = por %p133, %p134
    %s136 = ssub.s32 %s23, %s35
    %p137 = scmp.eq.s32.totalorder %s136, 0
    %s139 = sadd.s32 %s138, 1
    %s140 = scalar_select %p137, %s138, %s139
    %p143 = pneg %p137
    %p144 = scmp.eq.s32.totalorder %s16, 3
    %p145 = por %p143, %p144
    %p146 = scmp.ne.s32.totalorder %s138, %s141
    %p147 = scmp.eq.s32.totalorder %s16, 0
    %p148 = por %p146, %p147
    %p149 = scmp.ne.s32.totalorder %s138, %s141
    %p150 = scmp.eq.s32.totalorder %s21, 3
    %p151 = por %p149, %p150
    %p152 = scmp.ne.s32.totalorder %s141, %s142
    %p153 = scmp.eq.s32.totalorder %s21, 0
    %p154 = por %p152, %p153
    %p155 = scmp.ne.s32.totalorder %s141, %s142
    %p156 = scmp.eq.s32.totalorder %s22, 3
    %p157 = por %p155, %p156
    %p159 = scmp.ne.s32.totalorder %s142, %s158
    %p160 = scmp.eq.s32.totalorder %s22, 0
    %p161 = por %p159, %p160
    %s162 = ssub.s32 %s23, %s35
    %p163 = scmp.eq.s32.totalorder %s162, 0
    %s165 = sadd.s32 %s164, 1
    %s166 = scalar_select %p163, %s164, %s165
    %p169 = pneg %p163
    %p170 = scmp.eq.s32.totalorder %s16, 3
    %p171 = por %p169, %p170
    %p172 = scmp.ne.s32.totalorder %s164, %s167
    %p173 = scmp.eq.s32.totalorder %s16, 0
    %p174 = por %p172, %p173
    %p175 = scmp.ne.s32.totalorder %s164, %s167
    %p176 = scmp.eq.s32.totalorder %s21, 3
    %p177 = por %p175, %p176
    %p178 = scmp.ne.s32.totalorder %s167, %s168
    %p179 = scmp.eq.s32.totalorder %s21, 0
    %p180 = por %p178, %p179
    %p181 = scmp.ne.s32.totalorder %s167, %s168
    %p182 = scmp.eq.s32.totalorder %s22, 3
    %p183 = por %p181, %p182
    %p185 = scmp.ne.s32.totalorder %s168, %s184
    %p186 = scmp.eq.s32.totalorder %s22, 0
    %p187 = por %p185, %p186
    %s189 = sadd.s32 %s188, 1
    %p192 = scmp.eq.s32.totalorder %s16, 3
    %p193 = scmp.ne.s32.totalorder %s188, %s190
    %p194 = scmp.eq.s32.totalorder %s16, 0
    %p195 = por %p193, %p194
    %p196 = scmp.ne.s32.totalorder %s188, %s190
    %p197 = scmp.eq.s32.totalorder %s21, 3
    %p198 = por %p196, %p197
    %p199 = scmp.ne.s32.totalorder %s190, %s191
    %p200 = scmp.eq.s32.totalorder %s21, 0
    %p201 = por %p199, %p200
    %p202 = scmp.ne.s32.totalorder %s190, %s191
    %p203 = scmp.eq.s32.totalorder %s22, 3
    %p204 = por %p202, %p203
    %p206 = scmp.ne.s32.totalorder %s191, %s205
    %p207 = scmp.eq.s32.totalorder %s22, 0
    %p208 = por %p206, %p207
    %s210 = sadd.s32 %s209, 1
    %p213 = scmp.eq.s32.totalorder %s16, 3
    %p214 = scmp.ne.s32.totalorder %s209, %s211
    %p215 = scmp.eq.s32.totalorder %s16, 0
    %p216 = por %p214, %p215
    %p217 = scmp.ne.s32.totalorder %s209, %s211
    %p218 = scmp.eq.s32.totalorder %s21, 3
    %p219 = por %p217, %p218
    %p220 = scmp.ne.s32.totalorder %s211, %s212
    %p221 = scmp.eq.s32.totalorder %s21, 0
    %p222 = por %p220, %p221
    %p223 = scmp.ne.s32.totalorder %s211, %s212
    %p224 = scmp.eq.s32.totalorder %s22, 3
    %p225 = por %p223, %p224
    %p227 = scmp.ne.s32.totalorder %s212, %s226
    %p228 = scmp.eq.s32.totalorder %s22, 0
    %p229 = por %p227, %p228
    %s230 = ssub.s32 %s23, %s35
    %s231 = ssub.s32 %s24, %s31
    %s232 = sor.u32 %s230, %s231
    %p233 = scmp.eq.s32.totalorder %s232, 0
    %s235 = sadd.s32 %s234, 1
    %s236 = scalar_select %p233, %s234, %s235
    %p239 = pneg %p233
    %p240 = scmp.eq.s32.totalorder %s16, 3
    %p241 = por %p239, %p240
    %p242 = scmp.ne.s32.totalorder %s234, %s237
    %p243 = scmp.eq.s32.totalorder %s16, 0
    %p244 = por %p242, %p243
    %p245 = scmp.ne.s32.totalorder %s234, %s237
    %p246 = scmp.eq.s32.totalorder %s21, 3
    %p247 = por %p245, %p246
    %p248 = scmp.ne.s32.totalorder %s237, %s238
    %p249 = scmp.eq.s32.totalorder %s21, 0
    %p250 = por %p248, %p249
    %p251 = scmp.ne.s32.totalorder %s237, %s238
    %p252 = scmp.eq.s32.totalorder %s22, 3
    %p253 = por %p251, %p252
    %p255 = scmp.ne.s32.totalorder %s238, %s254
    %p256 = scmp.eq.s32.totalorder %s22, 0
    %p257 = por %p255, %p256
    %s259 = sadd.s32 %s258, 1
    %p262 = scmp.eq.s32.totalorder %s16, 3
    %p263 = scmp.ne.s32.totalorder %s258, %s260
    %p264 = scmp.eq.s32.totalorder %s16, 0
    %p265 = por %p263, %p264
    %p266 = scmp.ne.s32.totalorder %s258, %s260
    %p267 = scmp.eq.s32.totalorder %s21, 3
    %p268 = por %p266, %p267
    %p269 = scmp.ne.s32.totalorder %s260, %s261
    %p270 = scmp.eq.s32.totalorder %s21, 0
    %p271 = por %p269, %p270
    %p272 = scmp.ne.s32.totalorder %s260, %s261
    %p273 = scmp.eq.s32.totalorder %s22, 3
    %p274 = por %p272, %p273
    %p276 = scmp.ne.s32.totalorder %s261, %s275
    %p277 = scmp.eq.s32.totalorder %s22, 0
    %p278 = por %p276, %p277
    %s280 = sadd.s32 %s279, 1
    %p283 = scmp.eq.s32.totalorder %s16, 3
    %p284 = scmp.ne.s32.totalorder %s279, %s281
    %p285 = scmp.eq.s32.totalorder %s16, 0
    %p286 = por %p284, %p285
    %p287 = scmp.ne.s32.totalorder %s279, %s281
    %p288 = scmp.eq.s32.totalorder %s21, 3
    %p289 = por %p287, %p288
    %p290 = scmp.ne.s32.totalorder %s281, %s282
    %p291 = scmp.eq.s32.totalorder %s21, 0
    %p292 = por %p290, %p291
    %p293 = scmp.ne.s32.totalorder %s281, %s282
    %p294 = scmp.eq.s32.totalorder %s22, 3
    %p295 = por %p293, %p294
    %p297 = scmp.ne.s32.totalorder %s282, %s296
    %p298 = scmp.eq.s32.totalorder %s22, 0
    %p299 = por %p297, %p298
    %s300 = ssub.s32 %s23, %s35
    %s301 = ssub.s32 %s24, %s31
    %s302 = sor.u32 %s300, %s301
    %p303 = scmp.eq.s32.totalorder %s302, 0
    %s305 = sadd.s32 %s304, 1
    %s306 = scalar_select %p303, %s304, %s305
    %p309 = pneg %p303
    %p310 = scmp.eq.s32.totalorder %s16, 3
    %p311 = por %p309, %p310
    %p312 = scmp.ne.s32.totalorder %s304, %s307
    %p313 = scmp.eq.s32.totalorder %s16, 0
    %p314 = por %p312, %p313
    %p315 = scmp.ne.s32.totalorder %s304, %s307
    %p316 = scmp.eq.s32.totalorder %s21, 3
    %p317 = por %p315, %p316
    %p318 = scmp.ne.s32.totalorder %s307, %s308
    %p319 = scmp.eq.s32.totalorder %s21, 0
    %p320 = por %p318, %p319
    %p321 = scmp.ne.s32.totalorder %s307, %s308
    %p322 = scmp.eq.s32.totalorder %s22, 3
    %p323 = por %p321, %p322
    %p325 = scmp.ne.s32.totalorder %s308, %s324
    %p326 = scmp.eq.s32.totalorder %s22, 0
    %p327 = por %p325, %p326
    %p328 = scmp.le.s32.totalorder 1, %s16
    %p329 = scmp.lt.s32.totalorder %s16, 5
    %p330 = pnand %p328, %p329
    %p331 = pneg %p330
    // Predicated region
    $region9: #{pare_up_decoder_block_2d.6} parent=5 // pred_check
      _
    $region10: #{pare_up_decoder_block_2d.6} parent=5 // pred_check_branch
      %333 = sbr.rel (%p330) target = $region12
    $region11: #{pare_up_decoder_block_2d.6} parent=5 // pred_region
      %s334 = ssub.s32 %s16, 1
      // Predicated region
      $region13: #{pare_up_decoder_block_2d.6} parent=11 // pred_check
        %p335 = pneg %p201
      $region14: #{pare_up_decoder_block_2d.6} parent=11 // pred_check_branch
        %337 = sbr.rel (%p335) target = $region16
      $region15: #{pare_up_decoder_block_2d.6} parent=11 // pred_region
        _
      $region16: #{pare_up_decoder_block_2d.6} parent=11 // pred_fallthru
        _
      // Predicated region
      $region17: #{pare_up_decoder_block_2d.6} parent=11 // pred_check
        %p338 = pneg %p222
      $region18: #{pare_up_decoder_block_2d.6} parent=11 // pred_check_branch
        %340 = sbr.rel (%p338) target = $region20
      $region19: #{pare_up_decoder_block_2d.6} parent=11 // pred_region
        _
      $region20: #{pare_up_decoder_block_2d.6} parent=11 // pred_fallthru
        _
      // Predicated region
      $region21: #{pare_up_decoder_block_2d.6} parent=11 // pred_check
        %p341 = pneg %p271
      $region22: #{pare_up_decoder_block_2d.6} parent=11 // pred_check_branch
        %343 = sbr.rel (%p341) target = $region24
      $region23: #{pare_up_decoder_block_2d.6} parent=11 // pred_region
        _
      $region24: #{pare_up_decoder_block_2d.6} parent=11 // pred_fallthru
        _
      // Predicated region
      $region25: #{pare_up_decoder_block_2d.6} parent=11 // pred_check
        %p344 = pneg %p292
      $region26: #{pare_up_decoder_block_2d.6} parent=11 // pred_check_branch
        %346 = sbr.rel (%p344) target = $region28
      $region27: #{pare_up_decoder_block_2d.6} parent=11 // pred_region
        _
      $region28: #{pare_up_decoder_block_2d.6} parent=11 // pred_fallthru
        _
    $region12: #{pare_up_decoder_block_2d.6} parent=5 // pred_fallthru
      _
    %p347 = scmp.lt.s32.totalorder %s16, 4
    // Predicated region
    $region29: #{pare_up_decoder_block_2d.6} parent=5 // pred_check
      %p348 = pneg %p347
    $region30: #{pare_up_decoder_block_2d.6} parent=5 // pred_check_branch
      %350 = sbr.rel (%p348) target = $region32
    $region31: #{pare_up_decoder_block_2d.6} parent=5 // pred_region
      // Predicated region
      $region33: #{pare_up_decoder_block_2d.6} parent=31 // pred_check
        %p351 = pneg %p50
      $region34: #{pare_up_decoder_block_2d.6} parent=31 // pred_check_branch
        %353 = sbr.rel (%p351) target = $region36
      $region35: #{pare_up_decoder_block_2d.6} parent=31 // pred_region
        %s354 = smul.u32 4, %s24
        %p355 = scmp.lt.s32.totalorder %s23, 1
        %s356 = scalar_select %p355, %s23, 1
        %p357 = scmp.lt.s32.totalorder %s354, 7
        %s358 = scalar_select %p357, %s354, 7
        %s359 = smul.addr %s356, 8
        %s360 = sadd.s32 %s358, %s359
        %s361 = smul.addr %s360, 8
        %s362 = scalar_lea.vmem %s0, %s361
        %s363 = smul.u32 4, %s24
      $region36: #{pare_up_decoder_block_2d.6} parent=31 // pred_fallthru
        _
      // Predicated region
      $region37: #{pare_up_decoder_block_2d.6} parent=31 // pred_check
        %p364 = pneg %p86
      $region38: #{pare_up_decoder_block_2d.6} parent=31 // pred_check_branch
        %366 = sbr.rel (%p364) target = $region40
      $region39: #{pare_up_decoder_block_2d.6} parent=31 // pred_region
        %s367 = smul.u32 %s24, 4
        %s368 = ssub.s32 %s367, 1
        %p369 = scmp.gt.s32.totalorder %s368, 0
        %s370 = scalar_select %p369, %s368, 0
        %p371 = scmp.lt.s32.totalorder %s23, 1
        %s372 = scalar_select %p371, %s23, 1
        %p373 = scmp.lt.s32.totalorder %s370, 7
        %s374 = scalar_select %p373, %s370, 7
        %s375 = smul.addr %s372, 8
        %s376 = sadd.s32 %s374, %s375
        %s377 = smul.addr %s376, 8
        %s378 = scalar_lea.vmem %s1, %s377
        %s379 = smul.u32 %s24, 4
        %s380 = ssub.s32 %s379, 1
        %p381 = scmp.gt.s32.totalorder %s380, 0
        %s382 = scalar_select %p381, %s380, 0
      $region40: #{pare_up_decoder_block_2d.6} parent=31 // pred_fallthru
        _
      // Predicated region
      $region41: #{pare_up_decoder_block_2d.6} parent=31 // pred_check
        %p383 = pneg %p122
      $region42: #{pare_up_decoder_block_2d.6} parent=31 // pred_check_branch
        %385 = sbr.rel (%p383) target = $region44
      $region43: #{pare_up_decoder_block_2d.6} parent=31 // pred_region
        %s386 = smul.u32 %s24, 4
        %s387 = sadd.s32 %s386, 4
        %p388 = scmp.lt.s32.totalorder %s387, 7
        %s389 = scalar_select %p388, %s387, 7
        %p390 = scmp.lt.s32.totalorder %s23, 1
        %s391 = scalar_select %p390, %s23, 1
        %p392 = scmp.lt.s32.totalorder %s389, 7
        %s393 = scalar_select %p392, %s389, 7
        %s394 = smul.addr %s391, 8
        %s395 = sadd.s32 %s393, %s394
        %s396 = smul.addr %s395, 8
        %s397 = scalar_lea.vmem %s2, %s396
        %s398 = smul.u32 %s24, 4
        %s399 = sadd.s32 %s398, 4
        %p400 = scmp.lt.s32.totalorder %s399, 7
        %s401 = scalar_select %p400, %s399, 7
      $region44: #{pare_up_decoder_block_2d.6} parent=31 // pred_fallthru
        _
      // Predicated region
      $region45: #{pare_up_decoder_block_2d.6} parent=31 // pred_check
        %p402 = pneg %p148
      $region46: #{pare_up_decoder_block_2d.6} parent=31 // pred_check_branch
        %404 = sbr.rel (%p402) target = $region48
      $region47: #{pare_up_decoder_block_2d.6} parent=31 // pred_region
        %p405 = scmp.lt.s32.totalorder %s23, 1
        %s406 = scalar_select %p405, %s23, 1
        %s407 = scalar_lea.vmem %s3, %s406
      $region48: #{pare_up_decoder_block_2d.6} parent=31 // pred_fallthru
        _
      // Predicated region
      $region49: #{pare_up_decoder_block_2d.6} parent=31 // pred_check
        %p408 = pneg %p174
      $region50: #{pare_up_decoder_block_2d.6} parent=31 // pred_check_branch
        %410 = sbr.rel (%p408) target = $region52
      $region51: #{pare_up_decoder_block_2d.6} parent=31 // pred_region
        %p411 = scmp.lt.s32.totalorder %s23, 1
        %s412 = scalar_select %p411, %s23, 1
        %s413 = scalar_lea.vmem %s4, %s412
      $region52: #{pare_up_decoder_block_2d.6} parent=31 // pred_fallthru
        _
      // Predicated region
      $region53: #{pare_up_decoder_block_2d.6} parent=31 // pred_check
        %p414 = pneg %p244
      $region54: #{pare_up_decoder_block_2d.6} parent=31 // pred_check_branch
        %416 = sbr.rel (%p414) target = $region56
      $region55: #{pare_up_decoder_block_2d.6} parent=31 // pred_region
        %s417 = smul.u32 4, %s24
        %p418 = scmp.lt.s32.totalorder %s23, 1
        %s419 = scalar_select %p418, %s23, 1
        %p420 = scmp.lt.s32.totalorder %s417, 7
        %s421 = scalar_select %p420, %s417, 7
        %s422 = smul.addr %s419, 8
        %s423 = sadd.s32 %s421, %s422
        %s424 = smul.addr %s423, 8
        %s425 = scalar_lea.vmem %s7, %s424
        %s426 = smul.u32 4, %s24
      $region56: #{pare_up_decoder_block_2d.6} parent=31 // pred_fallthru
        _
    $region32: #{pare_up_decoder_block_2d.6} parent=5 // pred_fallthru
      _
    %p427 = scmp.le.s32.totalorder 1, %s16
    %p428 = scmp.lt.s32.totalorder %s16, 5
    %p429 = pnand %p427, %p428
    %p430 = pneg %p429
    // Predicated region
    $region57: #{pare_up_decoder_block_2d.6} parent=5 // pred_check
      _
    $region58: #{pare_up_decoder_block_2d.6} parent=5 // pred_check_branch
      %432 = sbr.rel (%p429) target = $region60
    $region59: #{pare_up_decoder_block_2d.6} parent=5 // pred_region
      %s433 = ssub.s32 %s16, 1
      %s434 = smul.u32 4, %s26
      %p435 = scmp.lt.s32.totalorder %s25, 1
      %s436 = scalar_select %p435, %s25, 1
      %p437 = scmp.lt.s32.totalorder %s434, 7
      %s438 = scalar_select %p437, %s434, 7
      %s439 = smul.addr %s436, 8
      %s440 = sadd.s32 %s438, %s439
      %s441 = smul.addr %s440, 8
      %s442 = scalar_lea.vmem %s0, %s441
      %p443 = pneg %p56
      %p444 = pneg %p53
      %s445 = smul.u32 %s26, 4
      %s446 = ssub.s32 %s445, 1
      %p447 = scmp.gt.s32.totalorder %s446, 0
      %s448 = scalar_select %p447, %s446, 0
      %p449 = scmp.lt.s32.totalorder %s25, 1
      %s450 = scalar_select %p449, %s25, 1
      %p451 = scmp.lt.s32.totalorder %s448, 7
      %s452 = scalar_select %p451, %s448, 7
      %s453 = smul.addr %s450, 8
      %s454 = sadd.s32 %s452, %s453
      %s455 = smul.addr %s454, 8
      %s456 = scalar_lea.vmem %s1, %s455
      %p457 = pneg %p92
      %p458 = pneg %p89
      %s459 = smul.u32 %s26, 4
      %s460 = sadd.s32 %s459, 4
      %p461 = scmp.lt.s32.totalorder %s460, 7
      %s462 = scalar_select %p461, %s460, 7
      %p463 = scmp.lt.s32.totalorder %s25, 1
      %s464 = scalar_select %p463, %s25, 1
      %p465 = scmp.lt.s32.totalorder %s462, 7
      %s466 = scalar_select %p465, %s462, 7
      %s467 = smul.addr %s464, 8
      %s468 = sadd.s32 %s466, %s467
      %s469 = smul.addr %s468, 8
      %s470 = scalar_lea.vmem %s2, %s469
      %p471 = pneg %p128
      %p472 = pneg %p125
      %p473 = scmp.lt.s32.totalorder %s25, 1
      %s474 = scalar_select %p473, %s25, 1
      %s475 = scalar_lea.vmem %s3, %s474
      %p476 = pneg %p154
      %p477 = pneg %p151
      %p478 = scmp.lt.s32.totalorder %s25, 1
      %s479 = scalar_select %p478, %s25, 1
      %s480 = scalar_lea.vmem %s4, %s479
      %p481 = pneg %p180
      %p482 = pneg %p177
      %p483 = pneg %p201
      %p484 = pneg %p198
      %p485 = pneg %p222
      %p486 = pneg %p219
      %s487 = smul.u32 4, %s26
      %p488 = scmp.lt.s32.totalorder %s25, 1
      %s489 = scalar_select %p488, %s25, 1
      %p490 = scmp.lt.s32.totalorder %s487, 7
      %s491 = scalar_select %p490, %s487, 7
      %s492 = smul.addr %s489, 8
      %s493 = sadd.s32 %s491, %s492
      %s494 = smul.addr %s493, 8
      %s495 = scalar_lea.vmem %s7, %s494
      %p496 = pneg %p250
      %p497 = pneg %p247
      %p498 = pneg %p271
      %p499 = pneg %p268
      %p500 = pneg %p292
      %p501 = pneg %p289
      %p502 = pneg %p320
      %p503 = pneg %p317
      %s504 = smul.u32 4, %s26
      %p505 = scmp.lt.s32.totalorder %s25, 1
      %s506 = scalar_select %p505, %s25, 1
      %p507 = scmp.lt.s32.totalorder %s504, 7
      %s508 = scalar_select %p507, %s504, 7
      %s509 = smul.addr %s506, 8
      %s510 = sadd.s32 %s508, %s509
      %s511 = smul.addr %s510, 8
      %s512 = scalar_lea.vmem %s10, %s511
      %s513 = smul.u32 4, %s26
      %p514 = scmp.lt.s32.totalorder %s25, 1
      %s515 = scalar_select %p514, %s25, 1
      %p516 = scmp.lt.s32.totalorder %s513, 7
      %s517 = scalar_select %p516, %s513, 7
      %s518 = smul.addr %s515, 8
      %s519 = sadd.s32 %s517, %s518
      %s520 = smul.addr %s519, 8
      %s521 = scalar_lea.vmem %s0, %s520
      %s522 = smul.u32 4, %s26
      %s523 = smul.u32 %s26, 4
      %s524 = ssub.s32 %s523, 1
      %p525 = scmp.gt.s32.totalorder %s524, 0
      %s526 = scalar_select %p525, %s524, 0
      %p527 = scmp.lt.s32.totalorder %s25, 1
      %s528 = scalar_select %p527, %s25, 1
      %p529 = scmp.lt.s32.totalorder %s526, 7
      %s530 = scalar_select %p529, %s526, 7
      %s531 = smul.addr %s528, 8
      %s532 = sadd.s32 %s530, %s531
      %s533 = smul.addr %s532, 8
      %s534 = scalar_lea.vmem %s1, %s533
      %s535 = smul.u32 %s26, 4
      %s536 = ssub.s32 %s535, 1
      %p537 = scmp.gt.s32.totalorder %s536, 0
      %s538 = scalar_select %p537, %s536, 0
      %s539 = smul.u32 %s26, 4
      %s540 = sadd.s32 %s539, 4
      %p541 = scmp.lt.s32.totalorder %s540, 7
      %s542 = scalar_select %p541, %s540, 7
      %p543 = scmp.lt.s32.totalorder %s25, 1
      %s544 = scalar_select %p543, %s25, 1
      %p545 = scmp.lt.s32.totalorder %s542, 7
      %s546 = scalar_select %p545, %s542, 7
      %s547 = smul.addr %s544, 8
      %s548 = sadd.s32 %s546, %s547
      %s549 = smul.addr %s548, 8
      %s550 = scalar_lea.vmem %s2, %s549
      %s551 = smul.u32 %s26, 4
      %s552 = sadd.s32 %s551, 4
      %p553 = scmp.lt.s32.totalorder %s552, 7
      %s554 = scalar_select %p553, %s552, 7
      %p555 = scmp.lt.s32.totalorder %s25, 1
      %s556 = scalar_select %p555, %s25, 1
      %s557 = scalar_lea.vmem %s3, %s556
      %p558 = scmp.lt.s32.totalorder %s25, 1
      %s559 = scalar_select %p558, %s25, 1
      %s560 = scalar_lea.vmem %s4, %s559
      %s561 = smul.u32 4, %s26
      %p562 = scmp.lt.s32.totalorder %s25, 1
      %s563 = scalar_select %p562, %s25, 1
      %p564 = scmp.lt.s32.totalorder %s561, 7
      %s565 = scalar_select %p564, %s561, 7
      %s566 = smul.addr %s563, 8
      %s567 = sadd.s32 %s565, %s566
      %s568 = smul.addr %s567, 8
      %s569 = scalar_lea.vmem %s7, %s568
      %s570 = smul.u32 4, %s26
      %s571 = smul.u32 4, %s26
      %p572 = scmp.lt.s32.totalorder %s25, 1
      %s573 = scalar_select %p572, %s25, 1
      %p574 = scmp.lt.s32.totalorder %s571, 7
      %s575 = scalar_select %p574, %s571, 7
      %s576 = smul.addr %s573, 8
      %s577 = sadd.s32 %s575, %s576
      %s578 = smul.addr %s577, 8
      %s579 = scalar_lea.vmem %s10, %s578
      %s580 = smul.u32 4, %s26
      %v581 = vld [vmem:[%s557] sm:$0x1]
      %v582 = vld [vmem:[%s560] sm:$0x1]
      %v583 = vld [vmem:[%s521] sm:$0xff]
      %v584 = vld [vmem:[%s521 + $0x8] sm:$0xff]
      %v585 = vld [vmem:[%s521 + $0x10] sm:$0xff]
      %v586 = vld [vmem:[%s521 + $0x18] sm:$0xff]
      %v588 = vlaneseq
      %v589 = vshrl.u32 %v588, 7
      %v590 = vsub.s32 0, %v589
      %v591 = vrot.slane %v581, %v590
      %v593 = vmul.f32 %v583, %v591
      %v594 = vmul.f32 %v584, %v591
      %v595 = vmul.f32 %v585, %v591
      %v596 = vmul.f32 %v586, %v591
      %v598 = vlaneseq
      %v599 = vshrl.u32 %v598, 7
      %v600 = vsub.s32 0, %v599
      %v601 = vrot.slane %v582, %v600
      %v603 = vadd.f32 %v593, %v601
      %v604 = vadd.f32 %v594, %v601
      %v605 = vadd.f32 %v595, %v601
      %v606 = vadd.f32 %v596, %v601
      %v607 = vxor.u32 %v603, 2147483648
      %v608 = vxor.u32 %v604, 2147483648
      %v609 = vxor.u32 %v605, 2147483648
      %v610 = vxor.u32 %v606, 2147483648
      %v611 = vmul.f32 %v607, 1.442695
      %v612 = vpow.pop %v611
      %v613 = vmul.f32 %v608, 1.442695
      %v614 = vpow.pop %v613
      %v615 = vmul.f32 %v609, 1.442695
      %v616 = vpow.pop %v615
      %v617 = vmul.f32 %v610, 1.442695
      %v618 = vpow.pop %v617
      %v619 = vadd.f32 %v612, 1.0
      %v620 = vadd.f32 %v614, 1.0
      %v621 = vadd.f32 %v616, 1.0
      %v622 = vadd.f32 %v618, 1.0
      %v623 = vrcp.pop %v619
      %v624 = vmul.f32 1.0, %v623
      %v625 = vrcp.pop %v620
      %v626 = vmul.f32 1.0, %v625
      %v627 = vrcp.pop %v621
      %v628 = vmul.f32 1.0, %v627
      %v629 = vrcp.pop %v622
      %v630 = vmul.f32 1.0, %v629
      %v631 = vmul.f32 %v603, %v624
      %v632 = vmul.f32 %v604, %v626
      %v633 = vmul.f32 %v605, %v628
      %v634 = vmul.f32 %v606, %v630
      %s635 = scalar_lea.vmem [#allocation2], 8
      %vm636 = vcmask 261120
      %637 = vst.msk [vmem:[%s635] sm:$0xff] %vm636, %v631
      %638 = vst.msk [vmem:[%s635 + $0x8] sm:$0xff] %vm636, %v632
      %639 = vst.msk [vmem:[%s635 + $0x10] sm:$0xff] %vm636, %v633
      %640 = vst.msk [vmem:[%s635 + $0x18] sm:$0xff] %vm636, %v634
      %p641 = scmp.gt.s32.totalorder %s26, 0
      %v642 = vld [vmem:[%s534] sm:$0xff]
      %v643 = vmul.f32 %v642, %v591
      %v644 = vadd.f32 %v643, %v601
      %v645 = vxor.u32 %v644, 2147483648
      %v646 = vmul.f32 %v645, 1.442695
      %v647 = vpow.pop %v646
      %v648 = vadd.f32 %v647, 1.0
      %v649 = vrcp.pop %v648
      %v650 = vmul.f32 1.0, %v649
      %v651 = vmul.f32 %v644, %v650
      %s652 = scalar_select %p641, 1, 0
      %v653 = vstv %s652
      %vm654 = vcmp.eq.s32.totalorder %v653, 1
      %v655 = vsel %vm654, %v651, 0.0
      %656 = vst.msk [vmem:[#allocation2] sm:$0xff] %vm636, %v655
      %p657 = scmp.lt.s32.totalorder %s26, 1
      %v658 = vld [vmem:[%s550] sm:$0xff]
      %v659 = vmul.f32 %v658, %v591
      %v660 = vadd.f32 %v659, %v601
      %v661 = vxor.u32 %v660, 2147483648
      %v662 = vmul.f32 %v661, 1.442695
      %v663 = vpow.pop %v662
      %v664 = vadd.f32 %v663, 1.0
      %v665 = vrcp.pop %v664
      %v666 = vmul.f32 1.0, %v665
      %v667 = vmul.f32 %v660, %v666
      %s668 = scalar_select %p657, 1, 0
      %v669 = vstv %s668
      %vm670 = vcmp.eq.s32.totalorder %v669, 1
      %v671 = vsel %vm670, %v667, 0.0
      %s672 = scalar_lea.vmem [#allocation2], 40
      %673 = vst.msk [vmem:[%s672] sm:$0xff] %vm636, %v671
      %v674 = vld [vmem:[#allocation2] sm:$0xff]
      %v675 = vld [vmem:[#allocation2 + $0x8] sm:$0xff]
      %v676 = vld [vmem:[#allocation2 + $0x10] sm:$0xff]
      %v677 = vld [vmem:[#allocation2 + $0x18] sm:$0xff]
      %v678 = vld [vmem:[#allocation2 + $0x20] sm:$0xff]
      %v679 = vld [vmem:[#allocation2 + $0x28] sm:$0xff]
      %v686 = vrot.slane %v674, 7
      %v687 = vrot.slane %v675, 7
      %v688 = vrot.slane %v676, 7
      %v689 = vrot.slane %v677, 7
      %v690 = vrot.slane %v678, 7
      %v691 = vrot.slane %v679, 7
      %vm698 = vcmask 1040384
      %v699 = vsel %vm698, 0.0, %v686
      %v700 = vsel %vm698, 0.0, %v687
      %v701 = vsel %vm698, 0.0, %v688
      %v702 = vsel %vm698, 0.0, %v689
      %v703 = vsel %vm698, 0.0, %v690
      %v704 = vsel %vm698, 0.0, %v691
      %v705 = vsel %vm698, %v686, 0.0
      %v706 = vsel %vm698, %v687, 0.0
      %v707 = vsel %vm698, %v688, 0.0
      %v708 = vsel %vm698, %v689, 0.0
      %v709 = vsel %vm698, %v690, 0.0
      %v710 = vsel %vm698, %v691, 0.0
      %v711 = vld [vmem:[%s6] sm:$0x1]
      %712 = vrot.lane.b32.xlu0 %v674, 32
      %v713 = vpop.permute.xlu0 %712
      %714 = vrot.lane.b32.xlu0 %v675, 32
      %v715 = vpop.permute.xlu0 %714
      %716 = vrot.lane.b32.xlu0 %v676, 32
      %v717 = vpop.permute.xlu0 %716
      %718 = vrot.lane.b32.xlu0 %v677, 32
      %v719 = vpop.permute.xlu0 %718
      %720 = vrot.lane.b32.xlu0 %v678, 32
      %v721 = vpop.permute.xlu0 %720
      %722 = vrot.lane.b32.xlu0 %v679, 32
      %v723 = vpop.permute.xlu0 %722
      %vm742 = vcmask 1045504
      %v743 = vrot.slane %v699, 2
      %v744 = vrot.slane %v705, 2
      %v745 = vsel %vm742, %v743, %v744
      %v746 = vrot.slane %v700, 2
      %v747 = vrot.slane %v706, 2
      %v748 = vsel %vm742, %v746, %v747
      %v749 = vrot.slane %v701, 2
      %v750 = vrot.slane %v707, 2
      %v751 = vsel %vm742, %v749, %v750
      %v752 = vrot.slane %v702, 2
      %v753 = vrot.slane %v708, 2
      %v754 = vsel %vm742, %v752, %v753
      %v755 = vrot.slane %v703, 2
      %v756 = vrot.slane %v709, 2
      %v757 = vsel %vm742, %v755, %v756
      %v758 = vrot.slane %v704, 2
      %v759 = vrot.slane %v710, 2
      %v760 = vsel %vm742, %v758, %v759
      %761 = vrot.lane.b32.xlu0 %v745, 64
      %v762 = vpop.permute.xlu0 %761
      %763 = vrot.lane.b32.xlu0 %v748, 64
      %v764 = vpop.permute.xlu0 %763
      %765 = vrot.lane.b32.xlu0 %v751, 64
      %v766 = vpop.permute.xlu0 %765
      %767 = vrot.lane.b32.xlu0 %v754, 64
      %v768 = vpop.permute.xlu0 %767
      %769 = vrot.lane.b32.xlu0 %v757, 64
      %v770 = vpop.permute.xlu0 %769
      %771 = vrot.lane.b32.xlu0 %v760, 64
      %v772 = vpop.permute.xlu0 %771
      %v779 = vsel %vm636, %v699, %v713
      %v780 = vsel %vm636, %v700, %v715
      %v781 = vsel %vm636, %v701, %v717
      %v782 = vsel %vm636, %v702, %v719
      %v783 = vsel %vm636, %v703, %v721
      %v784 = vsel %vm636, %v704, %v723
      %vm785 = vcmask 523264
      %v786 = vsel %vm785, %v779, %v762
      %v787 = vsel %vm785, %v780, %v764
      %v788 = vsel %vm785, %v781, %v766
      %v789 = vsel %vm785, %v782, %v768
      %v790 = vsel %vm785, %v783, %v770
      %v791 = vsel %vm785, %v784, %v772
      %v792 = vld [vmem:[%s5] sm:$0xff]
      %v793 = vld [vmem:[%s5 + $0x8] sm:$0xff]
      %v794 = vld [vmem:[%s5 + $0x10] sm:$0xff]
      %v795 = vld [vmem:[%s5 + $0x18] sm:$0xff]
      %v796 = vld [vmem:[%s5 + $0x20] sm:$0xff]
      %v797 = vld [vmem:[%s5 + $0x28] sm:$0xff]
      %v798 = vld [vmem:[%s5 + $0x30] sm:$0xff]
      %v799 = vld [vmem:[%s5 + $0x38] sm:$0xff]
      %v800 = vld [vmem:[%s5 + $0x40] sm:$0xff]
      %v801 = vld [vmem:[%s5 + $0x48] sm:$0xff]
      %v802 = vld [vmem:[%s5 + $0x50] sm:$0xff]
      %v803 = vld [vmem:[%s5 + $0x58] sm:$0xff]
      %s804 = scalar_lea.vmem %s5, 96
      %v805 = vld [vmem:[%s804] sm:$0xff]
      %v806 = vld [vmem:[%s804 + $0x8] sm:$0xff]
      %v807 = vld [vmem:[%s804 + $0x10] sm:$0xff]
      %v808 = vld [vmem:[%s804 + $0x18] sm:$0xff]
      %v809 = vld [vmem:[%s804 + $0x20] sm:$0xff]
      %v810 = vld [vmem:[%s804 + $0x28] sm:$0xff]
      %v811 = vld [vmem:[%s804 + $0x30] sm:$0xff]
      %v812 = vld [vmem:[%s804 + $0x38] sm:$0xff]
      %v813 = vld [vmem:[%s804 + $0x40] sm:$0xff]
      %v814 = vld [vmem:[%s804 + $0x48] sm:$0xff]
      %v815 = vld [vmem:[%s804 + $0x50] sm:$0xff]
      %v816 = vld [vmem:[%s804 + $0x58] sm:$0xff]
      %vm817 = vcmask 785408
      %v819 = vsel %vm817, %v787, 0
      %v822 = vsel %vm817, %v788, 0
      %v825 = vsel %vm817, %v789, 0
      %v828 = vsel %vm817, %v790, 0
      %830 = vmatprep.subr.mxu0 0.0
      %831 = vmatpush1.msra.mxu0 %v805
      %832 = vmatprep.subr.mxu0 0.0
      %833 = vmatpush1.msra.mxu0 %v806
      %834 = vmatprep.subr.mxu0 0.0
      %835 = vmatpush1.msra.mxu0 %v807
      %836 = vmatprep.subr.mxu0 0.0
      %837 = vmatpush1.msra.mxu0 %v808
      %838 = vmatprep.subr.mxu0 0.0
      %839 = vmatpush1.msra.mxu0 %v809
      %840 = vmatprep.subr.mxu0 0.0
      %841 = vmatpush1.msra.mxu0 %v810
      %842 = vmatprep.subr.mxu0 0.0
      %843 = vmatpush1.msra.mxu0 %v811
      %844 = vmatprep.subr.mxu0 0.0
      %845 = vmatpush1.msra.mxu0 %v812
      %846 = vmatprep.subr.mxu0 0.0
      %847 = vmatpush1.msra.mxu0 %v813
      %848 = vmatprep.subr.mxu0 0.0
      %849 = vmatpush1.msra.mxu0 %v814
      %850 = vmatprep.subr.mxu0 0.0
      %851 = vmatpush1.msra.mxu0 %v815
      %852 = vmatprep.subr.mxu0 0.0
      %853 = vmatpush1.msra.mxu0 %v816
      %854 = vmatprep.subr.mxu0 0.0
      %855 = vmatpush1.msra.mxu0 0.0
      %856 = vmatprep.subr.mxu0 0.0
      %857 = vmatpush1.msra.mxu0 0.0
      %858 = vmatprep.subr.mxu0 0.0
      %859 = vmatpush1.msra.mxu0 0.0
      %860 = vmatprep.subr.mxu0 0.0
      %861 = vmatpush1.msra.mxu0 0.0
      %862 = vmatprep.subr.mxu0 0.0
      %863 = vmatpush1.msra.mxu0 0.0
      %864 = vmatprep.subr.mxu0 0.0
      %865 = vmatpush1.msra.mxu0 0.0
      %866 = vmatprep.subr.mxu0 0.0
      %867 = vmatpush1.msra.mxu0 0.0
      %868 = vmatprep.subr.mxu0 0.0
      %869 = vmatpush1.msra.mxu0 0.0
      %870 = vmatprep.subr.mxu0 0.0
      %871 = vmatpush1.msra.mxu0 0.0
      %872 = vmatprep.subr.mxu0 0.0
      %873 = vmatpush1.msra.mxu0 0.0
      %874 = vmatprep.subr.mxu0 0.0
      %875 = vmatpush1.msra.mxu0 0.0
      %876 = vmatprep.subr.mxu0 0.0
      %877 = vmatpush1.msra.mxu0 0.0
      %878 = vmatprep.subr.mxu0 0.0
      %879 = vmatpush1.msra.mxu0 0.0
      %880 = vmatprep.subr.mxu0 0.0
      %881 = vmatpush1.msra.mxu0 0.0
      %882 = vmatprep.subr.mxu0 0.0
      %883 = vmatpush1.msra.mxu0 0.0
      %884 = vmatprep.subr.mxu0 0.0
      %885 = vmatpush1.msra.mxu0 0.0
      %886 = vmatprep.subr.mxu0 0.0
      %887 = vmatpush1.msra.mxu0 0.0
      %888 = vmatprep.subr.mxu0 0.0
      %889 = vmatpush1.msra.mxu0 0.0
      %890 = vmatprep.subr.mxu0 0.0
      %891 = vmatpush1.msra.mxu0 0.0
      %892 = vmatprep.subr.mxu0 0.0
      %893 = vmatpush1.msra.mxu0 0.0
      %894 = vmatprep.mubr.f32.mxu0 0.0
      %895 = vmatmul.mubr.f32.gmra.mrb[0].mxu0 %v819
      %v896 = vpop.f32.mrb[0].mxu0
      %v897 = vadd.f32 0.0, %v896
      %v898 = vpop.f32.mrb[0].mxu0
      %899 = vmatprep.mubr.f32.mxu0 0.0
      %900 = vmatmul.mubr.f32.gmra.mrb[0].mxu0 %v822
      %v901 = vpop.f32.mrb[0].mxu0
      %v902 = vadd.f32 0.0, %v901
      %v903 = vpop.f32.mrb[0].mxu0
      %904 = vmatprep.mubr.f32.mxu0 0.0
      %905 = vmatmul.mubr.f32.gmra.mrb[0].mxu0 %v825
      %v906 = vpop.f32.mrb[0].mxu0
      %v907 = vadd.f32 0.0, %v906
      %v908 = vpop.f32.mrb[0].mxu0
      %909 = vmatprep.mubr.f32.mxu0 0.0
      %910 = vmatmul.mubr.f32.gmra.mrb[0].mxu0 %v828
      %v911 = vpop.f32.mrb[0].mxu0
      %v912 = vadd.f32 0.0, %v911
      %v913 = vpop.f32.mrb[0].mxu0
      %914 = vdwg.mxu0
      %v916 = vsel %vm817, %v786, 0
      %918 = vmatprep.subr.mxu0 0.0
      %919 = vmatpush1.msra.mxu0 %v792
      %920 = vmatprep.subr.mxu0 0.0
      %921 = vmatpush1.msra.mxu0 %v793
      %922 = vmatprep.subr.mxu0 0.0
      %923 = vmatpush1.msra.mxu0 %v794
      %924 = vmatprep.subr.mxu0 0.0
      %925 = vmatpush1.msra.mxu0 %v795
      %926 = vmatprep.subr.mxu0 0.0
      %927 = vmatpush1.msra.mxu0 %v796
      %928 = vmatprep.subr.mxu0 0.0
      %929 = vmatpush1.msra.mxu0 %v797
      %930 = vmatprep.subr.mxu0 0.0
      %931 = vmatpush1.msra.mxu0 %v798
      %932 = vmatprep.subr.mxu0 0.0
      %933 = vmatpush1.msra.mxu0 %v799
      %934 = vmatprep.subr.mxu0 0.0
      %935 = vmatpush1.msra.mxu0 %v800
      %936 = vmatprep.subr.mxu0 0.0
      %937 = vmatpush1.msra.mxu0 %v801
      %938 = vmatprep.subr.mxu0 0.0
      %939 = vmatpush1.msra.mxu0 %v802
      %940 = vmatprep.subr.mxu0 0.0
      %941 = vmatpush1.msra.mxu0 %v803
      %942 = vmatprep.subr.mxu0 0.0
      %943 = vmatpush1.msra.mxu0 0.0
      %944 = vmatprep.subr.mxu0 0.0
      %945 = vmatpush1.msra.mxu0 0.0
      %946 = vmatprep.subr.mxu0 0.0
      %947 = vmatpush1.msra.mxu0 0.0
      %948 = vmatprep.subr.mxu0 0.0
      %949 = vmatpush1.msra.mxu0 0.0
      %950 = vmatprep.subr.mxu0 0.0
      %951 = vmatpush1.msra.mxu0 0.0
      %952 = vmatprep.subr.mxu0 0.0
      %953 = vmatpush1.msra.mxu0 0.0
      %954 = vmatprep.subr.mxu0 0.0
      %955 = vmatpush1.msra.mxu0 0.0
      %956 = vmatprep.subr.mxu0 0.0
      %957 = vmatpush1.msra.mxu0 0.0
      %958 = vmatprep.subr.mxu0 0.0
      %959 = vmatpush1.msra.mxu0 0.0
      %960 = vmatprep.subr.mxu0 0.0
      %961 = vmatpush1.msra.mxu0 0.0
      %962 = vmatprep.subr.mxu0 0.0
      %963 = vmatpush1.msra.mxu0 0.0
      %964 = vmatprep.subr.mxu0 0.0
      %965 = vmatpush1.msra.mxu0 0.0
      %966 = vmatprep.subr.mxu0 0.0
      %967 = vmatpush1.msra.mxu0 0.0
      %968 = vmatprep.subr.mxu0 0.0
      %969 = vmatpush1.msra.mxu0 0.0
      %970 = vmatprep.subr.mxu0 0.0
      %971 = vmatpush1.msra.mxu0 0.0
      %972 = vmatprep.subr.mxu0 0.0
      %973 = vmatpush1.msra.mxu0 0.0
      %974 = vmatprep.subr.mxu0 0.0
      %975 = vmatpush1.msra.mxu0 0.0
      %976 = vmatprep.subr.mxu0 0.0
      %977 = vmatpush1.msra.mxu0 0.0
      %978 = vmatprep.subr.mxu0 0.0
      %979 = vmatpush1.msra.mxu0 0.0
      %980 = vmatprep.subr.mxu0 0.0
      %981 = vmatpush1.msra.mxu0 0.0
      %982 = vmatprep.mubr.f32.mxu0 0.0
      %983 = vmatmul.mubr.f32.gmra.mrb[0].mxu0 %v916
      %v984 = vpop.f32.mrb[0].mxu0
      %v985 = vadd.f32 %v897, %v984
      %v986 = vpop.f32.mrb[0].mxu0
      %987 = vmatprep.mubr.f32.mxu0 0.0
      %988 = vmatmul.mubr.f32.gmra.mrb[0].mxu0 %v819
      %v989 = vpop.f32.mrb[0].mxu0
      %v990 = vadd.f32 %v902, %v989
      %v991 = vpop.f32.mrb[0].mxu0
      %992 = vmatprep.mubr.f32.mxu0 0.0
      %993 = vmatmul.mubr.f32.gmra.mrb[0].mxu0 %v822
      %v994 = vpop.f32.mrb[0].mxu0
      %v995 = vadd.f32 %v907, %v994
      %v996 = vpop.f32.mrb[0].mxu0
      %997 = vmatprep.mubr.f32.mxu0 0.0
      %998 = vmatmul.mubr.f32.gmra.mrb[0].mxu0 %v825
      %v999 = vpop.f32.mrb[0].mxu0
      %v1000 = vadd.f32 %v912, %v999
      %v1001 = vpop.f32.mrb[0].mxu0
      %1002 = vdwg.mxu0
      %s1003 = scalar_lea.vmem %s5, 192
      %v1004 = vld [vmem:[%s1003] sm:$0xff]
      %v1005 = vld [vmem:[%s1003 + $0x8] sm:$0xff]
      %v1006 = vld [vmem:[%s1003 + $0x10] sm:$0xff]
      %v1007 = vld [vmem:[%s1003 + $0x18] sm:$0xff]
      %v1008 = vld [vmem:[%s1003 + $0x20] sm:$0xff]
      %v1009 = vld [vmem:[%s1003 + $0x28] sm:$0xff]
      %v1010 = vld [vmem:[%s1003 + $0x30] sm:$0xff]
      %v1011 = vld [vmem:[%s1003 + $0x38] sm:$0xff]
      %v1012 = vld [vmem:[%s1003 + $0x40] sm:$0xff]
      %v1013 = vld [vmem:[%s1003 + $0x48] sm:$0xff]
      %v1014 = vld [vmem:[%s1003 + $0x50] sm:$0xff]
      %v1015 = vld [vmem:[%s1003 + $0x58] sm:$0xff]
      %v1017 = vsel %vm817, %v791, 0
      %1019 = vmatprep.subr.mxu0 0.0
      %1020 = vmatpush1.msra.mxu0 %v1004
      %1021 = vmatprep.subr.mxu0 0.0
      %1022 = vmatpush1.msra.mxu0 %v1005
      %1023 = vmatprep.subr.mxu0 0.0
      %1024 = vmatpush1.msra.mxu0 %v1006
      %1025 = vmatprep.subr.mxu0 0.0
      %1026 = vmatpush1.msra.mxu0 %v1007
      %1027 = vmatprep.subr.mxu0 0.0
      %1028 = vmatpush1.msra.mxu0 %v1008
      %1029 = vmatprep.subr.mxu0 0.0
      %1030 = vmatpush1.msra.mxu0 %v1009
      %1031 = vmatprep.subr.mxu0 0.0
      %1032 = vmatpush1.msra.mxu0 %v1010
      %1033 = vmatprep.subr.mxu0 0.0
      %1034 = vmatpush1.msra.mxu0 %v1011
      %1035 = vmatprep.subr.mxu0 0.0
      %1036 = vmatpush1.msra.mxu0 %v1012
      %1037 = vmatprep.subr.mxu0 0.0
      %1038 = vmatpush1.msra.mxu0 %v1013
      %1039 = vmatprep.subr.mxu0 0.0
      %1040 = vmatpush1.msra.mxu0 %v1014
      %1041 = vmatprep.subr.mxu0 0.0
      %1042 = vmatpush1.msra.mxu0 %v1015
      %1043 = vmatprep.subr.mxu0 0.0
      %1044 = vmatpush1.msra.mxu0 0.0
      %1045 = vmatprep.subr.mxu0 0.0
      %1046 = vmatpush1.msra.mxu0 0.0
      %1047 = vmatprep.subr.mxu0 0.0
      %1048 = vmatpush1.msra.mxu0 0.0
      %1049 = vmatprep.subr.mxu0 0.0
      %1050 = vmatpush1.msra.mxu0 0.0
      %1051 = vmatprep.subr.mxu0 0.0
      %1052 = vmatpush1.msra.mxu0 0.0
      %1053 = vmatprep.subr.mxu0 0.0
      %1054 = vmatpush1.msra.mxu0 0.0
      %1055 = vmatprep.subr.mxu0 0.0
      %1056 = vmatpush1.msra.mxu0 0.0
      %1057 = vmatprep.subr.mxu0 0.0
      %1058 = vmatpush1.msra.mxu0 0.0
      %1059 = vmatprep.subr.mxu0 0.0
      %1060 = vmatpush1.msra.mxu0 0.0
      %1061 = vmatprep.subr.mxu0 0.0
      %1062 = vmatpush1.msra.mxu0 0.0
      %1063 = vmatprep.subr.mxu0 0.0
      %1064 = vmatpush1.msra.mxu0 0.0
      %1065 = vmatprep.subr.mxu0 0.0
      %1066 = vmatpush1.msra.mxu0 0.0
      %1067 = vmatprep.subr.mxu0 0.0
      %1068 = vmatpush1.msra.mxu0 0.0
      %1069 = vmatprep.subr.mxu0 0.0
      %1070 = vmatpush1.msra.mxu0 0.0
      %1071 = vmatprep.subr.mxu0 0.0
      %1072 = vmatpush1.msra.mxu0 0.0
      %1073 = vmatprep.subr.mxu0 0.0
      %1074 = vmatpush1.msra.mxu0 0.0
      %1075 = vmatprep.subr.mxu0 0.0
      %1076 = vmatpush1.msra.mxu0 0.0
      %1077 = vmatprep.subr.mxu0 0.0
      %1078 = vmatpush1.msra.mxu0 0.0
      %1079 = vmatprep.subr.mxu0 0.0
      %1080 = vmatpush1.msra.mxu0 0.0
      %1081 = vmatprep.subr.mxu0 0.0
      %1082 = vmatpush1.msra.mxu0 0.0
      %1083 = vmatprep.mubr.f32.mxu0 0.0
      %1084 = vmatmul.mubr.f32.gmra.mrb[0].mxu0 %v822
      %v1085 = vpop.f32.mrb[0].mxu0
      %v1086 = vadd.f32 0.0, %v1085
      %v1087 = vpop.f32.mrb[0].mxu0
      %1088 = vmatprep.mubr.f32.mxu0 0.0
      %1089 = vmatmul.mubr.f32.gmra.mrb[0].mxu0 %v825
      %v1090 = vpop.f32.mrb[0].mxu0
      %v1091 = vadd.f32 0.0, %v1090
      %v1092 = vpop.f32.mrb[0].mxu0
      %1093 = vmatprep.mubr.f32.mxu0 0.0
      %1094 = vmatmul.mubr.f32.gmra.mrb[0].mxu0 %v828
      %v1095 = vpop.f32.mrb[0].mxu0
      %v1096 = vadd.f32 0.0, %v1095
      %v1097 = vpop.f32.mrb[0].mxu0
      %1098 = vmatprep.mubr.f32.mxu0 0.0
      %1099 = vmatmul.mubr.f32.gmra.mrb[0].mxu0 %v1017
      %v1100 = vpop.f32.mrb[0].mxu0
      %v1101 = vadd.f32 0.0, %v1100
      %v1102 = vpop.f32.mrb[0].mxu0
      %1103 = vdwg.mxu0
      %v1104 = vadd.f32 %v985, %v1086
      %v1105 = vadd.f32 %v990, %v1091
      %v1106 = vadd.f32 %v995, %v1096
      %v1107 = vadd.f32 %v1000, %v1101
      %v1109 = vlaneseq
      %v1110 = vshrl.u32 %v1109, 7
      %v1111 = vsub.s32 0, %v1110
      %v1112 = vrot.slane %v711, %v1111
      %v1114 = vadd.f32 %v1104, %v1112
      %v1115 = vadd.f32 %v1105, %v1112
      %v1116 = vadd.f32 %v1106, %v1112
      %v1117 = vadd.f32 %v1107, %v1112
      %v1118 = vld [vmem:[%s569] sm:$0xff]
      %v1119 = vld [vmem:[%s569 + $0x8] sm:$0xff]
      %v1120 = vld [vmem:[%s569 + $0x10] sm:$0xff]
      %v1121 = vld [vmem:[%s569 + $0x18] sm:$0xff]
      %v1122 = vld [vmem:[%s8] sm:$0xff]
      %v1123 = vld [vmem:[%s8 + $0x8] sm:$0xff]
      %v1124 = vld [vmem:[%s8 + $0x10] sm:$0xff]
      %v1125 = vld [vmem:[%s8 + $0x18] sm:$0xff]
      %v1126 = vld [vmem:[%s8 + $0x20] sm:$0xff]
      %v1127 = vld [vmem:[%s8 + $0x28] sm:$0xff]
      %v1128 = vld [vmem:[%s8 + $0x30] sm:$0xff]
      %v1129 = vld [vmem:[%s8 + $0x38] sm:$0xff]
      %v1130 = vld [vmem:[%s9] sm:$0x1]
      %v1132 = vlaneseq
      %v1133 = vshrl.u32 %v1132, 7
      %v1134 = vsub.s32 0, %v1133
      %v1135 = vrot.slane %v1130, %v1134
      %v1138 = vsel %vm785, %v1118, 0
      %v1141 = vsel %vm785, %v1119, 0
      %v1144 = vsel %vm785, %v1120, 0
      %v1147 = vsel %vm785, %v1121, 0
      %1149 = vmatprep.subr.mxu0 0.0
      %1150 = vmatpush1.msra.mxu0 %v1122
      %1151 = vmatprep.subr.mxu0 0.0
      %1152 = vmatpush1.msra.mxu0 %v1123
      %1153 = vmatprep.subr.mxu0 0.0
      %1154 = vmatpush1.msra.mxu0 %v1124
      %1155 = vmatprep.subr.mxu0 0.0
      %1156 = vmatpush1.msra.mxu0 %v1125
      %1157 = vmatprep.subr.mxu0 0.0
      %1158 = vmatpush1.msra.mxu0 %v1126
      %1159 = vmatprep.subr.mxu0 0.0
      %1160 = vmatpush1.msra.mxu0 %v1127
      %1161 = vmatprep.subr.mxu0 0.0
      %1162 = vmatpush1.msra.mxu0 %v1128
      %1163 = vmatprep.subr.mxu0 0.0
      %1164 = vmatpush1.msra.mxu0 %v1129
      %1165 = vmatprep.subr.mxu0 0.0
      %1166 = vmatpush1.msra.mxu0 0.0
      %1167 = vmatprep.subr.mxu0 0.0
      %1168 = vmatpush1.msra.mxu0 0.0
      %1169 = vmatprep.subr.mxu0 0.0
      %1170 = vmatpush1.msra.mxu0 0.0
      %1171 = vmatprep.subr.mxu0 0.0
      %1172 = vmatpush1.msra.mxu0 0.0
      %1173 = vmatprep.subr.mxu0 0.0
      %1174 = vmatpush1.msra.mxu0 0.0
      %1175 = vmatprep.subr.mxu0 0.0
      %1176 = vmatpush1.msra.mxu0 0.0
      %1177 = vmatprep.subr.mxu0 0.0
      %1178 = vmatpush1.msra.mxu0 0.0
      %1179 = vmatprep.subr.mxu0 0.0
      %1180 = vmatpush1.msra.mxu0 0.0
      %1181 = vmatprep.subr.mxu0 0.0
      %1182 = vmatpush1.msra.mxu0 0.0
      %1183 = vmatprep.subr.mxu0 0.0
      %1184 = vmatpush1.msra.mxu0 0.0
      %1185 = vmatprep.subr.mxu0 0.0
      %1186 = vmatpush1.msra.mxu0 0.0
      %1187 = vmatprep.subr.mxu0 0.0
      %1188 = vmatpush1.msra.mxu0 0.0
      %1189 = vmatprep.subr.mxu0 0.0
      %1190 = vmatpush1.msra.mxu0 0.0
      %1191 = vmatprep.subr.mxu0 0.0
      %1192 = vmatpush1.msra.mxu0 0.0
      %1193 = vmatprep.subr.mxu0 0.0
      %1194 = vmatpush1.msra.mxu0 0.0
      %1195 = vmatprep.subr.mxu0 0.0
      %1196 = vmatpush1.msra.mxu0 0.0
      %1197 = vmatprep.subr.mxu0 0.0
      %1198 = vmatpush1.msra.mxu0 0.0
      %1199 = vmatprep.subr.mxu0 0.0
      %1200 = vmatpush1.msra.mxu0 0.0
      %1201 = vmatprep.subr.mxu0 0.0
      %1202 = vmatpush1.msra.mxu0 0.0
      %1203 = vmatprep.subr.mxu0 0.0
      %1204 = vmatpush1.msra.mxu0 0.0
      %1205 = vmatprep.subr.mxu0 0.0
      %1206 = vmatpush1.msra.mxu0 0.0
      %1207 = vmatprep.subr.mxu0 0.0
      %1208 = vmatpush1.msra.mxu0 0.0
      %1209 = vmatprep.subr.mxu0 0.0
      %1210 = vmatpush1.msra.mxu0 0.0
      %1211 = vmatprep.subr.mxu0 0.0
      %1212 = vmatpush1.msra.mxu0 0.0
      %1213 = vmatprep.mubr.f32.mxu0 0.0
      %1214 = vmatmul.mubr.f32.gmra.mrb[0].mxu0 %v1138
      %v1215 = vpop.f32.mrb[0].mxu0
      %v1216 = vadd.f32 %v1135, %v1215
      %v1217 = vpop.f32.mrb[0].mxu0
      %1218 = vmatprep.mubr.f32.mxu0 0.0
      %1219 = vmatmul.mubr.f32.gmra.mrb[0].mxu0 %v1141
      %v1220 = vpop.f32.mrb[0].mxu0
      %v1221 = vadd.f32 %v1135, %v1220
      %v1222 = vpop.f32.mrb[0].mxu0
      %1223 = vmatprep.mubr.f32.mxu0 0.0
      %1224 = vmatmul.mubr.f32.gmra.mrb[0].mxu0 %v1144
      %v1225 = vpop.f32.mrb[0].mxu0
      %v1226 = vadd.f32 %v1135, %v1225
      %v1227 = vpop.f32.mrb[0].mxu0
      %1228 = vmatprep.mubr.f32.mxu0 0.0
      %1229 = vmatmul.mubr.f32.gmra.mrb[0].mxu0 %v1147
      %v1230 = vpop.f32.mrb[0].mxu0
      %v1231 = vadd.f32 %v1135, %v1230
      %v1232 = vpop.f32.mrb[0].mxu0
      %1233 = vdwg.mxu0
      %v1234 = vadd.f32 %v1114, %v1216
      %v1235 = vadd.f32 %v1115, %v1221
      %v1236 = vadd.f32 %v1116, %v1226
      %v1237 = vadd.f32 %v1117, %v1231
      %1238 = vst.msk [vmem:[%s579] sm:$0xff] %vm636, %v1234
      %1239 = vst.msk [vmem:[%s579 + $0x8] sm:$0xff] %vm636, %v1235
      %1240 = vst.msk [vmem:[%s579 + $0x10] sm:$0xff] %vm636, %v1236
      %1241 = vst.msk [vmem:[%s579 + $0x18] sm:$0xff] %vm636, %v1237
      %s1242 = smul.u32 4, %s26
      %p1243 = scmp.lt.s32.totalorder %s25, 1
      %s1244 = scalar_select %p1243, %s25, 1
      %p1245 = scmp.lt.s32.totalorder %s1242, 7
      %s1246 = scalar_select %p1245, %s1242, 7
      %s1247 = smul.addr %s1244, 8
      %s1248 = sadd.s32 %s1246, %s1247
      %s1249 = smul.addr %s1248, 8
      %s1250 = scalar_lea.vmem %s10, %s1249
      // Predicated region
      $region61: #{pare_up_decoder_block_2d.6} parent=59 // pred_check
        %p1251 = pneg %p317
      $region62: #{pare_up_decoder_block_2d.6} parent=59 // pred_check_branch
        %1253 = sbr.rel (%p1251) target = $region64
      $region63: #{pare_up_decoder_block_2d.6} parent=59 // pred_region
        %s1254 = smul.u32 4, %s26
      $region64: #{pare_up_decoder_block_2d.6} parent=59 // pred_fallthru
        _
    $region60: #{pare_up_decoder_block_2d.6} parent=5 // pred_fallthru
      _
    %p1255 = scmp.le.s32.totalorder 2, %s16
    // Predicated region
    $region65: #{pare_up_decoder_block_2d.6} parent=5 // pred_check
      %p1256 = pneg %p1255
    $region66: #{pare_up_decoder_block_2d.6} parent=5 // pred_check_branch
      %1258 = sbr.rel (%p1256) target = $region68
    $region67: #{pare_up_decoder_block_2d.6} parent=5 // pred_region
      %s1259 = ssub.s32 %s16, 2
      // Predicated region
      $region69: #{pare_up_decoder_block_2d.6} parent=67 // pred_check
        %p1260 = pneg %p323
      $region70: #{pare_up_decoder_block_2d.6} parent=67 // pred_check_branch
        %1262 = sbr.rel (%p1260) target = $region72
      $region71: #{pare_up_decoder_block_2d.6} parent=67 // pred_region
        %s1263 = smul.u32 4, %s28
        %p1264 = scmp.lt.s32.totalorder %s27, 1
        %s1265 = scalar_select %p1264, %s27, 1
        %p1266 = scmp.lt.s32.totalorder %s1263, 7
        %s1267 = scalar_select %p1266, %s1263, 7
        %s1268 = smul.addr %s1265, 8
        %s1269 = sadd.s32 %s1267, %s1268
        %s1270 = smul.addr %s1269, 8
        %s1271 = scalar_lea.vmem %s10, %s1270
      $region72: #{pare_up_decoder_block_2d.6} parent=67 // pred_fallthru
        _
    $region68: #{pare_up_decoder_block_2d.6} parent=5 // pred_fallthru
      _
  $region6: #{pare_up_decoder_block_2d.6} parent=0 // loop_footer
    %s20 = sadd.s32 1, %s16
  $region7: #{pare_up_decoder_block_2d.6} parent=0 // loop_footer_branch
    %15 = sbr.rel target = $region3
  $region8: #{pare_up_decoder_block_2d.6} parent=0 // loop_exit
    _

// kernel: pare_up_decoder_block_2d.7
$region0: #{pare_up_decoder_block_2d.7}
  #allocation0 [shape = 'u32[]', space=smem, size = 0x4, offset = 0x4, fixed_abs, tag = 'smem constant byte address 0x4 - core index']
  #allocation1 [shape = 'u32[144,128]{1,0:T(1,128)}', space=vmem, size = 0x12000, scoped, tag = 'internal scratch']
  #allocation2 [shape = 'f32[6,8,32]{2,1,0:T(8,128)}', space=vmem, size = 0x6000, scoped, tag = 'scratch operand']
  %s0 = inlined_call_operand.vmem [shape: f32[2,8,8,32], index: 0, kind: input, shape index: {}, may-alias: {0,1,2}]
  %s1 = inlined_call_operand.vmem [shape: f32[2,8,8,32], index: 1, kind: input, shape index: {}, may-alias: {0,1,2}]
  %s2 = inlined_call_operand.vmem [shape: f32[2,8,8,32], index: 2, kind: input, shape index: {}, may-alias: {0,1,2}]
  %s3 = inlined_call_operand.vmem [shape: f32[4,2,64,32], index: 3, kind: input, shape index: {}]
  %s4 = inlined_call_operand.vmem [shape: f32[1,32], index: 4, kind: input, shape index: {}]
  %s5 = inlined_call_operand.vmem [shape: f32[2,16,8,64], index: 5, kind: output, shape index: {}]
  %s6 = sld [smem:[#allocation0]]
  $region53: #{pare_up_decoder_block_2d.7} parent=0
    _
  %s8 = ssub.s32 1, %s6
  %s9 = scalar_select 0, %s8, %s6
  loop: start=0, step=1, limit=6
  $region2: #{pare_up_decoder_block_2d.7} parent=0 // loop_pre_header
    _
  $region3: #{pare_up_decoder_block_2d.7} parent=0 // loop_header
    %s11 = sphi 0, %s15
    %p12 = scmp.ge.s32.totalorder %s11, 6
    %s18 = sphi 0, %s30
    %s19 = sphi 0, %s26
    %s20 = sphi 0, %s18
    %s21 = sphi 0, %s19
    %s22 = sphi 0, %s20
    %s23 = sphi 0, %s21
    %s35 = sphi 0, %s37
    %s38 = sphi 0, %s35
    %s39 = sphi 0, %s38
    %s55 = sphi 0, %s39
    %s71 = sphi 0, %s73
    %s74 = sphi 0, %s71
    %s75 = sphi 0, %s74
    %s91 = sphi 0, %s75
    %s107 = sphi 0, %s109
    %s110 = sphi 0, %s107
    %s111 = sphi 0, %s110
    %s127 = sphi 0, %s111
    %s131 = sphi 0, %s131
    %s133 = sphi 0, %s131
    %s134 = sphi 0, %s133
    %s148 = sphi 0, %s134
    %s152 = sphi 0, %s152
    %s154 = sphi 0, %s152
    %s155 = sphi 0, %s154
    %s169 = sphi 0, %s155
    %s177 = sphi 0, %s179
    %s180 = sphi 0, %s177
    %s181 = sphi 0, %s180
    %s197 = sphi 0, %s181
  $region4: #{pare_up_decoder_block_2d.7} parent=0 // loop_header_branch
    %14 = sbr.rel (%p12) target = $region8
  $region5: #{pare_up_decoder_block_2d.7} parent=0 // loop_body
    %s16 = ssub.s32 %s11, 1
    %s17 = ssub.s32 %s11, 2
    %s24 = sadd.s32 1, %s19
    %p25 = scmp.ge.s32.totalorder %s24, 2
    %s26 = scalar_select %p25, 0, %s24
    %s27 = sadd.s32 1, %s18
    %s28 = scalar_select %p25, %s27, %s18
    %p29 = scmp.ge.s32.totalorder %s28, 2
    %s30 = scalar_select %p29, 0, %s28
    %s31 = ssub.s32 %s18, %s30
    %s32 = ssub.s32 %s19, %s26
    %s33 = sor.u32 %s31, %s32
    %p34 = scmp.eq.s32.totalorder %s33, 0
    %s36 = sadd.s32 %s35, 1
    %s37 = scalar_select %p34, %s35, %s36
    %p40 = pneg %p34
    %p41 = scmp.eq.s32.totalorder %s11, 3
    %p42 = por %p40, %p41
    %p43 = scmp.ne.s32.totalorder %s35, %s38
    %p44 = scmp.eq.s32.totalorder %s11, 0
    %p45 = por %p43, %p44
    %p46 = scmp.ne.s32.totalorder %s35, %s38
    %p47 = scmp.eq.s32.totalorder %s16, 3
    %p48 = por %p46, %p47
    %p49 = scmp.ne.s32.totalorder %s38, %s39
    %p50 = scmp.eq.s32.totalorder %s16, 0
    %p51 = por %p49, %p50
    %p52 = scmp.ne.s32.totalorder %s38, %s39
    %p53 = scmp.eq.s32.totalorder %s17, 3
    %p54 = por %p52, %p53
    %p56 = scmp.ne.s32.totalorder %s39, %s55
    %p57 = scmp.eq.s32.totalorder %s17, 0
    %p58 = por %p56, %p57
    %s59 = smul.u32 %s19, 4
    %s60 = ssub.s32 %s59, 1
    %p61 = scmp.gt.s32.totalorder %s60, 0
    %s62 = scalar_select %p61, %s60, 0
    %s63 = smul.u32 %s26, 4
    %s64 = ssub.s32 %s63, 1
    %p65 = scmp.gt.s32.totalorder %s64, 0
    %s66 = scalar_select %p65, %s64, 0
    %s67 = ssub.s32 %s18, %s30
    %s68 = ssub.s32 %s62, %s66
    %s69 = sor.u32 %s67, %s68
    %p70 = scmp.eq.s32.totalorder %s69, 0
    %s72 = sadd.s32 %s71, 1
    %s73 = scalar_select %p70, %s71, %s72
    %p76 = pneg %p70
    %p77 = scmp.eq.s32.totalorder %s11, 3
    %p78 = por %p76, %p77
    %p79 = scmp.ne.s32.totalorder %s71, %s74
    %p80 = scmp.eq.s32.totalorder %s11, 0
    %p81 = por %p79, %p80
    %p82 = scmp.ne.s32.totalorder %s71, %s74
    %p83 = scmp.eq.s32.totalorder %s16, 3
    %p84 = por %p82, %p83
    %p85 = scmp.ne.s32.totalorder %s74, %s75
    %p86 = scmp.eq.s32.totalorder %s16, 0
    %p87 = por %p85, %p86
    %p88 = scmp.ne.s32.totalorder %s74, %s75
    %p89 = scmp.eq.s32.totalorder %s17, 3
    %p90 = por %p88, %p89
    %p92 = scmp.ne.s32.totalorder %s75, %s91
    %p93 = scmp.eq.s32.totalorder %s17, 0
    %p94 = por %p92, %p93
    %s95 = smul.u32 %s19, 4
    %s96 = sadd.s32 %s95, 4
    %p97 = scmp.lt.s32.totalorder %s96, 7
    %s98 = scalar_select %p97, %s96, 7
    %s99 = smul.u32 %s26, 4
    %s100 = sadd.s32 %s99, 4
    %p101 = scmp.lt.s32.totalorder %s100, 7
    %s102 = scalar_select %p101, %s100, 7
    %s103 = ssub.s32 %s18, %s30
    %s104 = ssub.s32 %s98, %s102
    %s105 = sor.u32 %s103, %s104
    %p106 = scmp.eq.s32.totalorder %s105, 0
    %s108 = sadd.s32 %s107, 1
    %s109 = scalar_select %p106, %s107, %s108
    %p112 = pneg %p106
    %p113 = scmp.eq.s32.totalorder %s11, 3
    %p114 = por %p112, %p113
    %p115 = scmp.ne.s32.totalorder %s107, %s110
    %p116 = scmp.eq.s32.totalorder %s11, 0
    %p117 = por %p115, %p116
    %p118 = scmp.ne.s32.totalorder %s107, %s110
    %p119 = scmp.eq.s32.totalorder %s16, 3
    %p120 = por %p118, %p119
    %p121 = scmp.ne.s32.totalorder %s110, %s111
    %p122 = scmp.eq.s32.totalorder %s16, 0
    %p123 = por %p121, %p122
    %p124 = scmp.ne.s32.totalorder %s110, %s111
    %p125 = scmp.eq.s32.totalorder %s17, 3
    %p126 = por %p124, %p125
    %p128 = scmp.ne.s32.totalorder %s111, %s127
    %p129 = scmp.eq.s32.totalorder %s17, 0
    %p130 = por %p128, %p129
    %s132 = sadd.s32 %s131, 1
    %p135 = scmp.eq.s32.totalorder %s11, 3
    %p136 = scmp.ne.s32.totalorder %s131, %s133
    %p137 = scmp.eq.s32.totalorder %s11, 0
    %p138 = por %p136, %p137
    %p139 = scmp.ne.s32.totalorder %s131, %s133
    %p140 = scmp.eq.s32.totalorder %s16, 3
    %p141 = por %p139, %p140
    %p142 = scmp.ne.s32.totalorder %s133, %s134
    %p143 = scmp.eq.s32.totalorder %s16, 0
    %p144 = por %p142, %p143
    %p145 = scmp.ne.s32.totalorder %s133, %s134
    %p146 = scmp.eq.s32.totalorder %s17, 3
    %p147 = por %p145, %p146
    %p149 = scmp.ne.s32.totalorder %s134, %s148
    %p150 = scmp.eq.s32.totalorder %s17, 0
    %p151 = por %p149, %p150
    %s153 = sadd.s32 %s152, 1
    %p156 = scmp.eq.s32.totalorder %s11, 3
    %p157 = scmp.ne.s32.totalorder %s152, %s154
    %p158 = scmp.eq.s32.totalorder %s11, 0
    %p159 = por %p157, %p158
    %p160 = scmp.ne.s32.totalorder %s152, %s154
    %p161 = scmp.eq.s32.totalorder %s16, 3
    %p162 = por %p160, %p161
    %p163 = scmp.ne.s32.totalorder %s154, %s155
    %p164 = scmp.eq.s32.totalorder %s16, 0
    %p165 = por %p163, %p164
    %p166 = scmp.ne.s32.totalorder %s154, %s155
    %p167 = scmp.eq.s32.totalorder %s17, 3
    %p168 = por %p166, %p167
    %p170 = scmp.ne.s32.totalorder %s155, %s169
    %p171 = scmp.eq.s32.totalorder %s17, 0
    %p172 = por %p170, %p171
    %s173 = ssub.s32 %s18, %s30
    %s174 = ssub.s32 %s19, %s26
    %s175 = sor.u32 %s173, %s174
    %p176 = scmp.eq.s32.totalorder %s175, 0
    %s178 = sadd.s32 %s177, 1
    %s179 = scalar_select %p176, %s177, %s178
    %p182 = pneg %p176
    %p183 = scmp.eq.s32.totalorder %s11, 3
    %p184 = por %p182, %p183
    %p185 = scmp.ne.s32.totalorder %s177, %s180
    %p186 = scmp.eq.s32.totalorder %s11, 0
    %p187 = por %p185, %p186
    %p188 = scmp.ne.s32.totalorder %s177, %s180
    %p189 = scmp.eq.s32.totalorder %s16, 3
    %p190 = por %p188, %p189
    %p191 = scmp.ne.s32.totalorder %s180, %s181
    %p192 = scmp.eq.s32.totalorder %s16, 0
    %p193 = por %p191, %p192
    %p194 = scmp.ne.s32.totalorder %s180, %s181
    %p195 = scmp.eq.s32.totalorder %s17, 3
    %p196 = por %p194, %p195
    %p198 = scmp.ne.s32.totalorder %s181, %s197
    %p199 = scmp.eq.s32.totalorder %s17, 0
    %p200 = por %p198, %p199
    %p201 = scmp.le.s32.totalorder 1, %s11
    %p202 = scmp.lt.s32.totalorder %s11, 5
    %p203 = pnand %p201, %p202
    %p204 = pneg %p203
    // Predicated region
    $region9: #{pare_up_decoder_block_2d.7} parent=5 // pred_check
      _
    $region10: #{pare_up_decoder_block_2d.7} parent=5 // pred_check_branch
      %206 = sbr.rel (%p203) target = $region12
    $region11: #{pare_up_decoder_block_2d.7} parent=5 // pred_region
      %s207 = ssub.s32 %s11, 1
      // Predicated region
      $region13: #{pare_up_decoder_block_2d.7} parent=11 // pred_check
        %p208 = pneg %p144
      $region14: #{pare_up_decoder_block_2d.7} parent=11 // pred_check_branch
        %210 = sbr.rel (%p208) target = $region16
      $region15: #{pare_up_decoder_block_2d.7} parent=11 // pred_region
        _
      $region16: #{pare_up_decoder_block_2d.7} parent=11 // pred_fallthru
        _
      // Predicated region
      $region17: #{pare_up_decoder_block_2d.7} parent=11 // pred_check
        %p211 = pneg %p165
      $region18: #{pare_up_decoder_block_2d.7} parent=11 // pred_check_branch
        %213 = sbr.rel (%p211) target = $region20
      $region19: #{pare_up_decoder_block_2d.7} parent=11 // pred_region
        _
      $region20: #{pare_up_decoder_block_2d.7} parent=11 // pred_fallthru
        _
    $region12: #{pare_up_decoder_block_2d.7} parent=5 // pred_fallthru
      _
    %p214 = scmp.lt.s32.totalorder %s11, 4
    // Predicated region
    $region21: #{pare_up_decoder_block_2d.7} parent=5 // pred_check
      %p215 = pneg %p214
    $region22: #{pare_up_decoder_block_2d.7} parent=5 // pred_check_branch
      %217 = sbr.rel (%p215) target = $region24
    $region23: #{pare_up_decoder_block_2d.7} parent=5 // pred_region
      // Predicated region
      $region25: #{pare_up_decoder_block_2d.7} parent=23 // pred_check
        %p218 = pneg %p45
      $region26: #{pare_up_decoder_block_2d.7} parent=23 // pred_check_branch
        %220 = sbr.rel (%p218) target = $region28
      $region27: #{pare_up_decoder_block_2d.7} parent=23 // pred_region
        %s221 = smul.u32 4, %s19
        %p222 = scmp.lt.s32.totalorder %s18, 1
        %s223 = scalar_select %p222, %s18, 1
        %p224 = scmp.lt.s32.totalorder %s221, 7
        %s225 = scalar_select %p224, %s221, 7
        %s226 = smul.addr %s223, 8
        %s227 = sadd.s32 %s225, %s226
        %s228 = smul.addr %s227, 8
        %s229 = scalar_lea.vmem %s0, %s228
        %s230 = smul.u32 4, %s19
      $region28: #{pare_up_decoder_block_2d.7} parent=23 // pred_fallthru
        _
      // Predicated region
      $region29: #{pare_up_decoder_block_2d.7} parent=23 // pred_check
        %p231 = pneg %p81
      $region30: #{pare_up_decoder_block_2d.7} parent=23 // pred_check_branch
        %233 = sbr.rel (%p231) target = $region32
      $region31: #{pare_up_decoder_block_2d.7} parent=23 // pred_region
        %s234 = smul.u32 %s19, 4
        %s235 = ssub.s32 %s234, 1
        %p236 = scmp.gt.s32.totalorder %s235, 0
        %s237 = scalar_select %p236, %s235, 0
        %p238 = scmp.lt.s32.totalorder %s18, 1
        %s239 = scalar_select %p238, %s18, 1
        %p240 = scmp.lt.s32.totalorder %s237, 7
        %s241 = scalar_select %p240, %s237, 7
        %s242 = smul.addr %s239, 8
        %s243 = sadd.s32 %s241, %s242
        %s244 = smul.addr %s243, 8
        %s245 = scalar_lea.vmem %s1, %s244
        %s246 = smul.u32 %s19, 4
        %s247 = ssub.s32 %s246, 1
        %p248 = scmp.gt.s32.totalorder %s247, 0
        %s249 = scalar_select %p248, %s247, 0
      $region32: #{pare_up_decoder_block_2d.7} parent=23 // pred_fallthru
        _
      // Predicated region
      $region33: #{pare_up_decoder_block_2d.7} parent=23 // pred_check
        %p250 = pneg %p117
      $region34: #{pare_up_decoder_block_2d.7} parent=23 // pred_check_branch
        %252 = sbr.rel (%p250) target = $region36
      $region35: #{pare_up_decoder_block_2d.7} parent=23 // pred_region
        %s253 = smul.u32 %s19, 4
        %s254 = sadd.s32 %s253, 4
        %p255 = scmp.lt.s32.totalorder %s254, 7
        %s256 = scalar_select %p255, %s254, 7
        %p257 = scmp.lt.s32.totalorder %s18, 1
        %s258 = scalar_select %p257, %s18, 1
        %p259 = scmp.lt.s32.totalorder %s256, 7
        %s260 = scalar_select %p259, %s256, 7
        %s261 = smul.addr %s258, 8
        %s262 = sadd.s32 %s260, %s261
        %s263 = smul.addr %s262, 8
        %s264 = scalar_lea.vmem %s2, %s263
        %s265 = smul.u32 %s19, 4
        %s266 = sadd.s32 %s265, 4
        %p267 = scmp.lt.s32.totalorder %s266, 7
        %s268 = scalar_select %p267, %s266, 7
      $region36: #{pare_up_decoder_block_2d.7} parent=23 // pred_fallthru
        _
    $region24: #{pare_up_decoder_block_2d.7} parent=5 // pred_fallthru
      _
    %p269 = scmp.le.s32.totalorder 1, %s11
    %p270 = scmp.lt.s32.totalorder %s11, 5
    %p271 = pnand %p269, %p270
    %p272 = pneg %p271
    // Predicated region
    $region37: #{pare_up_decoder_block_2d.7} parent=5 // pred_check
      _
    $region38: #{pare_up_decoder_block_2d.7} parent=5 // pred_check_branch
      %274 = sbr.rel (%p271) target = $region40
    $region39: #{pare_up_decoder_block_2d.7} parent=5 // pred_region
      %s275 = ssub.s32 %s11, 1
      %s276 = smul.u32 4, %s21
      %p277 = scmp.lt.s32.totalorder %s20, 1
      %s278 = scalar_select %p277, %s20, 1
      %p279 = scmp.lt.s32.totalorder %s276, 7
      %s280 = scalar_select %p279, %s276, 7
      %s281 = smul.addr %s278, 8
      %s282 = sadd.s32 %s280, %s281
      %s283 = smul.addr %s282, 8
      %s284 = scalar_lea.vmem %s0, %s283
      %p285 = pneg %p51
      %p286 = pneg %p48
      %s287 = smul.u32 %s21, 4
      %s288 = ssub.s32 %s287, 1
      %p289 = scmp.gt.s32.totalorder %s288, 0
      %s290 = scalar_select %p289, %s288, 0
      %p291 = scmp.lt.s32.totalorder %s20, 1
      %s292 = scalar_select %p291, %s20, 1
      %p293 = scmp.lt.s32.totalorder %s290, 7
      %s294 = scalar_select %p293, %s290, 7
      %s295 = smul.addr %s292, 8
      %s296 = sadd.s32 %s294, %s295
      %s297 = smul.addr %s296, 8
      %s298 = scalar_lea.vmem %s1, %s297
      %p299 = pneg %p87
      %p300 = pneg %p84
      %s301 = smul.u32 %s21, 4
      %s302 = sadd.s32 %s301, 4
      %p303 = scmp.lt.s32.totalorder %s302, 7
      %s304 = scalar_select %p303, %s302, 7
      %p305 = scmp.lt.s32.totalorder %s20, 1
      %s306 = scalar_select %p305, %s20, 1
      %p307 = scmp.lt.s32.totalorder %s304, 7
      %s308 = scalar_select %p307, %s304, 7
      %s309 = smul.addr %s306, 8
      %s310 = sadd.s32 %s308, %s309
      %s311 = smul.addr %s310, 8
      %s312 = scalar_lea.vmem %s2, %s311
      %p313 = pneg %p123
      %p314 = pneg %p120
      %p315 = pneg %p144
      %p316 = pneg %p141
      %p317 = pneg %p165
      %p318 = pneg %p162
      %p319 = pneg %p193
      %p320 = pneg %p190
      %s321 = smul.u32 8, %s21
      %p322 = scmp.lt.s32.totalorder %s20, 1
      %s323 = scalar_select %p322, %s20, 1
      %p324 = scmp.lt.s32.totalorder %s321, 15
      %s325 = scalar_select %p324, %s321, 15
      %s326 = smul.addr %s323, 16
      %s327 = sadd.s32 %s325, %s326
      %s328 = smul.addr %s327, 8
      %s329 = scalar_lea.vmem %s5, %s328
      %s330 = smul.u32 4, %s21
      %p331 = scmp.lt.s32.totalorder %s20, 1
      %s332 = scalar_select %p331, %s20, 1
      %p333 = scmp.lt.s32.totalorder %s330, 7
      %s334 = scalar_select %p333, %s330, 7
      %s335 = smul.addr %s332, 8
      %s336 = sadd.s32 %s334, %s335
      %s337 = smul.addr %s336, 8
      %s338 = scalar_lea.vmem %s0, %s337
      %s339 = smul.u32 4, %s21
      %s340 = smul.u32 %s21, 4
      %s341 = ssub.s32 %s340, 1
      %p342 = scmp.gt.s32.totalorder %s341, 0
      %s343 = scalar_select %p342, %s341, 0
      %p344 = scmp.lt.s32.totalorder %s20, 1
      %s345 = scalar_select %p344, %s20, 1
      %p346 = scmp.lt.s32.totalorder %s343, 7
      %s347 = scalar_select %p346, %s343, 7
      %s348 = smul.addr %s345, 8
      %s349 = sadd.s32 %s347, %s348
      %s350 = smul.addr %s349, 8
      %s351 = scalar_lea.vmem %s1, %s350
      %s352 = smul.u32 %s21, 4
      %s353 = ssub.s32 %s352, 1
      %p354 = scmp.gt.s32.totalorder %s353, 0
      %s355 = scalar_select %p354, %s353, 0
      %s356 = smul.u32 %s21, 4
      %s357 = sadd.s32 %s356, 4
      %p358 = scmp.lt.s32.totalorder %s357, 7
      %s359 = scalar_select %p358, %s357, 7
      %p360 = scmp.lt.s32.totalorder %s20, 1
      %s361 = scalar_select %p360, %s20, 1
      %p362 = scmp.lt.s32.totalorder %s359, 7
      %s363 = scalar_select %p362, %s359, 7
      %s364 = smul.addr %s361, 8
      %s365 = sadd.s32 %s363, %s364
      %s366 = smul.addr %s365, 8
      %s367 = scalar_lea.vmem %s2, %s366
      %s368 = smul.u32 %s21, 4
      %s369 = sadd.s32 %s368, 4
      %p370 = scmp.lt.s32.totalorder %s369, 7
      %s371 = scalar_select %p370, %s369, 7
      %s372 = smul.u32 8, %s21
      %p373 = scmp.lt.s32.totalorder %s20, 1
      %s374 = scalar_select %p373, %s20, 1
      %p375 = scmp.lt.s32.totalorder %s372, 15
      %s376 = scalar_select %p375, %s372, 15
      %s377 = smul.addr %s374, 16
      %s378 = sadd.s32 %s376, %s377
      %s379 = smul.addr %s378, 8
      %s380 = scalar_lea.vmem %s5, %s379
      %s381 = smul.u32 8, %s21
      %v382 = vld [vmem:[%s338] sm:$0xff]
      %v383 = vld [vmem:[%s338 + $0x8] sm:$0xff]
      %v384 = vld [vmem:[%s338 + $0x10] sm:$0xff]
      %v385 = vld [vmem:[%s338 + $0x18] sm:$0xff]
      %s386 = scalar_lea.vmem [#allocation2], 8
      %vm387 = vcmask 261120
      %388 = vst.msk [vmem:[%s386] sm:$0xff] %vm387, %v382
      %389 = vst.msk [vmem:[%s386 + $0x8] sm:$0xff] %vm387, %v383
      %390 = vst.msk [vmem:[%s386 + $0x10] sm:$0xff] %vm387, %v384
      %391 = vst.msk [vmem:[%s386 + $0x18] sm:$0xff] %vm387, %v385
      %p392 = scmp.gt.s32.totalorder %s21, 0
      %v393 = vld [vmem:[%s351] sm:$0xff]
      %s394 = scalar_select %p392, 1, 0
      %v395 = vstv %s394
      %vm396 = vcmp.eq.s32.totalorder %v395, 1
      %v397 = vsel %vm396, %v393, 0.0
      %398 = vst.msk [vmem:[#allocation2] sm:$0xff] %vm387, %v397
      %p399 = scmp.lt.s32.totalorder %s21, 1
      %v400 = vld [vmem:[%s367] sm:$0xff]
      %s401 = scalar_select %p399, 1, 0
      %v402 = vstv %s401
      %vm403 = vcmp.eq.s32.totalorder %v402, 1
      %v404 = vsel %vm403, %v400, 0.0
      %s405 = scalar_lea.vmem [#allocation2], 40
      %406 = vst.msk [vmem:[%s405] sm:$0xff] %vm387, %v404
      %v407 = vld [vmem:[#allocation2] sm:$0xff]
      %v408 = vld [vmem:[#allocation2 + $0x8] sm:$0xff]
      %v409 = vld [vmem:[#allocation2 + $0x10] sm:$0xff]
      %v410 = vld [vmem:[#allocation2 + $0x18] sm:$0xff]
      %v411 = vld [vmem:[#allocation2 + $0x20] sm:$0xff]
      %v412 = vld [vmem:[#allocation2 + $0x28] sm:$0xff]
      %v419 = vrot.slane %v407, 7
      %v420 = vrot.slane %v408, 7
      %v421 = vrot.slane %v409, 7
      %v422 = vrot.slane %v410, 7
      %v423 = vrot.slane %v411, 7
      %v424 = vrot.slane %v412, 7
      %vm431 = vcmask 1040384
      %v432 = vsel %vm431, 0.0, %v419
      %v433 = vsel %vm431, 0.0, %v420
      %v434 = vsel %vm431, 0.0, %v421
      %v435 = vsel %vm431, 0.0, %v422
      %v436 = vsel %vm431, 0.0, %v423
      %v437 = vsel %vm431, 0.0, %v424
      %v438 = vsel %vm431, %v419, 0.0
      %v439 = vsel %vm431, %v420, 0.0
      %v440 = vsel %vm431, %v421, 0.0
      %v441 = vsel %vm431, %v422, 0.0
      %v442 = vsel %vm431, %v423, 0.0
      %v443 = vsel %vm431, %v424, 0.0
      %v444 = vld [vmem:[%s4] sm:$0x1]
      %445 = vrot.lane.b32.xlu0 %v407, 32
      %v446 = vpop.permute.xlu0 %445
      %447 = vrot.lane.b32.xlu0 %v408, 32
      %v448 = vpop.permute.xlu0 %447
      %449 = vrot.lane.b32.xlu0 %v409, 32
      %v450 = vpop.permute.xlu0 %449
      %451 = vrot.lane.b32.xlu0 %v410, 32
      %v452 = vpop.permute.xlu0 %451
      %453 = vrot.lane.b32.xlu0 %v411, 32
      %v454 = vpop.permute.xlu0 %453
      %455 = vrot.lane.b32.xlu0 %v412, 32
      %v456 = vpop.permute.xlu0 %455
      %v463 = vsel %vm387, %v432, %v446
      %v464 = vsel %vm387, %v433, %v448
      %v465 = vsel %vm387, %v434, %v450
      %v466 = vsel %vm387, %v435, %v452
      %v467 = vsel %vm387, %v436, %v454
      %v468 = vsel %vm387, %v437, %v456
      %vm481 = vcmask 1045504
      %v482 = vrot.slane %v432, 2
      %v483 = vrot.slane %v438, 2
      %v484 = vsel %vm481, %v482, %v483
      %v485 = vrot.slane %v433, 2
      %v486 = vrot.slane %v439, 2
      %v487 = vsel %vm481, %v485, %v486
      %v488 = vrot.slane %v434, 2
      %v489 = vrot.slane %v440, 2
      %v490 = vsel %vm481, %v488, %v489
      %v491 = vrot.slane %v435, 2
      %v492 = vrot.slane %v441, 2
      %v493 = vsel %vm481, %v491, %v492
      %v494 = vrot.slane %v436, 2
      %v495 = vrot.slane %v442, 2
      %v496 = vsel %vm481, %v494, %v495
      %v497 = vrot.slane %v437, 2
      %v498 = vrot.slane %v443, 2
      %v499 = vsel %vm481, %v497, %v498
      %500 = vrot.lane.b32.xlu0 %v484, 32
      %v501 = vpop.permute.xlu0 %500
      %502 = vrot.lane.b32.xlu0 %v487, 32
      %v503 = vpop.permute.xlu0 %502
      %504 = vrot.lane.b32.xlu0 %v490, 32
      %v505 = vpop.permute.xlu0 %504
      %506 = vrot.lane.b32.xlu0 %v493, 32
      %v507 = vpop.permute.xlu0 %506
      %508 = vrot.lane.b32.xlu0 %v496, 32
      %v509 = vpop.permute.xlu0 %508
      %510 = vrot.lane.b32.xlu0 %v499, 32
      %v511 = vpop.permute.xlu0 %510
      %v518 = vsel %vm387, %v407, %v501
      %v519 = vsel %vm387, %v408, %v503
      %v520 = vsel %vm387, %v409, %v505
      %v521 = vsel %vm387, %v410, %v507
      %v522 = vsel %vm387, %v411, %v509
      %v523 = vsel %vm387, %v412, %v511
      %v524 = vld [vmem:[%s3] sm:$0xff]
      %v525 = vld [vmem:[%s3 + $0x8] sm:$0xff]
      %v526 = vld [vmem:[%s3 + $0x10] sm:$0xff]
      %v527 = vld [vmem:[%s3 + $0x18] sm:$0xff]
      %v528 = vld [vmem:[%s3 + $0x20] sm:$0xff]
      %v529 = vld [vmem:[%s3 + $0x28] sm:$0xff]
      %v530 = vld [vmem:[%s3 + $0x30] sm:$0xff]
      %v531 = vld [vmem:[%s3 + $0x38] sm:$0xff]
      %s532 = scalar_lea.vmem %s3, 64
      %v533 = vld [vmem:[%s532] sm:$0xff]
      %v534 = vld [vmem:[%s532 + $0x8] sm:$0xff]
      %v535 = vld [vmem:[%s532 + $0x10] sm:$0xff]
      %v536 = vld [vmem:[%s532 + $0x18] sm:$0xff]
      %v537 = vld [vmem:[%s532 + $0x20] sm:$0xff]
      %v538 = vld [vmem:[%s532 + $0x28] sm:$0xff]
      %v539 = vld [vmem:[%s532 + $0x30] sm:$0xff]
      %v540 = vld [vmem:[%s532 + $0x38] sm:$0xff]
      %vm541 = vcmask 523264
      %v543 = vsel %vm541, %v464, 0
      %v546 = vsel %vm541, %v465, 0
      %v549 = vsel %vm541, %v466, 0
      %v552 = vsel %vm541, %v467, 0
      %554 = vmatprep.subr.mxu0 0.0
      %555 = vmatpush1.msra.mxu0 %v533
      %556 = vmatprep.subr.mxu0 0.0
      %557 = vmatpush1.msra.mxu0 %v534
      %558 = vmatprep.subr.mxu0 0.0
      %559 = vmatpush1.msra.mxu0 %v535
      %560 = vmatprep.subr.mxu0 0.0
      %561 = vmatpush1.msra.mxu0 %v536
      %562 = vmatprep.subr.mxu0 0.0
      %563 = vmatpush1.msra.mxu0 %v537
      %564 = vmatprep.subr.mxu0 0.0
      %565 = vmatpush1.msra.mxu0 %v538
      %566 = vmatprep.subr.mxu0 0.0
      %567 = vmatpush1.msra.mxu0 %v539
      %568 = vmatprep.subr.mxu0 0.0
      %569 = vmatpush1.msra.mxu0 %v540
      %570 = vmatprep.subr.mxu0 0.0
      %571 = vmatpush1.msra.mxu0 0.0
      %572 = vmatprep.subr.mxu0 0.0
      %573 = vmatpush1.msra.mxu0 0.0
      %574 = vmatprep.subr.mxu0 0.0
      %575 = vmatpush1.msra.mxu0 0.0
      %576 = vmatprep.subr.mxu0 0.0
      %577 = vmatpush1.msra.mxu0 0.0
      %578 = vmatprep.subr.mxu0 0.0
      %579 = vmatpush1.msra.mxu0 0.0
      %580 = vmatprep.subr.mxu0 0.0
      %581 = vmatpush1.msra.mxu0 0.0
      %582 = vmatprep.subr.mxu0 0.0
      %583 = vmatpush1.msra.mxu0 0.0
      %584 = vmatprep.subr.mxu0 0.0
      %585 = vmatpush1.msra.mxu0 0.0
      %586 = vmatprep.subr.mxu0 0.0
      %587 = vmatpush1.msra.mxu0 0.0
      %588 = vmatprep.subr.mxu0 0.0
      %589 = vmatpush1.msra.mxu0 0.0
      %590 = vmatprep.subr.mxu0 0.0
      %591 = vmatpush1.msra.mxu0 0.0
      %592 = vmatprep.subr.mxu0 0.0
      %593 = vmatpush1.msra.mxu0 0.0
      %594 = vmatprep.subr.mxu0 0.0
      %595 = vmatpush1.msra.mxu0 0.0
      %596 = vmatprep.subr.mxu0 0.0
      %597 = vmatpush1.msra.mxu0 0.0
      %598 = vmatprep.subr.mxu0 0.0
      %599 = vmatpush1.msra.mxu0 0.0
      %600 = vmatprep.subr.mxu0 0.0
      %601 = vmatpush1.msra.mxu0 0.0
      %602 = vmatprep.subr.mxu0 0.0
      %603 = vmatpush1.msra.mxu0 0.0
      %604 = vmatprep.subr.mxu0 0.0
      %605 = vmatpush1.msra.mxu0 0.0
      %606 = vmatprep.subr.mxu0 0.0
      %607 = vmatpush1.msra.mxu0 0.0
      %608 = vmatprep.subr.mxu0 0.0
      %609 = vmatpush1.msra.mxu0 0.0
      %610 = vmatprep.subr.mxu0 0.0
      %611 = vmatpush1.msra.mxu0 0.0
      %612 = vmatprep.subr.mxu0 0.0
      %613 = vmatpush1.msra.mxu0 0.0
      %614 = vmatprep.subr.mxu0 0.0
      %615 = vmatpush1.msra.mxu0 0.0
      %616 = vmatprep.subr.mxu0 0.0
      %617 = vmatpush1.msra.mxu0 0.0
      %618 = vmatprep.mubr.f32.mxu0 0.0
      %619 = vmatmul.mubr.f32.gmra.mrb[0].mxu0 %v543
      %v620 = vpop.f32.mrb[0].mxu0
      %v621 = vadd.f32 0.0, %v620
      %v622 = vpop.f32.mrb[0].mxu0
      %623 = vmatprep.mubr.f32.mxu0 0.0
      %624 = vmatmul.mubr.f32.gmra.mrb[0].mxu0 %v546
      %v625 = vpop.f32.mrb[0].mxu0
      %v626 = vadd.f32 0.0, %v625
      %v627 = vpop.f32.mrb[0].mxu0
      %628 = vmatprep.mubr.f32.mxu0 0.0
      %629 = vmatmul.mubr.f32.gmra.mrb[0].mxu0 %v549
      %v630 = vpop.f32.mrb[0].mxu0
      %v631 = vadd.f32 0.0, %v630
      %v632 = vpop.f32.mrb[0].mxu0
      %633 = vmatprep.mubr.f32.mxu0 0.0
      %634 = vmatmul.mubr.f32.gmra.mrb[0].mxu0 %v552
      %v635 = vpop.f32.mrb[0].mxu0
      %v636 = vadd.f32 0.0, %v635
      %v637 = vpop.f32.mrb[0].mxu0
      %638 = vdwg.mxu0
      %v640 = vsel %vm541, %v463, 0
      %642 = vmatprep.subr.mxu0 0.0
      %643 = vmatpush1.msra.mxu0 %v524
      %644 = vmatprep.subr.mxu0 0.0
      %645 = vmatpush1.msra.mxu0 %v525
      %646 = vmatprep.subr.mxu0 0.0
      %647 = vmatpush1.msra.mxu0 %v526
      %648 = vmatprep.subr.mxu0 0.0
      %649 = vmatpush1.msra.mxu0 %v527
      %650 = vmatprep.subr.mxu0 0.0
      %651 = vmatpush1.msra.mxu0 %v528
      %652 = vmatprep.subr.mxu0 0.0
      %653 = vmatpush1.msra.mxu0 %v529
      %654 = vmatprep.subr.mxu0 0.0
      %655 = vmatpush1.msra.mxu0 %v530
      %656 = vmatprep.subr.mxu0 0.0
      %657 = vmatpush1.msra.mxu0 %v531
      %658 = vmatprep.subr.mxu0 0.0
      %659 = vmatpush1.msra.mxu0 0.0
      %660 = vmatprep.subr.mxu0 0.0
      %661 = vmatpush1.msra.mxu0 0.0
      %662 = vmatprep.subr.mxu0 0.0
      %663 = vmatpush1.msra.mxu0 0.0
      %664 = vmatprep.subr.mxu0 0.0
      %665 = vmatpush1.msra.mxu0 0.0
      %666 = vmatprep.subr.mxu0 0.0
      %667 = vmatpush1.msra.mxu0 0.0
      %668 = vmatprep.subr.mxu0 0.0
      %669 = vmatpush1.msra.mxu0 0.0
      %670 = vmatprep.subr.mxu0 0.0
      %671 = vmatpush1.msra.mxu0 0.0
      %672 = vmatprep.subr.mxu0 0.0
      %673 = vmatpush1.msra.mxu0 0.0
      %674 = vmatprep.subr.mxu0 0.0
      %675 = vmatpush1.msra.mxu0 0.0
      %676 = vmatprep.subr.mxu0 0.0
      %677 = vmatpush1.msra.mxu0 0.0
      %678 = vmatprep.subr.mxu0 0.0
      %679 = vmatpush1.msra.mxu0 0.0
      %680 = vmatprep.subr.mxu0 0.0
      %681 = vmatpush1.msra.mxu0 0.0
      %682 = vmatprep.subr.mxu0 0.0
      %683 = vmatpush1.msra.mxu0 0.0
      %684 = vmatprep.subr.mxu0 0.0
      %685 = vmatpush1.msra.mxu0 0.0
      %686 = vmatprep.subr.mxu0 0.0
      %687 = vmatpush1.msra.mxu0 0.0
      %688 = vmatprep.subr.mxu0 0.0
      %689 = vmatpush1.msra.mxu0 0.0
      %690 = vmatprep.subr.mxu0 0.0
      %691 = vmatpush1.msra.mxu0 0.0
      %692 = vmatprep.subr.mxu0 0.0
      %693 = vmatpush1.msra.mxu0 0.0
      %694 = vmatprep.subr.mxu0 0.0
      %695 = vmatpush1.msra.mxu0 0.0
      %696 = vmatprep.subr.mxu0 0.0
      %697 = vmatpush1.msra.mxu0 0.0
      %698 = vmatprep.subr.mxu0 0.0
      %699 = vmatpush1.msra.mxu0 0.0
      %700 = vmatprep.subr.mxu0 0.0
      %701 = vmatpush1.msra.mxu0 0.0
      %702 = vmatprep.subr.mxu0 0.0
      %703 = vmatpush1.msra.mxu0 0.0
      %704 = vmatprep.subr.mxu0 0.0
      %705 = vmatpush1.msra.mxu0 0.0
      %706 = vmatprep.mubr.f32.mxu0 0.0
      %707 = vmatmul.mubr.f32.gmra.mrb[0].mxu0 %v640
      %v708 = vpop.f32.mrb[0].mxu0
      %v709 = vadd.f32 %v621, %v708
      %v710 = vpop.f32.mrb[0].mxu0
      %711 = vmatprep.mubr.f32.mxu0 0.0
      %712 = vmatmul.mubr.f32.gmra.mrb[0].mxu0 %v543
      %v713 = vpop.f32.mrb[0].mxu0
      %v714 = vadd.f32 %v626, %v713
      %v715 = vpop.f32.mrb[0].mxu0
      %716 = vmatprep.mubr.f32.mxu0 0.0
      %717 = vmatmul.mubr.f32.gmra.mrb[0].mxu0 %v546
      %v718 = vpop.f32.mrb[0].mxu0
      %v719 = vadd.f32 %v631, %v718
      %v720 = vpop.f32.mrb[0].mxu0
      %721 = vmatprep.mubr.f32.mxu0 0.0
      %722 = vmatmul.mubr.f32.gmra.mrb[0].mxu0 %v549
      %v723 = vpop.f32.mrb[0].mxu0
      %v724 = vadd.f32 %v636, %v723
      %v725 = vpop.f32.mrb[0].mxu0
      %726 = vdwg.mxu0
      %v728 = vlaneseq
      %v729 = vshrl.u32 %v728, 7
      %v730 = vsub.s32 0, %v729
      %v731 = vrot.slane %v444, %v730
      %v733 = vadd.f32 %v709, %v731
      %v734 = vadd.f32 %v714, %v731
      %v735 = vadd.f32 %v719, %v731
      %v736 = vadd.f32 %v724, %v731
      %s737 = scalar_lea.vmem %s3, 128
      %v738 = vld [vmem:[%s737] sm:$0xff]
      %v739 = vld [vmem:[%s737 + $0x8] sm:$0xff]
      %v740 = vld [vmem:[%s737 + $0x10] sm:$0xff]
      %v741 = vld [vmem:[%s737 + $0x18] sm:$0xff]
      %v742 = vld [vmem:[%s737 + $0x20] sm:$0xff]
      %v743 = vld [vmem:[%s737 + $0x28] sm:$0xff]
      %v744 = vld [vmem:[%s737 + $0x30] sm:$0xff]
      %v745 = vld [vmem:[%s737 + $0x38] sm:$0xff]
      %s746 = scalar_lea.vmem %s3, 192
      %v747 = vld [vmem:[%s746] sm:$0xff]
      %v748 = vld [vmem:[%s746 + $0x8] sm:$0xff]
      %v749 = vld [vmem:[%s746 + $0x10] sm:$0xff]
      %v750 = vld [vmem:[%s746 + $0x18] sm:$0xff]
      %v751 = vld [vmem:[%s746 + $0x20] sm:$0xff]
      %v752 = vld [vmem:[%s746 + $0x28] sm:$0xff]
      %v753 = vld [vmem:[%s746 + $0x30] sm:$0xff]
      %v754 = vld [vmem:[%s746 + $0x38] sm:$0xff]
      %v756 = vsel %vm541, %v519, 0
      %v759 = vsel %vm541, %v520, 0
      %v762 = vsel %vm541, %v521, 0
      %v765 = vsel %vm541, %v522, 0
      %767 = vmatprep.subr.mxu0 0.0
      %768 = vmatpush1.msra.mxu0 %v747
      %769 = vmatprep.subr.mxu0 0.0
      %770 = vmatpush1.msra.mxu0 %v748
      %771 = vmatprep.subr.mxu0 0.0
      %772 = vmatpush1.msra.mxu0 %v749
      %773 = vmatprep.subr.mxu0 0.0
      %774 = vmatpush1.msra.mxu0 %v750
      %775 = vmatprep.subr.mxu0 0.0
      %776 = vmatpush1.msra.mxu0 %v751
      %777 = vmatprep.subr.mxu0 0.0
      %778 = vmatpush1.msra.mxu0 %v752
      %779 = vmatprep.subr.mxu0 0.0
      %780 = vmatpush1.msra.mxu0 %v753
      %781 = vmatprep.subr.mxu0 0.0
      %782 = vmatpush1.msra.mxu0 %v754
      %783 = vmatprep.subr.mxu0 0.0
      %784 = vmatpush1.msra.mxu0 0.0
      %785 = vmatprep.subr.mxu0 0.0
      %786 = vmatpush1.msra.mxu0 0.0
      %787 = vmatprep.subr.mxu0 0.0
      %788 = vmatpush1.msra.mxu0 0.0
      %789 = vmatprep.subr.mxu0 0.0
      %790 = vmatpush1.msra.mxu0 0.0
      %791 = vmatprep.subr.mxu0 0.0
      %792 = vmatpush1.msra.mxu0 0.0
      %793 = vmatprep.subr.mxu0 0.0
      %794 = vmatpush1.msra.mxu0 0.0
      %795 = vmatprep.subr.mxu0 0.0
      %796 = vmatpush1.msra.mxu0 0.0
      %797 = vmatprep.subr.mxu0 0.0
      %798 = vmatpush1.msra.mxu0 0.0
      %799 = vmatprep.subr.mxu0 0.0
      %800 = vmatpush1.msra.mxu0 0.0
      %801 = vmatprep.subr.mxu0 0.0
      %802 = vmatpush1.msra.mxu0 0.0
      %803 = vmatprep.subr.mxu0 0.0
      %804 = vmatpush1.msra.mxu0 0.0
      %805 = vmatprep.subr.mxu0 0.0
      %806 = vmatpush1.msra.mxu0 0.0
      %807 = vmatprep.subr.mxu0 0.0
      %808 = vmatpush1.msra.mxu0 0.0
      %809 = vmatprep.subr.mxu0 0.0
      %810 = vmatpush1.msra.mxu0 0.0
      %811 = vmatprep.subr.mxu0 0.0
      %812 = vmatpush1.msra.mxu0 0.0
      %813 = vmatprep.subr.mxu0 0.0
      %814 = vmatpush1.msra.mxu0 0.0
      %815 = vmatprep.subr.mxu0 0.0
      %816 = vmatpush1.msra.mxu0 0.0
      %817 = vmatprep.subr.mxu0 0.0
      %818 = vmatpush1.msra.mxu0 0.0
      %819 = vmatprep.subr.mxu0 0.0
      %820 = vmatpush1.msra.mxu0 0.0
      %821 = vmatprep.subr.mxu0 0.0
      %822 = vmatpush1.msra.mxu0 0.0
      %823 = vmatprep.subr.mxu0 0.0
      %824 = vmatpush1.msra.mxu0 0.0
      %825 = vmatprep.subr.mxu0 0.0
      %826 = vmatpush1.msra.mxu0 0.0
      %827 = vmatprep.subr.mxu0 0.0
      %828 = vmatpush1.msra.mxu0 0.0
      %829 = vmatprep.subr.mxu0 0.0
      %830 = vmatpush1.msra.mxu0 0.0
      %831 = vmatprep.mubr.f32.mxu0 0.0
      %832 = vmatmul.mubr.f32.gmra.mrb[0].mxu0 %v756
      %v833 = vpop.f32.mrb[0].mxu0
      %v834 = vadd.f32 0.0, %v833
      %v835 = vpop.f32.mrb[0].mxu0
      %836 = vmatprep.mubr.f32.mxu0 0.0
      %837 = vmatmul.mubr.f32.gmra.mrb[0].mxu0 %v759
      %v838 = vpop.f32.mrb[0].mxu0
      %v839 = vadd.f32 0.0, %v838
      %v840 = vpop.f32.mrb[0].mxu0
      %841 = vmatprep.mubr.f32.mxu0 0.0
      %842 = vmatmul.mubr.f32.gmra.mrb[0].mxu0 %v762
      %v843 = vpop.f32.mrb[0].mxu0
      %v844 = vadd.f32 0.0, %v843
      %v845 = vpop.f32.mrb[0].mxu0
      %846 = vmatprep.mubr.f32.mxu0 0.0
      %847 = vmatmul.mubr.f32.gmra.mrb[0].mxu0 %v765
      %v848 = vpop.f32.mrb[0].mxu0
      %v849 = vadd.f32 0.0, %v848
      %v850 = vpop.f32.mrb[0].mxu0
      %851 = vdwg.mxu0
      %v853 = vsel %vm541, %v518, 0
      %855 = vmatprep.subr.mxu0 0.0
      %856 = vmatpush1.msra.mxu0 %v738
      %857 = vmatprep.subr.mxu0 0.0
      %858 = vmatpush1.msra.mxu0 %v739
      %859 = vmatprep.subr.mxu0 0.0
      %860 = vmatpush1.msra.mxu0 %v740
      %861 = vmatprep.subr.mxu0 0.0
      %862 = vmatpush1.msra.mxu0 %v741
      %863 = vmatprep.subr.mxu0 0.0
      %864 = vmatpush1.msra.mxu0 %v742
      %865 = vmatprep.subr.mxu0 0.0
      %866 = vmatpush1.msra.mxu0 %v743
      %867 = vmatprep.subr.mxu0 0.0
      %868 = vmatpush1.msra.mxu0 %v744
      %869 = vmatprep.subr.mxu0 0.0
      %870 = vmatpush1.msra.mxu0 %v745
      %871 = vmatprep.subr.mxu0 0.0
      %872 = vmatpush1.msra.mxu0 0.0
      %873 = vmatprep.subr.mxu0 0.0
      %874 = vmatpush1.msra.mxu0 0.0
      %875 = vmatprep.subr.mxu0 0.0
      %876 = vmatpush1.msra.mxu0 0.0
      %877 = vmatprep.subr.mxu0 0.0
      %878 = vmatpush1.msra.mxu0 0.0
      %879 = vmatprep.subr.mxu0 0.0
      %880 = vmatpush1.msra.mxu0 0.0
      %881 = vmatprep.subr.mxu0 0.0
      %882 = vmatpush1.msra.mxu0 0.0
      %883 = vmatprep.subr.mxu0 0.0
      %884 = vmatpush1.msra.mxu0 0.0
      %885 = vmatprep.subr.mxu0 0.0
      %886 = vmatpush1.msra.mxu0 0.0
      %887 = vmatprep.subr.mxu0 0.0
      %888 = vmatpush1.msra.mxu0 0.0
      %889 = vmatprep.subr.mxu0 0.0
      %890 = vmatpush1.msra.mxu0 0.0
      %891 = vmatprep.subr.mxu0 0.0
      %892 = vmatpush1.msra.mxu0 0.0
      %893 = vmatprep.subr.mxu0 0.0
      %894 = vmatpush1.msra.mxu0 0.0
      %895 = vmatprep.subr.mxu0 0.0
      %896 = vmatpush1.msra.mxu0 0.0
      %897 = vmatprep.subr.mxu0 0.0
      %898 = vmatpush1.msra.mxu0 0.0
      %899 = vmatprep.subr.mxu0 0.0
      %900 = vmatpush1.msra.mxu0 0.0
      %901 = vmatprep.subr.mxu0 0.0
      %902 = vmatpush1.msra.mxu0 0.0
      %903 = vmatprep.subr.mxu0 0.0
      %904 = vmatpush1.msra.mxu0 0.0
      %905 = vmatprep.subr.mxu0 0.0
      %906 = vmatpush1.msra.mxu0 0.0
      %907 = vmatprep.subr.mxu0 0.0
      %908 = vmatpush1.msra.mxu0 0.0
      %909 = vmatprep.subr.mxu0 0.0
      %910 = vmatpush1.msra.mxu0 0.0
      %911 = vmatprep.subr.mxu0 0.0
      %912 = vmatpush1.msra.mxu0 0.0
      %913 = vmatprep.subr.mxu0 0.0
      %914 = vmatpush1.msra.mxu0 0.0
      %915 = vmatprep.subr.mxu0 0.0
      %916 = vmatpush1.msra.mxu0 0.0
      %917 = vmatprep.subr.mxu0 0.0
      %918 = vmatpush1.msra.mxu0 0.0
      %919 = vmatprep.mubr.f32.mxu0 0.0
      %920 = vmatmul.mubr.f32.gmra.mrb[0].mxu0 %v853
      %v921 = vpop.f32.mrb[0].mxu0
      %v922 = vadd.f32 %v834, %v921
      %v923 = vpop.f32.mrb[0].mxu0
      %924 = vmatprep.mubr.f32.mxu0 0.0
      %925 = vmatmul.mubr.f32.gmra.mrb[0].mxu0 %v756
      %v926 = vpop.f32.mrb[0].mxu0
      %v927 = vadd.f32 %v839, %v926
      %v928 = vpop.f32.mrb[0].mxu0
      %929 = vmatprep.mubr.f32.mxu0 0.0
      %930 = vmatmul.mubr.f32.gmra.mrb[0].mxu0 %v759
      %v931 = vpop.f32.mrb[0].mxu0
      %v932 = vadd.f32 %v844, %v931
      %v933 = vpop.f32.mrb[0].mxu0
      %934 = vmatprep.mubr.f32.mxu0 0.0
      %935 = vmatmul.mubr.f32.gmra.mrb[0].mxu0 %v762
      %v936 = vpop.f32.mrb[0].mxu0
      %v937 = vadd.f32 %v849, %v936
      %v938 = vpop.f32.mrb[0].mxu0
      %939 = vdwg.mxu0
      %v940 = vadd.f32 %v922, %v731
      %v941 = vadd.f32 %v927, %v731
      %v942 = vadd.f32 %v932, %v731
      %v943 = vadd.f32 %v937, %v731
      %948 = vrot.lane.b32.xlu0 %v940, 32
      %v949 = vpop.permute.xlu0 %948
      %950 = vrot.lane.b32.xlu0 %v941, 32
      %v951 = vpop.permute.xlu0 %950
      %952 = vrot.lane.b32.xlu0 %v942, 32
      %v953 = vpop.permute.xlu0 %952
      %954 = vrot.lane.b32.xlu0 %v943, 32
      %v955 = vpop.permute.xlu0 %954
      %v960 = vsel %vm387, %v733, %v949
      %v961 = vsel %vm387, %v734, %v951
      %v962 = vsel %vm387, %v735, %v953
      %v963 = vsel %vm387, %v736, %v955
      %s964 = scalar_lea.vmem %s3, 256
      %v965 = vld [vmem:[%s964] sm:$0xff]
      %v966 = vld [vmem:[%s964 + $0x8] sm:$0xff]
      %v967 = vld [vmem:[%s964 + $0x10] sm:$0xff]
      %v968 = vld [vmem:[%s964 + $0x18] sm:$0xff]
      %v969 = vld [vmem:[%s964 + $0x20] sm:$0xff]
      %v970 = vld [vmem:[%s964 + $0x28] sm:$0xff]
      %v971 = vld [vmem:[%s964 + $0x30] sm:$0xff]
      %v972 = vld [vmem:[%s964 + $0x38] sm:$0xff]
      %s973 = scalar_lea.vmem %s3, 320
      %v974 = vld [vmem:[%s973] sm:$0xff]
      %v975 = vld [vmem:[%s973 + $0x8] sm:$0xff]
      %v976 = vld [vmem:[%s973 + $0x10] sm:$0xff]
      %v977 = vld [vmem:[%s973 + $0x18] sm:$0xff]
      %v978 = vld [vmem:[%s973 + $0x20] sm:$0xff]
      %v979 = vld [vmem:[%s973 + $0x28] sm:$0xff]
      %v980 = vld [vmem:[%s973 + $0x30] sm:$0xff]
      %v981 = vld [vmem:[%s973 + $0x38] sm:$0xff]
      %v983 = vsel %vm541, %v468, 0
      %985 = vmatprep.subr.mxu0 0.0
      %986 = vmatpush1.msra.mxu0 %v974
      %987 = vmatprep.subr.mxu0 0.0
      %988 = vmatpush1.msra.mxu0 %v975
      %989 = vmatprep.subr.mxu0 0.0
      %990 = vmatpush1.msra.mxu0 %v976
      %991 = vmatprep.subr.mxu0 0.0
      %992 = vmatpush1.msra.mxu0 %v977
      %993 = vmatprep.subr.mxu0 0.0
      %994 = vmatpush1.msra.mxu0 %v978
      %995 = vmatprep.subr.mxu0 0.0
      %996 = vmatpush1.msra.mxu0 %v979
      %997 = vmatprep.subr.mxu0 0.0
      %998 = vmatpush1.msra.mxu0 %v980
      %999 = vmatprep.subr.mxu0 0.0
      %1000 = vmatpush1.msra.mxu0 %v981
      %1001 = vmatprep.subr.mxu0 0.0
      %1002 = vmatpush1.msra.mxu0 0.0
      %1003 = vmatprep.subr.mxu0 0.0
      %1004 = vmatpush1.msra.mxu0 0.0
      %1005 = vmatprep.subr.mxu0 0.0
      %1006 = vmatpush1.msra.mxu0 0.0
      %1007 = vmatprep.subr.mxu0 0.0
      %1008 = vmatpush1.msra.mxu0 0.0
      %1009 = vmatprep.subr.mxu0 0.0
      %1010 = vmatpush1.msra.mxu0 0.0
      %1011 = vmatprep.subr.mxu0 0.0
      %1012 = vmatpush1.msra.mxu0 0.0
      %1013 = vmatprep.subr.mxu0 0.0
      %1014 = vmatpush1.msra.mxu0 0.0
      %1015 = vmatprep.subr.mxu0 0.0
      %1016 = vmatpush1.msra.mxu0 0.0
      %1017 = vmatprep.subr.mxu0 0.0
      %1018 = vmatpush1.msra.mxu0 0.0
      %1019 = vmatprep.subr.mxu0 0.0
      %1020 = vmatpush1.msra.mxu0 0.0
      %1021 = vmatprep.subr.mxu0 0.0
      %1022 = vmatpush1.msra.mxu0 0.0
      %1023 = vmatprep.subr.mxu0 0.0
      %1024 = vmatpush1.msra.mxu0 0.0
      %1025 = vmatprep.subr.mxu0 0.0
      %1026 = vmatpush1.msra.mxu0 0.0
      %1027 = vmatprep.subr.mxu0 0.0
      %1028 = vmatpush1.msra.mxu0 0.0
      %1029 = vmatprep.subr.mxu0 0.0
      %1030 = vmatpush1.msra.mxu0 0.0
      %1031 = vmatprep.subr.mxu0 0.0
      %1032 = vmatpush1.msra.mxu0 0.0
      %1033 = vmatprep.subr.mxu0 0.0
      %1034 = vmatpush1.msra.mxu0 0.0
      %1035 = vmatprep.subr.mxu0 0.0
      %1036 = vmatpush1.msra.mxu0 0.0
      %1037 = vmatprep.subr.mxu0 0.0
      %1038 = vmatpush1.msra.mxu0 0.0
      %1039 = vmatprep.subr.mxu0 0.0
      %1040 = vmatpush1.msra.mxu0 0.0
      %1041 = vmatprep.subr.mxu0 0.0
      %1042 = vmatpush1.msra.mxu0 0.0
      %1043 = vmatprep.subr.mxu0 0.0
      %1044 = vmatpush1.msra.mxu0 0.0
      %1045 = vmatprep.subr.mxu0 0.0
      %1046 = vmatpush1.msra.mxu0 0.0
      %1047 = vmatprep.subr.mxu0 0.0
      %1048 = vmatpush1.msra.mxu0 0.0
      %1049 = vmatprep.mubr.f32.mxu0 0.0
      %1050 = vmatmul.mubr.f32.gmra.mrb[0].mxu0 %v546
      %v1051 = vpop.f32.mrb[0].mxu0
      %v1052 = vadd.f32 0.0, %v1051
      %v1053 = vpop.f32.mrb[0].mxu0
      %1054 = vmatprep.mubr.f32.mxu0 0.0
      %1055 = vmatmul.mubr.f32.gmra.mrb[0].mxu0 %v549
      %v1056 = vpop.f32.mrb[0].mxu0
      %v1057 = vadd.f32 0.0, %v1056
      %v1058 = vpop.f32.mrb[0].mxu0
      %1059 = vmatprep.mubr.f32.mxu0 0.0
      %1060 = vmatmul.mubr.f32.gmra.mrb[0].mxu0 %v552
      %v1061 = vpop.f32.mrb[0].mxu0
      %v1062 = vadd.f32 0.0, %v1061
      %v1063 = vpop.f32.mrb[0].mxu0
      %1064 = vmatprep.mubr.f32.mxu0 0.0
      %1065 = vmatmul.mubr.f32.gmra.mrb[0].mxu0 %v983
      %v1066 = vpop.f32.mrb[0].mxu0
      %v1067 = vadd.f32 0.0, %v1066
      %v1068 = vpop.f32.mrb[0].mxu0
      %1069 = vdwg.mxu0
      %1070 = vmatprep.subr.mxu0 0.0
      %1071 = vmatpush1.msra.mxu0 %v965
      %1072 = vmatprep.subr.mxu0 0.0
      %1073 = vmatpush1.msra.mxu0 %v966
      %1074 = vmatprep.subr.mxu0 0.0
      %1075 = vmatpush1.msra.mxu0 %v967
      %1076 = vmatprep.subr.mxu0 0.0
      %1077 = vmatpush1.msra.mxu0 %v968
      %1078 = vmatprep.subr.mxu0 0.0
      %1079 = vmatpush1.msra.mxu0 %v969
      %1080 = vmatprep.subr.mxu0 0.0
      %1081 = vmatpush1.msra.mxu0 %v970
      %1082 = vmatprep.subr.mxu0 0.0
      %1083 = vmatpush1.msra.mxu0 %v971
      %1084 = vmatprep.subr.mxu0 0.0
      %1085 = vmatpush1.msra.mxu0 %v972
      %1086 = vmatprep.subr.mxu0 0.0
      %1087 = vmatpush1.msra.mxu0 0.0
      %1088 = vmatprep.subr.mxu0 0.0
      %1089 = vmatpush1.msra.mxu0 0.0
      %1090 = vmatprep.subr.mxu0 0.0
      %1091 = vmatpush1.msra.mxu0 0.0
      %1092 = vmatprep.subr.mxu0 0.0
      %1093 = vmatpush1.msra.mxu0 0.0
      %1094 = vmatprep.subr.mxu0 0.0
      %1095 = vmatpush1.msra.mxu0 0.0
      %1096 = vmatprep.subr.mxu0 0.0
      %1097 = vmatpush1.msra.mxu0 0.0
      %1098 = vmatprep.subr.mxu0 0.0
      %1099 = vmatpush1.msra.mxu0 0.0
      %1100 = vmatprep.subr.mxu0 0.0
      %1101 = vmatpush1.msra.mxu0 0.0
      %1102 = vmatprep.subr.mxu0 0.0
      %1103 = vmatpush1.msra.mxu0 0.0
      %1104 = vmatprep.subr.mxu0 0.0
      %1105 = vmatpush1.msra.mxu0 0.0
      %1106 = vmatprep.subr.mxu0 0.0
      %1107 = vmatpush1.msra.mxu0 0.0
      %1108 = vmatprep.subr.mxu0 0.0
      %1109 = vmatpush1.msra.mxu0 0.0
      %1110 = vmatprep.subr.mxu0 0.0
      %1111 = vmatpush1.msra.mxu0 0.0
      %1112 = vmatprep.subr.mxu0 0.0
      %1113 = vmatpush1.msra.mxu0 0.0
      %1114 = vmatprep.subr.mxu0 0.0
      %1115 = vmatpush1.msra.mxu0 0.0
      %1116 = vmatprep.subr.mxu0 0.0
      %1117 = vmatpush1.msra.mxu0 0.0
      %1118 = vmatprep.subr.mxu0 0.0
      %1119 = vmatpush1.msra.mxu0 0.0
      %1120 = vmatprep.subr.mxu0 0.0
      %1121 = vmatpush1.msra.mxu0 0.0
      %1122 = vmatprep.subr.mxu0 0.0
      %1123 = vmatpush1.msra.mxu0 0.0
      %1124 = vmatprep.subr.mxu0 0.0
      %1125 = vmatpush1.msra.mxu0 0.0
      %1126 = vmatprep.subr.mxu0 0.0
      %1127 = vmatpush1.msra.mxu0 0.0
      %1128 = vmatprep.subr.mxu0 0.0
      %1129 = vmatpush1.msra.mxu0 0.0
      %1130 = vmatprep.subr.mxu0 0.0
      %1131 = vmatpush1.msra.mxu0 0.0
      %1132 = vmatprep.subr.mxu0 0.0
      %1133 = vmatpush1.msra.mxu0 0.0
      %1134 = vmatprep.mubr.f32.mxu0 0.0
      %1135 = vmatmul.mubr.f32.gmra.mrb[0].mxu0 %v543
      %v1136 = vpop.f32.mrb[0].mxu0
      %v1137 = vadd.f32 %v1052, %v1136
      %v1138 = vpop.f32.mrb[0].mxu0
      %1139 = vmatprep.mubr.f32.mxu0 0.0
      %1140 = vmatmul.mubr.f32.gmra.mrb[0].mxu0 %v546
      %v1141 = vpop.f32.mrb[0].mxu0
      %v1142 = vadd.f32 %v1057, %v1141
      %v1143 = vpop.f32.mrb[0].mxu0
      %1144 = vmatprep.mubr.f32.mxu0 0.0
      %1145 = vmatmul.mubr.f32.gmra.mrb[0].mxu0 %v549
      %v1146 = vpop.f32.mrb[0].mxu0
      %v1147 = vadd.f32 %v1062, %v1146
      %v1148 = vpop.f32.mrb[0].mxu0
      %1149 = vmatprep.mubr.f32.mxu0 0.0
      %1150 = vmatmul.mubr.f32.gmra.mrb[0].mxu0 %v552
      %v1151 = vpop.f32.mrb[0].mxu0
      %v1152 = vadd.f32 %v1067, %v1151
      %v1153 = vpop.f32.mrb[0].mxu0
      %1154 = vdwg.mxu0
      %v1155 = vadd.f32 %v1137, %v731
      %v1156 = vadd.f32 %v1142, %v731
      %v1157 = vadd.f32 %v1147, %v731
      %v1158 = vadd.f32 %v1152, %v731
      %s1159 = scalar_lea.vmem %s3, 384
      %v1160 = vld [vmem:[%s1159] sm:$0xff]
      %v1161 = vld [vmem:[%s1159 + $0x8] sm:$0xff]
      %v1162 = vld [vmem:[%s1159 + $0x10] sm:$0xff]
      %v1163 = vld [vmem:[%s1159 + $0x18] sm:$0xff]
      %v1164 = vld [vmem:[%s1159 + $0x20] sm:$0xff]
      %v1165 = vld [vmem:[%s1159 + $0x28] sm:$0xff]
      %v1166 = vld [vmem:[%s1159 + $0x30] sm:$0xff]
      %v1167 = vld [vmem:[%s1159 + $0x38] sm:$0xff]
      %s1168 = scalar_lea.vmem %s3, 448
      %v1169 = vld [vmem:[%s1168] sm:$0xff]
      %v1170 = vld [vmem:[%s1168 + $0x8] sm:$0xff]
      %v1171 = vld [vmem:[%s1168 + $0x10] sm:$0xff]
      %v1172 = vld [vmem:[%s1168 + $0x18] sm:$0xff]
      %v1173 = vld [vmem:[%s1168 + $0x20] sm:$0xff]
      %v1174 = vld [vmem:[%s1168 + $0x28] sm:$0xff]
      %v1175 = vld [vmem:[%s1168 + $0x30] sm:$0xff]
      %v1176 = vld [vmem:[%s1168 + $0x38] sm:$0xff]
      %v1178 = vsel %vm541, %v523, 0
      %1180 = vmatprep.subr.mxu0 0.0
      %1181 = vmatpush1.msra.mxu0 %v1169
      %1182 = vmatprep.subr.mxu0 0.0
      %1183 = vmatpush1.msra.mxu0 %v1170
      %1184 = vmatprep.subr.mxu0 0.0
      %1185 = vmatpush1.msra.mxu0 %v1171
      %1186 = vmatprep.subr.mxu0 0.0
      %1187 = vmatpush1.msra.mxu0 %v1172
      %1188 = vmatprep.subr.mxu0 0.0
      %1189 = vmatpush1.msra.mxu0 %v1173
      %1190 = vmatprep.subr.mxu0 0.0
      %1191 = vmatpush1.msra.mxu0 %v1174
      %1192 = vmatprep.subr.mxu0 0.0
      %1193 = vmatpush1.msra.mxu0 %v1175
      %1194 = vmatprep.subr.mxu0 0.0
      %1195 = vmatpush1.msra.mxu0 %v1176
      %1196 = vmatprep.subr.mxu0 0.0
      %1197 = vmatpush1.msra.mxu0 0.0
      %1198 = vmatprep.subr.mxu0 0.0
      %1199 = vmatpush1.msra.mxu0 0.0
      %1200 = vmatprep.subr.mxu0 0.0
      %1201 = vmatpush1.msra.mxu0 0.0
      %1202 = vmatprep.subr.mxu0 0.0
      %1203 = vmatpush1.msra.mxu0 0.0
      %1204 = vmatprep.subr.mxu0 0.0
      %1205 = vmatpush1.msra.mxu0 0.0
      %1206 = vmatprep.subr.mxu0 0.0
      %1207 = vmatpush1.msra.mxu0 0.0
      %1208 = vmatprep.subr.mxu0 0.0
      %1209 = vmatpush1.msra.mxu0 0.0
      %1210 = vmatprep.subr.mxu0 0.0
      %1211 = vmatpush1.msra.mxu0 0.0
      %1212 = vmatprep.subr.mxu0 0.0
      %1213 = vmatpush1.msra.mxu0 0.0
      %1214 = vmatprep.subr.mxu0 0.0
      %1215 = vmatpush1.msra.mxu0 0.0
      %1216 = vmatprep.subr.mxu0 0.0
      %1217 = vmatpush1.msra.mxu0 0.0
      %1218 = vmatprep.subr.mxu0 0.0
      %1219 = vmatpush1.msra.mxu0 0.0
      %1220 = vmatprep.subr.mxu0 0.0
      %1221 = vmatpush1.msra.mxu0 0.0
      %1222 = vmatprep.subr.mxu0 0.0
      %1223 = vmatpush1.msra.mxu0 0.0
      %1224 = vmatprep.subr.mxu0 0.0
      %1225 = vmatpush1.msra.mxu0 0.0
      %1226 = vmatprep.subr.mxu0 0.0
      %1227 = vmatpush1.msra.mxu0 0.0
      %1228 = vmatprep.subr.mxu0 0.0
      %1229 = vmatpush1.msra.mxu0 0.0
      %1230 = vmatprep.subr.mxu0 0.0
      %1231 = vmatpush1.msra.mxu0 0.0
      %1232 = vmatprep.subr.mxu0 0.0
      %1233 = vmatpush1.msra.mxu0 0.0
      %1234 = vmatprep.subr.mxu0 0.0
      %1235 = vmatpush1.msra.mxu0 0.0
      %1236 = vmatprep.subr.mxu0 0.0
      %1237 = vmatpush1.msra.mxu0 0.0
      %1238 = vmatprep.subr.mxu0 0.0
      %1239 = vmatpush1.msra.mxu0 0.0
      %1240 = vmatprep.subr.mxu0 0.0
      %1241 = vmatpush1.msra.mxu0 0.0
      %1242 = vmatprep.subr.mxu0 0.0
      %1243 = vmatpush1.msra.mxu0 0.0
      %1244 = vmatprep.mubr.f32.mxu0 0.0
      %1245 = vmatmul.mubr.f32.gmra.mrb[0].mxu0 %v759
      %v1246 = vpop.f32.mrb[0].mxu0
      %v1247 = vadd.f32 0.0, %v1246
      %v1248 = vpop.f32.mrb[0].mxu0
      %1249 = vmatprep.mubr.f32.mxu0 0.0
      %1250 = vmatmul.mubr.f32.gmra.mrb[0].mxu0 %v762
      %v1251 = vpop.f32.mrb[0].mxu0
      %v1252 = vadd.f32 0.0, %v1251
      %v1253 = vpop.f32.mrb[0].mxu0
      %1254 = vmatprep.mubr.f32.mxu0 0.0
      %1255 = vmatmul.mubr.f32.gmra.mrb[0].mxu0 %v765
      %v1256 = vpop.f32.mrb[0].mxu0
      %v1257 = vadd.f32 0.0, %v1256
      %v1258 = vpop.f32.mrb[0].mxu0
      %1259 = vmatprep.mubr.f32.mxu0 0.0
      %1260 = vmatmul.mubr.f32.gmra.mrb[0].mxu0 %v1178
      %v1261 = vpop.f32.mrb[0].mxu0
      %v1262 = vadd.f32 0.0, %v1261
      %v1263 = vpop.f32.mrb[0].mxu0
      %1264 = vdwg.mxu0
      %1265 = vmatprep.subr.mxu0 0.0
      %1266 = vmatpush1.msra.mxu0 %v1160
      %1267 = vmatprep.subr.mxu0 0.0
      %1268 = vmatpush1.msra.mxu0 %v1161
      %1269 = vmatprep.subr.mxu0 0.0
      %1270 = vmatpush1.msra.mxu0 %v1162
      %1271 = vmatprep.subr.mxu0 0.0
      %1272 = vmatpush1.msra.mxu0 %v1163
      %1273 = vmatprep.subr.mxu0 0.0
      %1274 = vmatpush1.msra.mxu0 %v1164
      %1275 = vmatprep.subr.mxu0 0.0
      %1276 = vmatpush1.msra.mxu0 %v1165
      %1277 = vmatprep.subr.mxu0 0.0
      %1278 = vmatpush1.msra.mxu0 %v1166
      %1279 = vmatprep.subr.mxu0 0.0
      %1280 = vmatpush1.msra.mxu0 %v1167
      %1281 = vmatprep.subr.mxu0 0.0
      %1282 = vmatpush1.msra.mxu0 0.0
      %1283 = vmatprep.subr.mxu0 0.0
      %1284 = vmatpush1.msra.mxu0 0.0
      %1285 = vmatprep.subr.mxu0 0.0
      %1286 = vmatpush1.msra.mxu0 0.0
      %1287 = vmatprep.subr.mxu0 0.0
      %1288 = vmatpush1.msra.mxu0 0.0
      %1289 = vmatprep.subr.mxu0 0.0
      %1290 = vmatpush1.msra.mxu0 0.0
      %1291 = vmatprep.subr.mxu0 0.0
      %1292 = vmatpush1.msra.mxu0 0.0
      %1293 = vmatprep.subr.mxu0 0.0
      %1294 = vmatpush1.msra.mxu0 0.0
      %1295 = vmatprep.subr.mxu0 0.0
      %1296 = vmatpush1.msra.mxu0 0.0
      %1297 = vmatprep.subr.mxu0 0.0
      %1298 = vmatpush1.msra.mxu0 0.0
      %1299 = vmatprep.subr.mxu0 0.0
      %1300 = vmatpush1.msra.mxu0 0.0
      %1301 = vmatprep.subr.mxu0 0.0
      %1302 = vmatpush1.msra.mxu0 0.0
      %1303 = vmatprep.subr.mxu0 0.0
      %1304 = vmatpush1.msra.mxu0 0.0
      %1305 = vmatprep.subr.mxu0 0.0
      %1306 = vmatpush1.msra.mxu0 0.0
      %1307 = vmatprep.subr.mxu0 0.0
      %1308 = vmatpush1.msra.mxu0 0.0
      %1309 = vmatprep.subr.mxu0 0.0
      %1310 = vmatpush1.msra.mxu0 0.0
      %1311 = vmatprep.subr.mxu0 0.0
      %1312 = vmatpush1.msra.mxu0 0.0
      %1313 = vmatprep.subr.mxu0 0.0
      %1314 = vmatpush1.msra.mxu0 0.0
      %1315 = vmatprep.subr.mxu0 0.0
      %1316 = vmatpush1.msra.mxu0 0.0
      %1317 = vmatprep.subr.mxu0 0.0
      %1318 = vmatpush1.msra.mxu0 0.0
      %1319 = vmatprep.subr.mxu0 0.0
      %1320 = vmatpush1.msra.mxu0 0.0
      %1321 = vmatprep.subr.mxu0 0.0
      %1322 = vmatpush1.msra.mxu0 0.0
      %1323 = vmatprep.subr.mxu0 0.0
      %1324 = vmatpush1.msra.mxu0 0.0
      %1325 = vmatprep.subr.mxu0 0.0
      %1326 = vmatpush1.msra.mxu0 0.0
      %1327 = vmatprep.subr.mxu0 0.0
      %1328 = vmatpush1.msra.mxu0 0.0
      %1329 = vmatprep.mubr.f32.mxu0 0.0
      %1330 = vmatmul.mubr.f32.gmra.mrb[0].mxu0 %v756
      %v1331 = vpop.f32.mrb[0].mxu0
      %v1332 = vadd.f32 %v1247, %v1331
      %v1333 = vpop.f32.mrb[0].mxu0
      %1334 = vmatprep.mubr.f32.mxu0 0.0
      %1335 = vmatmul.mubr.f32.gmra.mrb[0].mxu0 %v759
      %v1336 = vpop.f32.mrb[0].mxu0
      %v1337 = vadd.f32 %v1252, %v1336
      %v1338 = vpop.f32.mrb[0].mxu0
      %1339 = vmatprep.mubr.f32.mxu0 0.0
      %1340 = vmatmul.mubr.f32.gmra.mrb[0].mxu0 %v762
      %v1341 = vpop.f32.mrb[0].mxu0
      %v1342 = vadd.f32 %v1257, %v1341
      %v1343 = vpop.f32.mrb[0].mxu0
      %1344 = vmatprep.mubr.f32.mxu0 0.0
      %1345 = vmatmul.mubr.f32.gmra.mrb[0].mxu0 %v765
      %v1346 = vpop.f32.mrb[0].mxu0
      %v1347 = vadd.f32 %v1262, %v1346
      %v1348 = vpop.f32.mrb[0].mxu0
      %1349 = vdwg.mxu0
      %v1350 = vadd.f32 %v1332, %v731
      %v1351 = vadd.f32 %v1337, %v731
      %v1352 = vadd.f32 %v1342, %v731
      %v1353 = vadd.f32 %v1347, %v731
      %1358 = vrot.lane.b32.xlu0 %v1350, 32
      %v1359 = vpop.permute.xlu0 %1358
      %1360 = vrot.lane.b32.xlu0 %v1351, 32
      %v1361 = vpop.permute.xlu0 %1360
      %1362 = vrot.lane.b32.xlu0 %v1352, 32
      %v1363 = vpop.permute.xlu0 %1362
      %1364 = vrot.lane.b32.xlu0 %v1353, 32
      %v1365 = vpop.permute.xlu0 %1364
      %v1370 = vsel %vm387, %v1155, %v1359
      %v1371 = vsel %vm387, %v1156, %v1361
      %v1372 = vsel %vm387, %v1157, %v1363
      %v1373 = vsel %vm387, %v1158, %v1365
      %1374 = vst.msk [vmem:[%s380] sm:$0xff] %vm541, %v960
      %1375 = vst.msk [vmem:[%s380 + $0x8] sm:$0xff] %vm541, %v1370
      %1376 = vst.msk [vmem:[%s380 + $0x10] sm:$0xff] %vm541, %v961
      %1377 = vst.msk [vmem:[%s380 + $0x18] sm:$0xff] %vm541, %v1371
      %1378 = vst.msk [vmem:[%s380 + $0x20] sm:$0xff] %vm541, %v962
      %1379 = vst.msk [vmem:[%s380 + $0x28] sm:$0xff] %vm541, %v1372
      %1380 = vst.msk [vmem:[%s380 + $0x30] sm:$0xff] %vm541, %v963
      %1381 = vst.msk [vmem:[%s380 + $0x38] sm:$0xff] %vm541, %v1373
      %s1382 = smul.u32 8, %s21
      %p1383 = scmp.lt.s32.totalorder %s20, 1
      %s1384 = scalar_select %p1383, %s20, 1
      %p1385 = scmp.lt.s32.totalorder %s1382, 15
      %s1386 = scalar_select %p1385, %s1382, 15
      %s1387 = smul.addr %s1384, 16
      %s1388 = sadd.s32 %s1386, %s1387
      %s1389 = smul.addr %s1388, 8
      %s1390 = scalar_lea.vmem %s5, %s1389
      // Predicated region
      $region41: #{pare_up_decoder_block_2d.7} parent=39 // pred_check
        %p1391 = pneg %p190
      $region42: #{pare_up_decoder_block_2d.7} parent=39 // pred_check_branch
        %1393 = sbr.rel (%p1391) target = $region44
      $region43: #{pare_up_decoder_block_2d.7} parent=39 // pred_region
        %s1394 = smul.u32 8, %s21
      $region44: #{pare_up_decoder_block_2d.7} parent=39 // pred_fallthru
        _
    $region40: #{pare_up_decoder_block_2d.7} parent=5 // pred_fallthru
      _
    %p1395 = scmp.le.s32.totalorder 2, %s11
    // Predicated region
    $region45: #{pare_up_decoder_block_2d.7} parent=5 // pred_check
      %p1396 = pneg %p1395
    $region46: #{pare_up_decoder_block_2d.7} parent=5 // pred_check_branch
      %1398 = sbr.rel (%p1396) target = $region48
    $region47: #{pare_up_decoder_block_2d.7} parent=5 // pred_region
      %s1399 = ssub.s32 %s11, 2
      // Predicated region
      $region49: #{pare_up_decoder_block_2d.7} parent=47 // pred_check
        %p1400 = pneg %p196
      $region50: #{pare_up_decoder_block_2d.7} parent=47 // pred_check_branch
        %1402 = sbr.rel (%p1400) target = $region52
      $region51: #{pare_up_decoder_block_2d.7} parent=47 // pred_region
        %s1403 = smul.u32 8, %s23
        %p1404 = scmp.lt.s32.totalorder %s22, 1
        %s1405 = scalar_select %p1404, %s22, 1
        %p1406 = scmp.lt.s32.totalorder %s1403, 15
        %s1407 = scalar_select %p1406, %s1403, 15
        %s1408 = smul.addr %s1405, 16
        %s1409 = sadd.s32 %s1407, %s1408
        %s1410 = smul.addr %s1409, 8
        %s1411 = scalar_lea.vmem %s5, %s1410
      $region52: #{pare_up_decoder_block_2d.7} parent=47 // pred_fallthru
        _
    $region48: #{pare_up_decoder_block_2d.7} parent=5 // pred_fallthru
      _
  $region6: #{pare_up_decoder_block_2d.7} parent=0 // loop_footer
    %s15 = sadd.s32 1, %s11
  $region7: #{pare_up_decoder_block_2d.7} parent=0 // loop_footer_branch
    %10 = sbr.rel target = $region3
  $region8: #{pare_up_decoder_block_2d.7} parent=0 // loop_exit
    _

</llo_original>
